<compile_context>
chip_gen: v7x
topology: tpu7x:2x2x1
jax: 0.10.0
libtpu: 0.0.40
codegen_flags: <defaults>
</compile_context>

<pallas_src>
import functools
import math

import jax
import jax.numpy as jnp
from jax.experimental import pallas as pl
from jax.experimental.pallas import tpu as pltpu


def _round_up(x, m):
    return (x + m - 1) // m * m


# -----------------------------------------------------------------------------
# Fused kernel: 5-layer per-point MLP (transposed layout) + running max over points
# -----------------------------------------------------------------------------
def _encoder_kernel(x_ref, w1_ref, b1_ref, w2_ref, b2_ref, w3_ref, b3_ref,
                    w4_ref, b4_ref, w5_ref, b5_ref, o_ref, *,
                    seq_len, tl, per_chunk):
    c = pl.program_id(1)
    l = pl.program_id(2)
    t = c * per_chunk + l                       # global length-tile index

    xrow = x_ref[0]                             # (1, tl) f32, lane-dense

    # Layer 1 (Cin=1): outer product on the VPU; channels on sublanes, points on lanes.
    h = jnp.maximum(w1_ref[...] * xrow + b1_ref[...], 0.0)                   # (64, tl)

    # Layers 2..4: bf16 MXU matmuls (W^T @ h) with f32 accumulation + bias + ReLU.
    h = jnp.maximum(
        jnp.dot(w2_ref[...], h.astype(jnp.bfloat16),
                preferred_element_type=jnp.float32) + b2_ref[...], 0.0)      # (128, tl)
    h = jnp.maximum(
        jnp.dot(w3_ref[...], h.astype(jnp.bfloat16),
                preferred_element_type=jnp.float32) + b3_ref[...], 0.0)      # (256, tl)
    h = jnp.maximum(
        jnp.dot(w4_ref[...], h.astype(jnp.bfloat16),
                preferred_element_type=jnp.float32) + b4_ref[...], 0.0)      # (256, tl)

    # Layer 5: no ReLU.  Sigmoid is monotone -> applied AFTER the max (in wrapper).
    h = jnp.dot(w5_ref[...], h.astype(jnp.bfloat16),
                preferred_element_type=jnp.float32) + b5_ref[...]            # (zp, tl)

    @pl.when(l == 0)
    def _():
        o_ref[...] = jnp.full(o_ref.shape, -jnp.inf, o_ref.dtype)

    # Only tiles that can contain out-of-range points pay for the mask.
    needs_mask = (t + 1) * tl > seq_len

    @pl.when(jnp.logical_not(needs_mask))
    def _():
        m = jnp.max(h, axis=1, keepdims=True)                                # (zp, 1)
        o_ref[...] = jnp.maximum(o_ref[...], m[None, None])

    @pl.when(needs_mask)
    def _():
        lane = jax.lax.broadcasted_iota(jnp.int32, (1, tl), 1)
        valid = (t * tl + lane) < seq_len                                    # (1, tl)
        m = jnp.max(jnp.where(valid, h, -jnp.inf), axis=1, keepdims=True)
        o_ref[...] = jnp.maximum(o_ref[...], m[None, None])


# -----------------------------------------------------------------------------
# Wrapper: layout plumbing + pallas_call
# -----------------------------------------------------------------------------
@functools.partial(jax.jit, static_argnames=("tl_cap", "length_chunks"))
def encoder_conv1d_forward(x, params, *, tl_cap=2048, length_chunks=None):
    """Encoder_conv1D forward.  x: (N, 1, L) float32 (torch NCL layout)."""
    N, cin, L = x.shape
    assert cin == 1

    w1, b1 = params["w1"], params["b1"]
    w2, b2 = params["w2"], params["b2"]
    w3, b3 = params["w3"], params["b3"]
    w4, b4 = params["w4"], params["b4"]
    w5, b5 = params["w5"], params["b5"]

    c1, c2, c3, c4 = w1.shape[1], w2.shape[1], w3.shape[1], w4.shape[1]
    z = w5.shape[1]
    zp = _round_up(z, 128)                       # lane-dense channel count

    # Tile over points: last-dim blocks must be a multiple of 128 or the full L.
    tl = L if L <= tl_cap else max(128, (tl_cap // 128) * 128)
    l_tiles = pl.cdiv(L, tl)

    # Split the length axis into parallel chunks when the batch alone cannot keep
    # both v7x TensorCores busy.
    if length_chunks is None:
        chunks = 2 if (N == 1 and l_tiles >= 2) else 1
    else:
        chunks = max(1, min(length_chunks, l_tiles))
    per_chunk = pl.cdiv(l_tiles, chunks)

    # Weights pre-transposed (Cout, Cin) for the transposed in-kernel layout.
    def col(v):
        return v.reshape(-1, 1).astype(jnp.float32)

    w1t = w1.T.astype(jnp.float32)               # (c1, 1)  — VPU layer, keep f32
    w2t = w2.T.astype(jnp.bfloat16)              # (c2, c1)
    w3t = w3.T.astype(jnp.bfloat16)              # (c3, c2)
    w4t = w4.T.astype(jnp.bfloat16)              # (c4, c3)
    w5p, b5p = w5, b5
    if zp != z:                                  # pad final layer to 128-lane multiple
        w5p = jnp.pad(w5p, ((0, 0), (0, zp - z)))
        b5p = jnp.pad(b5p, ((0, zp - z),))
    w5t = w5p.T.astype(jnp.bfloat16)             # (zp, c4)

    cmap = lambda n, c, l: (0, 0)                # weights: fetched once, stay in VMEM
    xmap = lambda n, c, l: (n, 0, jnp.minimum(c * per_chunk + l, l_tiles - 1))
    omap = lambda n, c, l: (n, c, 0, 0)

    out = pl.pallas_call(
        functools.partial(_encoder_kernel, seq_len=L, tl=tl, per_chunk=per_chunk),
        out_shape=jax.ShapeDtypeStruct((N, chunks, zp, 1), jnp.float32),
        grid=(N, chunks, per_chunk),
        in_specs=[
            pl.BlockSpec((1, 1, tl), xmap),      # x points (lane-dense, no pad/copy)
            pl.BlockSpec((c1, 1), cmap),         # w1^T
            pl.BlockSpec((c1, 1), cmap),         # b1
            pl.BlockSpec((c2, c1), cmap),        # w2^T (bf16)
            pl.BlockSpec((c2, 1), cmap),         # b2
            pl.BlockSpec((c3, c2), cmap),        # w3^T (bf16)
            pl.BlockSpec((c3, 1), cmap),         # b3
            pl.BlockSpec((c4, c3), cmap),        # w4^T (bf16)
            pl.BlockSpec((c4, 1), cmap),         # b4
            pl.BlockSpec((zp, c4), cmap),        # w5^T (bf16, padded to zp)
            pl.BlockSpec((zp, 1), cmap),         # b5
        ],
        out_specs=pl.BlockSpec((1, 1, zp, 1), omap),
        compiler_params=pltpu.CompilerParams(
            dimension_semantics=("parallel", "parallel", "arbitrary"),
            vmem_limit_bytes=48 * 1024 * 1024),
    )(x.astype(jnp.float32),
      w1t, col(b1), w2t, col(b2), w3t, col(b3), w4t, col(b4), w5t, col(b5p))

    raw = out[:, :, :z, 0]                       # (N, chunks, z) pre-sigmoid maxima
    return jax.nn.sigmoid(jnp.max(raw, axis=1))  # sigmoid once, after the max


# -----------------------------------------------------------------------------
# Pure-JAX reference (f32) for correctness check
# -----------------------------------------------------------------------------
def encoder_conv1d_ref(x, params):
    h = jnp.transpose(x, (0, 2, 1)).astype(jnp.float32)     # (N, L, 1)
    h = jnp.maximum(h @ params["w1"] + params["b1"], 0.0)
    h = jnp.maximum(h @ params["w2"] + params["b2"], 0.0)
    h = jnp.maximum(h @ params["w3"] + params["b3"], 0.0)
    h = jnp.maximum(h @ params["w4"] + params["b4"], 0.0)
    h = h @ params["w5"] + params["b5"]
    y = 1.0 / (1.0 + jnp.exp(-h))
    return jnp.max(y, axis=1)                               # torch .max(dim=2)[0]


# -----------------------------------------------------------------------------
# Deterministic synthetic parameters (torch Conv1d weight (Cout, Cin, 1) stored as
# (Cin, Cout) matrices, since kernel_size=1 convs are matmuls).
# -----------------------------------------------------------------------------
def init_params(key, out_features):
    dims = [1, 64, 128, 256, 256, out_features]
    keys = jax.random.split(key, 2 * (len(dims) - 1))
    p = {}
    for i in range(len(dims) - 1):
        cin, cout = dims[i], dims[i + 1]
        bound = 1.0 / math.sqrt(cin)
        p[f"w{i + 1}"] = jax.random.uniform(
            keys[2 * i], (cin, cout), jnp.float32, -bound, bound)
        p[f"b{i + 1}"] = jax.random.uniform(
            keys[2 * i + 1], (cout,), jnp.float32, -bound, bound)
    return p


if __name__ == "__main__":
    key = jax.random.PRNGKey(0)
    pkey, xkey, xkey2 = jax.random.split(key, 3)

    out_features = 100                          # exercises the zp=128 padding path
    params = init_params(pkey, out_features)

    # Case 1: batch=2, L not a multiple of the tile -> exercises the edge-tile mask
    # and the multi-tile running max accumulation.
    N, L = 2, 2000
    x = jax.random.normal(xkey, (N, 1, L), jnp.float32)
    out = encoder_conv1d_forward(x, params, tl_cap=512)
    jax.block_until_ready(out)
    assert out.shape == (N, out_features)
    ref = encoder_conv1d_ref(x, params)
    err = float(jnp.max(jnp.abs(out - ref)))
    assert jnp.allclose(out, ref, atol=3e-2, rtol=0), err   # bf16 MXU tolerance

    # Case 2: batch=1 -> length axis split into 2 parallel chunks (both v7x
    # TensorCores); exercises the clamped / fully-masked tail tile.
    x1 = jax.random.normal(xkey2, (1, 1, 700), jnp.float32)
    out1 = encoder_conv1d_forward(x1, params, tl_cap=256)
    jax.block_until_ready(out1)
    assert out1.shape == (1, out_features)
    ref1 = encoder_conv1d_ref(x1, params)
    err1 = float(jnp.max(jnp.abs(out1 - ref1)))
    assert jnp.allclose(out1, ref1, atol=3e-2, rtol=0), err1

    print("KERNEL_OK")
</pallas_src>

<mosaic_0001>
module attributes {stable_mosaic.version = 11 : i64} {
  func.func @_encoder_kernel(%arg0: i32, %arg1: i32, %arg2: i32, %arg3: memref<1x1x512xf32, #tpu.memory_space<vmem>>, %arg4: memref<64x1xf32, #tpu.memory_space<vmem>>, %arg5: memref<64x1xf32, #tpu.memory_space<vmem>>, %arg6: memref<128x64xbf16, #tpu.memory_space<vmem>>, %arg7: memref<128x1xf32, #tpu.memory_space<vmem>>, %arg8: memref<256x128xbf16, #tpu.memory_space<vmem>>, %arg9: memref<256x1xf32, #tpu.memory_space<vmem>>, %arg10: memref<256x256xbf16, #tpu.memory_space<vmem>>, %arg11: memref<256x1xf32, #tpu.memory_space<vmem>>, %arg12: memref<128x256xbf16, #tpu.memory_space<vmem>>, %arg13: memref<128x1xf32, #tpu.memory_space<vmem>>, %arg14: memref<1x1x128x1xf32, #tpu.memory_space<vmem>>) attributes {dimension_semantics = [#tpu.dimension_semantics<parallel>, #tpu.dimension_semantics<parallel>, #tpu.dimension_semantics<arbitrary>], iteration_bounds = array<i64: 2, 1, 4>, scalar_prefetch = 0 : i64, scratch_operands = 0 : i64, tpu.core_type = #tpu.core_type<tc>, window_params = [{transform_indices = @transform_0, window_bounds = array<i64: 1, 1, 512>}, {pipeline_mode = #tpu.pipeline_mode<synchronous>, transform_indices = @transform_1, window_bounds = array<i64: 64, 1>}, {pipeline_mode = #tpu.pipeline_mode<synchronous>, transform_indices = @transform_2, window_bounds = array<i64: 64, 1>}, {pipeline_mode = #tpu.pipeline_mode<synchronous>, transform_indices = @transform_3, window_bounds = array<i64: 128, 64>}, {pipeline_mode = #tpu.pipeline_mode<synchronous>, transform_indices = @transform_4, window_bounds = array<i64: 128, 1>}, {pipeline_mode = #tpu.pipeline_mode<synchronous>, transform_indices = @transform_5, window_bounds = array<i64: 256, 128>}, {pipeline_mode = #tpu.pipeline_mode<synchronous>, transform_indices = @transform_6, window_bounds = array<i64: 256, 1>}, {pipeline_mode = #tpu.pipeline_mode<synchronous>, transform_indices = @transform_7, window_bounds = array<i64: 256, 256>}, {pipeline_mode = #tpu.pipeline_mode<synchronous>, transform_indices = @transform_8, window_bounds = array<i64: 256, 1>}, {pipeline_mode = #tpu.pipeline_mode<synchronous>, transform_indices = @transform_9, window_bounds = array<i64: 128, 256>}, {pipeline_mode = #tpu.pipeline_mode<synchronous>, transform_indices = @transform_10, window_bounds = array<i64: 128, 1>}, {transform_indices = @transform_11, window_bounds = array<i64: 1, 1, 128, 1>}]} {
    %c4_i32 = arith.constant 4 : i32
    %0 = arith.muli %arg1, %c4_i32 : i32
    %1 = arith.addi %0, %arg2 : i32
    %c0 = arith.constant 0 : index
    %c0_0 = arith.constant 0 : index
    %c0_1 = arith.constant 0 : index
    %2 = vector.load %arg3[%c0, %c0_0, %c0_1] : memref<1x1x512xf32, #tpu.memory_space<vmem>>, vector<1x1x512xf32>
    %3 = vector.shape_cast %2 : vector<1x1x512xf32> to vector<1x512xf32>
    %c0_2 = arith.constant 0 : index
    %c0_3 = arith.constant 0 : index
    %4 = vector.load %arg4[%c0_2, %c0_3] : memref<64x1xf32, #tpu.memory_space<vmem>>, vector<64x1xf32>
    %5 = vector.broadcast %4 : vector<64x1xf32> to vector<64x512xf32>
    %6 = vector.broadcast %3 : vector<1x512xf32> to vector<64x512xf32>
    %7 = arith.mulf %5, %6 : vector<64x512xf32>
    %c0_4 = arith.constant 0 : index
    %c0_5 = arith.constant 0 : index
    %8 = vector.load %arg5[%c0_4, %c0_5] : memref<64x1xf32, #tpu.memory_space<vmem>>, vector<64x1xf32>
    %9 = vector.broadcast %8 : vector<64x1xf32> to vector<64x512xf32>
    %10 = arith.addf %7, %9 : vector<64x512xf32>
    %cst = arith.constant 0.000000e+00 : f32
    %11 = vector.broadcast %cst : f32 to vector<64x512xf32>
    %12 = arith.maximumf %10, %11 : vector<64x512xf32>
    %c0_6 = arith.constant 0 : index
    %c0_7 = arith.constant 0 : index
    %13 = vector.load %arg6[%c0_6, %c0_7] : memref<128x64xbf16, #tpu.memory_space<vmem>>, vector<128x64xbf16>
    %14 = arith.truncf %12 : vector<64x512xf32> to vector<64x512xbf16>
    %cst_8 = arith.constant dense<0.000000e+00> : vector<128x512xf32>
    %15 = tpu.matmul %13, %14, %cst_8 {dimension_numbers = #tpu.dot_dimension_numbers<[1], [0], [0], [1], [0, 0, 1, 1], [], []>} : vector<128x64xbf16>, vector<64x512xbf16>, vector<128x512xf32> -> vector<128x512xf32>
    %c0_9 = arith.constant 0 : index
    %c0_10 = arith.constant 0 : index
    %16 = vector.load %arg7[%c0_9, %c0_10] : memref<128x1xf32, #tpu.memory_space<vmem>>, vector<128x1xf32>
    %17 = vector.broadcast %16 : vector<128x1xf32> to vector<128x512xf32>
    %18 = arith.addf %15, %17 : vector<128x512xf32>
    %cst_11 = arith.constant 0.000000e+00 : f32
    %19 = vector.broadcast %cst_11 : f32 to vector<128x512xf32>
    %20 = arith.maximumf %18, %19 : vector<128x512xf32>
    %c0_12 = arith.constant 0 : index
    %c0_13 = arith.constant 0 : index
    %21 = vector.load %arg8[%c0_12, %c0_13] : memref<256x128xbf16, #tpu.memory_space<vmem>>, vector<256x128xbf16>
    %22 = arith.truncf %20 : vector<128x512xf32> to vector<128x512xbf16>
    %cst_14 = arith.constant dense<0.000000e+00> : vector<256x512xf32>
    %23 = tpu.matmul %21, %22, %cst_14 {dimension_numbers = #tpu.dot_dimension_numbers<[1], [0], [0], [1], [0, 0, 1, 1], [], []>} : vector<256x128xbf16>, vector<128x512xbf16>, vector<256x512xf32> -> vector<256x512xf32>
    %c0_15 = arith.constant 0 : index
    %c0_16 = arith.constant 0 : index
    %24 = vector.load %arg9[%c0_15, %c0_16] : memref<256x1xf32, #tpu.memory_space<vmem>>, vector<256x1xf32>
    %25 = vector.broadcast %24 : vector<256x1xf32> to vector<256x512xf32>
    %26 = arith.addf %23, %25 : vector<256x512xf32>
    %cst_17 = arith.constant 0.000000e+00 : f32
    %27 = vector.broadcast %cst_17 : f32 to vector<256x512xf32>
    %28 = arith.maximumf %26, %27 : vector<256x512xf32>
    %c0_18 = arith.constant 0 : index
    %c0_19 = arith.constant 0 : index
    %29 = vector.load %arg10[%c0_18, %c0_19] : memref<256x256xbf16, #tpu.memory_space<vmem>>, vector<256x256xbf16>
    %30 = arith.truncf %28 : vector<256x512xf32> to vector<256x512xbf16>
    %cst_20 = arith.constant dense<0.000000e+00> : vector<256x512xf32>
    %31 = tpu.matmul %29, %30, %cst_20 {dimension_numbers = #tpu.dot_dimension_numbers<[1], [0], [0], [1], [0, 0, 1, 1], [], []>} : vector<256x256xbf16>, vector<256x512xbf16>, vector<256x512xf32> -> vector<256x512xf32>
    %c0_21 = arith.constant 0 : index
    %c0_22 = arith.constant 0 : index
    %32 = vector.load %arg11[%c0_21, %c0_22] : memref<256x1xf32, #tpu.memory_space<vmem>>, vector<256x1xf32>
    %33 = vector.broadcast %32 : vector<256x1xf32> to vector<256x512xf32>
    %34 = arith.addf %31, %33 : vector<256x512xf32>
    %cst_23 = arith.constant 0.000000e+00 : f32
    %35 = vector.broadcast %cst_23 : f32 to vector<256x512xf32>
    %36 = arith.maximumf %34, %35 : vector<256x512xf32>
    %c0_24 = arith.constant 0 : index
    %c0_25 = arith.constant 0 : index
    %37 = vector.load %arg12[%c0_24, %c0_25] : memref<128x256xbf16, #tpu.memory_space<vmem>>, vector<128x256xbf16>
    %38 = arith.truncf %36 : vector<256x512xf32> to vector<256x512xbf16>
    %cst_26 = arith.constant dense<0.000000e+00> : vector<128x512xf32>
    %39 = tpu.matmul %37, %38, %cst_26 {dimension_numbers = #tpu.dot_dimension_numbers<[1], [0], [0], [1], [0, 0, 1, 1], [], []>} : vector<128x256xbf16>, vector<256x512xbf16>, vector<128x512xf32> -> vector<128x512xf32>
    %c0_27 = arith.constant 0 : index
    %c0_28 = arith.constant 0 : index
    %40 = vector.load %arg13[%c0_27, %c0_28] : memref<128x1xf32, #tpu.memory_space<vmem>>, vector<128x1xf32>
    %41 = vector.broadcast %40 : vector<128x1xf32> to vector<128x512xf32>
    %42 = arith.addf %39, %41 : vector<128x512xf32>
    %c0_i32 = arith.constant 0 : i32
    %43 = arith.cmpi eq, %arg2, %c0_i32 : i32
    %44 = arith.extui %43 : i1 to i32
    %c0_i32_29 = arith.constant 0 : i32
    %45 = arith.cmpi ne, %44, %c0_i32_29 : i32
    scf.if %45 {
      %cst_32 = arith.constant 0xFF800000 : f32
      %54 = vector.broadcast %cst_32 : f32 to vector<1x1x128x1xf32>
      %c0_33 = arith.constant 0 : index
      %c0_34 = arith.constant 0 : index
      %c0_35 = arith.constant 0 : index
      %c0_36 = arith.constant 0 : index
      %55 = vector.load %arg14[%c0_33, %c0_34, %c0_35, %c0_36] : memref<1x1x128x1xf32, #tpu.memory_space<vmem>>, vector<1x1x128x1xf32>
      tpu.vector_store %arg14[%c0_33, %c0_34, %c0_35, %c0_36], %54 {strides = array<i32>} : memref<1x1x128x1xf32, #tpu.memory_space<vmem>>, vector<1x1x128x1xf32>,
    } else {
    }
    %c1_i32 = arith.constant 1 : i32
    %46 = arith.addi %1, %c1_i32 : i32
    %c512_i32 = arith.constant 512 : i32
    %47 = arith.muli %46, %c512_i32 : i32
    %c2000_i32 = arith.constant 2000 : i32
    %48 = arith.cmpi sgt, %47, %c2000_i32 : i32
    %true = arith.constant true
    %49 = arith.xori %48, %true : i1
    %50 = arith.extui %49 : i1 to i32
    %c0_i32_30 = arith.constant 0 : i32
    %51 = arith.cmpi ne, %50, %c0_i32_30 : i32
    scf.if %51 {
      %cst_32 = arith.constant dense<0xFF800000> : vector<128xf32>
      %54 = vector.multi_reduction <maximumf>, %42, %cst_32 [1] : vector<128x512xf32> to vector<128xf32>
      %55 = vector.shape_cast %54 : vector<128xf32> to vector<128x1xf32>
      %c0_33 = arith.constant 0 : index
      %c0_34 = arith.constant 0 : index
      %c0_35 = arith.constant 0 : index
      %c0_36 = arith.constant 0 : index
      %56 = vector.load %arg14[%c0_33, %c0_34, %c0_35, %c0_36] : memref<1x1x128x1xf32, #tpu.memory_space<vmem>>, vector<1x1x128x1xf32>
      %57 = vector.shape_cast %55 : vector<128x1xf32> to vector<1x1x128x1xf32>
      %58 = arith.maximumf %56, %57 : vector<1x1x128x1xf32>
      %c0_37 = arith.constant 0 : index
      %c0_38 = arith.constant 0 : index
      %c0_39 = arith.constant 0 : index
      %c0_40 = arith.constant 0 : index
      %59 = vector.load %arg14[%c0_37, %c0_38, %c0_39, %c0_40] : memref<1x1x128x1xf32, #tpu.memory_space<vmem>>, vector<1x1x128x1xf32>
      tpu.vector_store %arg14[%c0_37, %c0_38, %c0_39, %c0_40], %58 {strides = array<i32>} : memref<1x1x128x1xf32, #tpu.memory_space<vmem>>, vector<1x1x128x1xf32>,
    } else {
    }
    %52 = arith.extui %48 : i1 to i32
    %c0_i32_31 = arith.constant 0 : i32
    %53 = arith.cmpi ne, %52, %c0_i32_31 : i32
    scf.if %53 {
      %54 = tpu.iota {dimensions = array<i32: 1>} : vector<1x512xi32>
      %c512_i32_32 = arith.constant 512 : i32
      %55 = arith.muli %1, %c512_i32_32 : i32
      %56 = vector.broadcast %55 : i32 to vector<1x512xi32>
      %57 = arith.addi %56, %54 : vector<1x512xi32>
      %c2000_i32_33 = arith.constant 2000 : i32
      %58 = vector.broadcast %c2000_i32_33 : i32 to vector<1x512xi32>
      %59 = arith.cmpi slt, %57, %58 : vector<1x512xi32>
      %cst_34 = arith.constant 0xFF800000 : f32
      %60 = vector.shape_cast %59 : vector<1x512xi1> to vector<1x512xi1>
      %61 = vector.broadcast %60 : vector<1x512xi1> to vector<128x512xi1>
      %62 = vector.broadcast %cst_34 : f32 to vector<128x512xf32>
      %63 = arith.select %61, %42, %62 : vector<128x512xi1>, vector<128x512xf32>
      %cst_35 = arith.constant dense<0xFF800000> : vector<128xf32>
      %64 = vector.multi_reduction <maximumf>, %63, %cst_35 [1] : vector<128x512xf32> to vector<128xf32>
      %65 = vector.shape_cast %64 : vector<128xf32> to vector<128x1xf32>
      %c0_36 = arith.constant 0 : index
      %c0_37 = arith.constant 0 : index
      %c0_38 = arith.constant 0 : index
      %c0_39 = arith.constant 0 : index
      %66 = vector.load %arg14[%c0_36, %c0_37, %c0_38, %c0_39] : memref<1x1x128x1xf32, #tpu.memory_space<vmem>>, vector<1x1x128x1xf32>
      %67 = vector.shape_cast %65 : vector<128x1xf32> to vector<1x1x128x1xf32>
      %68 = arith.maximumf %66, %67 : vector<1x1x128x1xf32>
      %c0_40 = arith.constant 0 : index
      %c0_41 = arith.constant 0 : index
      %c0_42 = arith.constant 0 : index
      %c0_43 = arith.constant 0 : index
      %69 = vector.load %arg14[%c0_40, %c0_41, %c0_42, %c0_43] : memref<1x1x128x1xf32, #tpu.memory_space<vmem>>, vector<1x1x128x1xf32>
      tpu.vector_store %arg14[%c0_40, %c0_41, %c0_42, %c0_43], %68 {strides = array<i32>} : memref<1x1x128x1xf32, #tpu.memory_space<vmem>>, vector<1x1x128x1xf32>,
    } else {
    }
    return
  }
  func.func @transform_0(%arg0: i32, %arg1: i32, %arg2: i32) -> (i32, i32, i32) {
    %c4_i32 = arith.constant 4 : i32
    %0 = arith.muli %arg1, %c4_i32 : i32
    %1 = arith.addi %0, %arg2 : i32
    %c3_i32 = arith.constant 3 : i32
    %2 = arith.minsi %1, %c3_i32 : i32
    %c0_i32 = arith.constant 0 : i32
    %c0_i32_0 = arith.constant 0 : i32
    return %arg0, %c0_i32, %2 : i32, i32, i32
  }
  func.func @transform_1(%arg0: i32, %arg1: i32, %arg2: i32) -> (i32, i32) {
    %c0_i32 = arith.constant 0 : i32
    %c0_i32_0 = arith.constant 0 : i32
    %c0_i32_1 = arith.constant 0 : i32
    return %c0_i32, %c0_i32_0 : i32, i32
  }
  func.func @transform_2(%arg0: i32, %arg1: i32, %arg2: i32) -> (i32, i32) {
    %c0_i32 = arith.constant 0 : i32
    %c0_i32_0 = arith.constant 0 : i32
    %c0_i32_1 = arith.constant 0 : i32
    return %c0_i32, %c0_i32_0 : i32, i32
  }
  func.func @transform_3(%arg0: i32, %arg1: i32, %arg2: i32) -> (i32, i32) {
    %c0_i32 = arith.constant 0 : i32
    %c0_i32_0 = arith.constant 0 : i32
    %c0_i32_1 = arith.constant 0 : i32
    return %c0_i32, %c0_i32_0 : i32, i32
  }
  func.func @transform_4(%arg0: i32, %arg1: i32, %arg2: i32) -> (i32, i32) {
    %c0_i32 = arith.constant 0 : i32
    %c0_i32_0 = arith.constant 0 : i32
    %c0_i32_1 = arith.constant 0 : i32
    return %c0_i32, %c0_i32_0 : i32, i32
  }
  func.func @transform_5(%arg0: i32, %arg1: i32, %arg2: i32) -> (i32, i32) {
    %c0_i32 = arith.constant 0 : i32
    %c0_i32_0 = arith.constant 0 : i32
    %c0_i32_1 = arith.constant 0 : i32
    return %c0_i32, %c0_i32_0 : i32, i32
  }
  func.func @transform_6(%arg0: i32, %arg1: i32, %arg2: i32) -> (i32, i32) {
    %c0_i32 = arith.constant 0 : i32
    %c0_i32_0 = arith.constant 0 : i32
    %c0_i32_1 = arith.constant 0 : i32
    return %c0_i32, %c0_i32_0 : i32, i32
  }
  func.func @transform_7(%arg0: i32, %arg1: i32, %arg2: i32) -> (i32, i32) {
    %c0_i32 = arith.constant 0 : i32
    %c0_i32_0 = arith.constant 0 : i32
    %c0_i32_1 = arith.constant 0 : i32
    return %c0_i32, %c0_i32_0 : i32, i32
  }
  func.func @transform_8(%arg0: i32, %arg1: i32, %arg2: i32) -> (i32, i32) {
    %c0_i32 = arith.constant 0 : i32
    %c0_i32_0 = arith.constant 0 : i32
    %c0_i32_1 = arith.constant 0 : i32
    return %c0_i32, %c0_i32_0 : i32, i32
  }
  func.func @transform_9(%arg0: i32, %arg1: i32, %arg2: i32) -> (i32, i32) {
    %c0_i32 = arith.constant 0 : i32
    %c0_i32_0 = arith.constant 0 : i32
    %c0_i32_1 = arith.constant 0 : i32
    return %c0_i32, %c0_i32_0 : i32, i32
  }
  func.func @transform_10(%arg0: i32, %arg1: i32, %arg2: i32) -> (i32, i32) {
    %c0_i32 = arith.constant 0 : i32
    %c0_i32_0 = arith.constant 0 : i32
    %c0_i32_1 = arith.constant 0 : i32
    return %c0_i32, %c0_i32_0 : i32, i32
  }
  func.func @transform_11(%arg0: i32, %arg1: i32, %arg2: i32) -> (i32, i32, i32, i32) {
    %c0_i32 = arith.constant 0 : i32
    %c0_i32_0 = arith.constant 0 : i32
    %c0_i32_1 = arith.constant 0 : i32
    return %arg0, %arg1, %c0_i32, %c0_i32_0 : i32, i32, i32, i32
  }
}

</mosaic_0001>

<llo_original>
// kernel: encoder_conv1d_forward.1
$region0: #{encoder_conv1d_forward.1}
  #allocation0 [shape = 'u32[]', space=smem, size = 0x4, offset = 0x4, fixed_abs, tag = 'smem constant byte address 0x4 - core index']
  #allocation1 [shape = 'u32[144,128]{1,0:T(1,128)}', space=vmem, size = 0x12000, scoped, tag = 'internal scratch']
  %s0 = inlined_call_operand.vmem [shape: f32[2,1,2000], index: 0, kind: input, shape index: {}]
  %s1 = inlined_call_operand.vmem [shape: f32[64,1], index: 1, kind: input, shape index: {}]
  %s2 = inlined_call_operand.vmem [shape: f32[64,1], index: 2, kind: input, shape index: {}]
  %s3 = inlined_call_operand.vmem [shape: bf16[128,64], index: 3, kind: input, shape index: {}]
  %s4 = inlined_call_operand.vmem [shape: f32[128,1], index: 4, kind: input, shape index: {}]
  %s5 = inlined_call_operand.vmem [shape: bf16[256,128], index: 5, kind: input, shape index: {}]
  %s6 = inlined_call_operand.vmem [shape: f32[256,1], index: 6, kind: input, shape index: {}]
  %s7 = inlined_call_operand.vmem [shape: bf16[256,256], index: 7, kind: input, shape index: {}]
  %s8 = inlined_call_operand.vmem [shape: f32[256,1], index: 8, kind: input, shape index: {}]
  %s9 = inlined_call_operand.vmem [shape: bf16[128,256], index: 9, kind: input, shape index: {}]
  %s10 = inlined_call_operand.vmem [shape: f32[128,1], index: 10, kind: input, shape index: {}]
  %s11 = inlined_call_operand.vmem [shape: f32[2,1,128,1], index: 11, kind: output, shape index: {}]
  %s12 = sld [smem:[#allocation0]]
  $region89: #{encoder_conv1d_forward.1} parent=0
    _
  %s14 = ssub.s32 1, %s12
  %s15 = scalar_select 0, %s14, %s12
  loop: start=0, step=1, limit=10
  $region2: #{encoder_conv1d_forward.1} parent=0 // loop_pre_header
    _
  $region3: #{encoder_conv1d_forward.1} parent=0 // loop_header
    %s17 = sphi 0, %s21
    %p18 = scmp.ge.s32.totalorder %s17, 10
    %s24 = sphi 0, %s43
    %s25 = sphi 0, %s39
    %s26 = sphi 0, %s35
    %s27 = sphi 0, %s24
    %s28 = sphi 0, %s25
    %s29 = sphi 0, %s26
    %s30 = sphi 0, %s27
    %s31 = sphi 0, %s28
    %s32 = sphi 0, %s29
    %s56 = sphi 0, %s58
    %s59 = sphi 0, %s56
    %s60 = sphi 0, %s59
    %s76 = sphi 0, %s60
    %s80 = sphi 0, %s80
    %s82 = sphi 0, %s80
    %s83 = sphi 0, %s82
    %s97 = sphi 0, %s83
    %s101 = sphi 0, %s101
    %s103 = sphi 0, %s101
    %s104 = sphi 0, %s103
    %s118 = sphi 0, %s104
    %s122 = sphi 0, %s122
    %s124 = sphi 0, %s122
    %s125 = sphi 0, %s124
    %s139 = sphi 0, %s125
    %s143 = sphi 0, %s143
    %s145 = sphi 0, %s143
    %s146 = sphi 0, %s145
    %s160 = sphi 0, %s146
    %s164 = sphi 0, %s164
    %s166 = sphi 0, %s164
    %s167 = sphi 0, %s166
    %s181 = sphi 0, %s167
    %s185 = sphi 0, %s185
    %s187 = sphi 0, %s185
    %s188 = sphi 0, %s187
    %s202 = sphi 0, %s188
    %s206 = sphi 0, %s206
    %s208 = sphi 0, %s206
    %s209 = sphi 0, %s208
    %s223 = sphi 0, %s209
    %s227 = sphi 0, %s227
    %s229 = sphi 0, %s227
    %s230 = sphi 0, %s229
    %s244 = sphi 0, %s230
    %s248 = sphi 0, %s248
    %s250 = sphi 0, %s248
    %s251 = sphi 0, %s250
    %s265 = sphi 0, %s251
    %s269 = sphi 0, %s269
    %s271 = sphi 0, %s269
    %s272 = sphi 0, %s271
    %s286 = sphi 0, %s272
    %s294 = sphi 0, %s296
    %s297 = sphi 0, %s294
    %s298 = sphi 0, %s297
    %s314 = sphi 0, %s298
  $region4: #{encoder_conv1d_forward.1} parent=0 // loop_header_branch
    %20 = sbr.rel (%p18) target = $region8
  $region5: #{encoder_conv1d_forward.1} parent=0 // loop_body
    %s22 = ssub.s32 %s17, 1
    %s23 = ssub.s32 %s17, 2
    %s33 = sadd.s32 1, %s26
    %p34 = scmp.ge.s32.totalorder %s33, 4
    %s35 = scalar_select %p34, 0, %s33
    %s36 = sadd.s32 1, %s25
    %s37 = scalar_select %p34, %s36, %s25
    %p38 = scmp.ge.s32.totalorder %s37, 1
    %s39 = scalar_select %p38, 0, %s37
    %s40 = sadd.s32 1, %s24
    %s41 = scalar_select %p38, %s40, %s24
    %p42 = scmp.ge.s32.totalorder %s41, 2
    %s43 = scalar_select %p42, 0, %s41
    %s44 = smul.u32 %s25, 4
    %s45 = sadd.s32 %s44, %s26
    %p46 = scmp.lt.s32.totalorder %s45, 3
    %s47 = scalar_select %p46, %s45, 3
    %s48 = smul.u32 %s39, 4
    %s49 = sadd.s32 %s48, %s35
    %p50 = scmp.lt.s32.totalorder %s49, 3
    %s51 = scalar_select %p50, %s49, 3
    %s52 = ssub.s32 %s24, %s43
    %s53 = ssub.s32 %s47, %s51
    %s54 = sor.u32 %s52, %s53
    %p55 = scmp.eq.s32.totalorder %s54, 0
    %s57 = sadd.s32 %s56, 1
    %s58 = scalar_select %p55, %s56, %s57
    %p61 = pneg %p55
    %p62 = scmp.eq.s32.totalorder %s17, 7
    %p63 = por %p61, %p62
    %p64 = scmp.ne.s32.totalorder %s56, %s59
    %p65 = scmp.eq.s32.totalorder %s17, 0
    %p66 = por %p64, %p65
    %p67 = scmp.ne.s32.totalorder %s56, %s59
    %p68 = scmp.eq.s32.totalorder %s22, 7
    %p69 = por %p67, %p68
    %p70 = scmp.ne.s32.totalorder %s59, %s60
    %p71 = scmp.eq.s32.totalorder %s22, 0
    %p72 = por %p70, %p71
    %p73 = scmp.ne.s32.totalorder %s59, %s60
    %p74 = scmp.eq.s32.totalorder %s23, 7
    %p75 = por %p73, %p74
    %p77 = scmp.ne.s32.totalorder %s60, %s76
    %p78 = scmp.eq.s32.totalorder %s23, 0
    %p79 = por %p77, %p78
    %s81 = sadd.s32 %s80, 1
    %p84 = scmp.eq.s32.totalorder %s17, 7
    %p85 = scmp.ne.s32.totalorder %s80, %s82
    %p86 = scmp.eq.s32.totalorder %s17, 0
    %p87 = por %p85, %p86
    %p88 = scmp.ne.s32.totalorder %s80, %s82
    %p89 = scmp.eq.s32.totalorder %s22, 7
    %p90 = por %p88, %p89
    %p91 = scmp.ne.s32.totalorder %s82, %s83
    %p92 = scmp.eq.s32.totalorder %s22, 0
    %p93 = por %p91, %p92
    %p94 = scmp.ne.s32.totalorder %s82, %s83
    %p95 = scmp.eq.s32.totalorder %s23, 7
    %p96 = por %p94, %p95
    %p98 = scmp.ne.s32.totalorder %s83, %s97
    %p99 = scmp.eq.s32.totalorder %s23, 0
    %p100 = por %p98, %p99
    %s102 = sadd.s32 %s101, 1
    %p105 = scmp.eq.s32.totalorder %s17, 7
    %p106 = scmp.ne.s32.totalorder %s101, %s103
    %p107 = scmp.eq.s32.totalorder %s17, 0
    %p108 = por %p106, %p107
    %p109 = scmp.ne.s32.totalorder %s101, %s103
    %p110 = scmp.eq.s32.totalorder %s22, 7
    %p111 = por %p109, %p110
    %p112 = scmp.ne.s32.totalorder %s103, %s104
    %p113 = scmp.eq.s32.totalorder %s22, 0
    %p114 = por %p112, %p113
    %p115 = scmp.ne.s32.totalorder %s103, %s104
    %p116 = scmp.eq.s32.totalorder %s23, 7
    %p117 = por %p115, %p116
    %p119 = scmp.ne.s32.totalorder %s104, %s118
    %p120 = scmp.eq.s32.totalorder %s23, 0
    %p121 = por %p119, %p120
    %s123 = sadd.s32 %s122, 1
    %p126 = scmp.eq.s32.totalorder %s17, 7
    %p127 = scmp.ne.s32.totalorder %s122, %s124
    %p128 = scmp.eq.s32.totalorder %s17, 0
    %p129 = por %p127, %p128
    %p130 = scmp.ne.s32.totalorder %s122, %s124
    %p131 = scmp.eq.s32.totalorder %s22, 7
    %p132 = por %p130, %p131
    %p133 = scmp.ne.s32.totalorder %s124, %s125
    %p134 = scmp.eq.s32.totalorder %s22, 0
    %p135 = por %p133, %p134
    %p136 = scmp.ne.s32.totalorder %s124, %s125
    %p137 = scmp.eq.s32.totalorder %s23, 7
    %p138 = por %p136, %p137
    %p140 = scmp.ne.s32.totalorder %s125, %s139
    %p141 = scmp.eq.s32.totalorder %s23, 0
    %p142 = por %p140, %p141
    %s144 = sadd.s32 %s143, 1
    %p147 = scmp.eq.s32.totalorder %s17, 7
    %p148 = scmp.ne.s32.totalorder %s143, %s145
    %p149 = scmp.eq.s32.totalorder %s17, 0
    %p150 = por %p148, %p149
    %p151 = scmp.ne.s32.totalorder %s143, %s145
    %p152 = scmp.eq.s32.totalorder %s22, 7
    %p153 = por %p151, %p152
    %p154 = scmp.ne.s32.totalorder %s145, %s146
    %p155 = scmp.eq.s32.totalorder %s22, 0
    %p156 = por %p154, %p155
    %p157 = scmp.ne.s32.totalorder %s145, %s146
    %p158 = scmp.eq.s32.totalorder %s23, 7
    %p159 = por %p157, %p158
    %p161 = scmp.ne.s32.totalorder %s146, %s160
    %p162 = scmp.eq.s32.totalorder %s23, 0
    %p163 = por %p161, %p162
    %s165 = sadd.s32 %s164, 1
    %p168 = scmp.eq.s32.totalorder %s17, 7
    %p169 = scmp.ne.s32.totalorder %s164, %s166
    %p170 = scmp.eq.s32.totalorder %s17, 0
    %p171 = por %p169, %p170
    %p172 = scmp.ne.s32.totalorder %s164, %s166
    %p173 = scmp.eq.s32.totalorder %s22, 7
    %p174 = por %p172, %p173
    %p175 = scmp.ne.s32.totalorder %s166, %s167
    %p176 = scmp.eq.s32.totalorder %s22, 0
    %p177 = por %p175, %p176
    %p178 = scmp.ne.s32.totalorder %s166, %s167
    %p179 = scmp.eq.s32.totalorder %s23, 7
    %p180 = por %p178, %p179
    %p182 = scmp.ne.s32.totalorder %s167, %s181
    %p183 = scmp.eq.s32.totalorder %s23, 0
    %p184 = por %p182, %p183
    %s186 = sadd.s32 %s185, 1
    %p189 = scmp.eq.s32.totalorder %s17, 7
    %p190 = scmp.ne.s32.totalorder %s185, %s187
    %p191 = scmp.eq.s32.totalorder %s17, 0
    %p192 = por %p190, %p191
    %p193 = scmp.ne.s32.totalorder %s185, %s187
    %p194 = scmp.eq.s32.totalorder %s22, 7
    %p195 = por %p193, %p194
    %p196 = scmp.ne.s32.totalorder %s187, %s188
    %p197 = scmp.eq.s32.totalorder %s22, 0
    %p198 = por %p196, %p197
    %p199 = scmp.ne.s32.totalorder %s187, %s188
    %p200 = scmp.eq.s32.totalorder %s23, 7
    %p201 = por %p199, %p200
    %p203 = scmp.ne.s32.totalorder %s188, %s202
    %p204 = scmp.eq.s32.totalorder %s23, 0
    %p205 = por %p203, %p204
    %s207 = sadd.s32 %s206, 1
    %p210 = scmp.eq.s32.totalorder %s17, 7
    %p211 = scmp.ne.s32.totalorder %s206, %s208
    %p212 = scmp.eq.s32.totalorder %s17, 0
    %p213 = por %p211, %p212
    %p214 = scmp.ne.s32.totalorder %s206, %s208
    %p215 = scmp.eq.s32.totalorder %s22, 7
    %p216 = por %p214, %p215
    %p217 = scmp.ne.s32.totalorder %s208, %s209
    %p218 = scmp.eq.s32.totalorder %s22, 0
    %p219 = por %p217, %p218
    %p220 = scmp.ne.s32.totalorder %s208, %s209
    %p221 = scmp.eq.s32.totalorder %s23, 7
    %p222 = por %p220, %p221
    %p224 = scmp.ne.s32.totalorder %s209, %s223
    %p225 = scmp.eq.s32.totalorder %s23, 0
    %p226 = por %p224, %p225
    %s228 = sadd.s32 %s227, 1
    %p231 = scmp.eq.s32.totalorder %s17, 7
    %p232 = scmp.ne.s32.totalorder %s227, %s229
    %p233 = scmp.eq.s32.totalorder %s17, 0
    %p234 = por %p232, %p233
    %p235 = scmp.ne.s32.totalorder %s227, %s229
    %p236 = scmp.eq.s32.totalorder %s22, 7
    %p237 = por %p235, %p236
    %p238 = scmp.ne.s32.totalorder %s229, %s230
    %p239 = scmp.eq.s32.totalorder %s22, 0
    %p240 = por %p238, %p239
    %p241 = scmp.ne.s32.totalorder %s229, %s230
    %p242 = scmp.eq.s32.totalorder %s23, 7
    %p243 = por %p241, %p242
    %p245 = scmp.ne.s32.totalorder %s230, %s244
    %p246 = scmp.eq.s32.totalorder %s23, 0
    %p247 = por %p245, %p246
    %s249 = sadd.s32 %s248, 1
    %p252 = scmp.eq.s32.totalorder %s17, 7
    %p253 = scmp.ne.s32.totalorder %s248, %s250
    %p254 = scmp.eq.s32.totalorder %s17, 0
    %p255 = por %p253, %p254
    %p256 = scmp.ne.s32.totalorder %s248, %s250
    %p257 = scmp.eq.s32.totalorder %s22, 7
    %p258 = por %p256, %p257
    %p259 = scmp.ne.s32.totalorder %s250, %s251
    %p260 = scmp.eq.s32.totalorder %s22, 0
    %p261 = por %p259, %p260
    %p262 = scmp.ne.s32.totalorder %s250, %s251
    %p263 = scmp.eq.s32.totalorder %s23, 7
    %p264 = por %p262, %p263
    %p266 = scmp.ne.s32.totalorder %s251, %s265
    %p267 = scmp.eq.s32.totalorder %s23, 0
    %p268 = por %p266, %p267
    %s270 = sadd.s32 %s269, 1
    %p273 = scmp.eq.s32.totalorder %s17, 7
    %p274 = scmp.ne.s32.totalorder %s269, %s271
    %p275 = scmp.eq.s32.totalorder %s17, 0
    %p276 = por %p274, %p275
    %p277 = scmp.ne.s32.totalorder %s269, %s271
    %p278 = scmp.eq.s32.totalorder %s22, 7
    %p279 = por %p277, %p278
    %p280 = scmp.ne.s32.totalorder %s271, %s272
    %p281 = scmp.eq.s32.totalorder %s22, 0
    %p282 = por %p280, %p281
    %p283 = scmp.ne.s32.totalorder %s271, %s272
    %p284 = scmp.eq.s32.totalorder %s23, 7
    %p285 = por %p283, %p284
    %p287 = scmp.ne.s32.totalorder %s272, %s286
    %p288 = scmp.eq.s32.totalorder %s23, 0
    %p289 = por %p287, %p288
    %s290 = ssub.s32 %s24, %s43
    %s291 = ssub.s32 %s25, %s39
    %s292 = sor.u32 %s290, %s291
    %p293 = scmp.eq.s32.totalorder %s292, 0
    %s295 = sadd.s32 %s294, 1
    %s296 = scalar_select %p293, %s294, %s295
    %p299 = pneg %p293
    %p300 = scmp.eq.s32.totalorder %s17, 7
    %p301 = por %p299, %p300
    %p302 = scmp.ne.s32.totalorder %s294, %s297
    %p303 = scmp.eq.s32.totalorder %s17, 0
    %p304 = por %p302, %p303
    %p305 = scmp.ne.s32.totalorder %s294, %s297
    %p306 = scmp.eq.s32.totalorder %s22, 7
    %p307 = por %p305, %p306
    %p308 = scmp.ne.s32.totalorder %s297, %s298
    %p309 = scmp.eq.s32.totalorder %s22, 0
    %p310 = por %p308, %p309
    %p311 = scmp.ne.s32.totalorder %s297, %s298
    %p312 = scmp.eq.s32.totalorder %s23, 7
    %p313 = por %p311, %p312
    %p315 = scmp.ne.s32.totalorder %s298, %s314
    %p316 = scmp.eq.s32.totalorder %s23, 0
    %p317 = por %p315, %p316
    %p318 = scmp.le.s32.totalorder 1, %s17
    %p319 = scmp.lt.s32.totalorder %s17, 9
    %p320 = pnand %p318, %p319
    %p321 = pneg %p320
    // Predicated region
    $region9: #{encoder_conv1d_forward.1} parent=5 // pred_check
      _
    $region10: #{encoder_conv1d_forward.1} parent=5 // pred_check_branch
      %323 = sbr.rel (%p320) target = $region12
    $region11: #{encoder_conv1d_forward.1} parent=5 // pred_region
      %s324 = ssub.s32 %s17, 1
      // Predicated region
      $region13: #{encoder_conv1d_forward.1} parent=11 // pred_check
        %p325 = pneg %p93
      $region14: #{encoder_conv1d_forward.1} parent=11 // pred_check_branch
        %327 = sbr.rel (%p325) target = $region16
      $region15: #{encoder_conv1d_forward.1} parent=11 // pred_region
        _
      $region16: #{encoder_conv1d_forward.1} parent=11 // pred_fallthru
        _
      // Predicated region
      $region17: #{encoder_conv1d_forward.1} parent=11 // pred_check
        %p328 = pneg %p114
      $region18: #{encoder_conv1d_forward.1} parent=11 // pred_check_branch
        %330 = sbr.rel (%p328) target = $region20
      $region19: #{encoder_conv1d_forward.1} parent=11 // pred_region
        _
      $region20: #{encoder_conv1d_forward.1} parent=11 // pred_fallthru
        _
      // Predicated region
      $region21: #{encoder_conv1d_forward.1} parent=11 // pred_check
        %p331 = pneg %p135
      $region22: #{encoder_conv1d_forward.1} parent=11 // pred_check_branch
        %333 = sbr.rel (%p331) target = $region24
      $region23: #{encoder_conv1d_forward.1} parent=11 // pred_region
        _
      $region24: #{encoder_conv1d_forward.1} parent=11 // pred_fallthru
        _
      // Predicated region
      $region25: #{encoder_conv1d_forward.1} parent=11 // pred_check
        %p334 = pneg %p156
      $region26: #{encoder_conv1d_forward.1} parent=11 // pred_check_branch
        %336 = sbr.rel (%p334) target = $region28
      $region27: #{encoder_conv1d_forward.1} parent=11 // pred_region
        _
      $region28: #{encoder_conv1d_forward.1} parent=11 // pred_fallthru
        _
      // Predicated region
      $region29: #{encoder_conv1d_forward.1} parent=11 // pred_check
        %p337 = pneg %p177
      $region30: #{encoder_conv1d_forward.1} parent=11 // pred_check_branch
        %339 = sbr.rel (%p337) target = $region32
      $region31: #{encoder_conv1d_forward.1} parent=11 // pred_region
        _
      $region32: #{encoder_conv1d_forward.1} parent=11 // pred_fallthru
        _
      // Predicated region
      $region33: #{encoder_conv1d_forward.1} parent=11 // pred_check
        %p340 = pneg %p198
      $region34: #{encoder_conv1d_forward.1} parent=11 // pred_check_branch
        %342 = sbr.rel (%p340) target = $region36
      $region35: #{encoder_conv1d_forward.1} parent=11 // pred_region
        _
      $region36: #{encoder_conv1d_forward.1} parent=11 // pred_fallthru
        _
      // Predicated region
      $region37: #{encoder_conv1d_forward.1} parent=11 // pred_check
        %p343 = pneg %p219
      $region38: #{encoder_conv1d_forward.1} parent=11 // pred_check_branch
        %345 = sbr.rel (%p343) target = $region40
      $region39: #{encoder_conv1d_forward.1} parent=11 // pred_region
        _
      $region40: #{encoder_conv1d_forward.1} parent=11 // pred_fallthru
        _
      // Predicated region
      $region41: #{encoder_conv1d_forward.1} parent=11 // pred_check
        %p346 = pneg %p240
      $region42: #{encoder_conv1d_forward.1} parent=11 // pred_check_branch
        %348 = sbr.rel (%p346) target = $region44
      $region43: #{encoder_conv1d_forward.1} parent=11 // pred_region
        _
      $region44: #{encoder_conv1d_forward.1} parent=11 // pred_fallthru
        _
      // Predicated region
      $region45: #{encoder_conv1d_forward.1} parent=11 // pred_check
        %p349 = pneg %p261
      $region46: #{encoder_conv1d_forward.1} parent=11 // pred_check_branch
        %351 = sbr.rel (%p349) target = $region48
      $region47: #{encoder_conv1d_forward.1} parent=11 // pred_region
        _
      $region48: #{encoder_conv1d_forward.1} parent=11 // pred_fallthru
        _
      // Predicated region
      $region49: #{encoder_conv1d_forward.1} parent=11 // pred_check
        %p352 = pneg %p282
      $region50: #{encoder_conv1d_forward.1} parent=11 // pred_check_branch
        %354 = sbr.rel (%p352) target = $region52
      $region51: #{encoder_conv1d_forward.1} parent=11 // pred_region
        _
      $region52: #{encoder_conv1d_forward.1} parent=11 // pred_fallthru
        _
    $region12: #{encoder_conv1d_forward.1} parent=5 // pred_fallthru
      _
    %p355 = scmp.lt.s32.totalorder %s17, 8
    // Predicated region
    $region53: #{encoder_conv1d_forward.1} parent=5 // pred_check
      %p356 = pneg %p355
    $region54: #{encoder_conv1d_forward.1} parent=5 // pred_check_branch
      %358 = sbr.rel (%p356) target = $region56
    $region55: #{encoder_conv1d_forward.1} parent=5 // pred_region
      // Predicated region
      $region57: #{encoder_conv1d_forward.1} parent=55 // pred_check
        %p359 = pneg %p66
      $region58: #{encoder_conv1d_forward.1} parent=55 // pred_check_branch
        %361 = sbr.rel (%p359) target = $region60
      $region59: #{encoder_conv1d_forward.1} parent=55 // pred_region
        %s362 = smul.u32 %s25, 4
        %s363 = sadd.s32 %s362, %s26
        %p364 = scmp.lt.s32.totalorder %s363, 3
        %s365 = scalar_select %p364, %s363, 3
        %s366 = smul.u32 4, %s365
        %p367 = scmp.lt.s32.totalorder %s24, 1
        %s368 = scalar_select %p367, %s24, 1
        %p369 = scmp.lt.s32.totalorder %s366, 15
        %s370 = scalar_select %p369, %s366, 15
        %s371 = smul.addr %s368, 16
        %s372 = sadd.s32 %s370, %s371
        %s373 = scalar_lea.vmem %s0, %s372
        %s374 = smul.u32 %s25, 4
        %s375 = sadd.s32 %s374, %s26
        %p376 = scmp.lt.s32.totalorder %s375, 3
        %s377 = scalar_select %p376, %s375, 3
        %s378 = smul.u32 4, %s377
      $region60: #{encoder_conv1d_forward.1} parent=55 // pred_fallthru
        _
    $region56: #{encoder_conv1d_forward.1} parent=5 // pred_fallthru
      _
    %p379 = scmp.le.s32.totalorder 1, %s17
    %p380 = scmp.lt.s32.totalorder %s17, 9
    %p381 = pnand %p379, %p380
    %p382 = pneg %p381
    // Predicated region
    $region61: #{encoder_conv1d_forward.1} parent=5 // pred_check
      _
    $region62: #{encoder_conv1d_forward.1} parent=5 // pred_check_branch
      %384 = sbr.rel (%p381) target = $region64
    $region63: #{encoder_conv1d_forward.1} parent=5 // pred_region
      %s385 = ssub.s32 %s17, 1
      %s386 = smul.u32 %s28, 4
      %s387 = sadd.s32 %s386, %s29
      %p388 = scmp.lt.s32.totalorder %s387, 3
      %s389 = scalar_select %p388, %s387, 3
      %s390 = smul.u32 4, %s389
      %p391 = scmp.lt.s32.totalorder %s27, 1
      %s392 = scalar_select %p391, %s27, 1
      %p393 = scmp.lt.s32.totalorder %s390, 15
      %s394 = scalar_select %p393, %s390, 15
      %s395 = smul.addr %s392, 16
      %s396 = sadd.s32 %s394, %s395
      %s397 = scalar_lea.vmem %s0, %s396
      %p398 = pneg %p72
      %p399 = pneg %p69
      %p400 = pneg %p93
      %p401 = pneg %p90
      %p402 = pneg %p114
      %p403 = pneg %p111
      %p404 = pneg %p135
      %p405 = pneg %p132
      %p406 = pneg %p156
      %p407 = pneg %p153
      %p408 = pneg %p177
      %p409 = pneg %p174
      %p410 = pneg %p198
      %p411 = pneg %p195
      %p412 = pneg %p219
      %p413 = pneg %p216
      %p414 = pneg %p240
      %p415 = pneg %p237
      %p416 = pneg %p261
      %p417 = pneg %p258
      %p418 = pneg %p282
      %p419 = pneg %p279
      %p420 = pneg %p310
      %p421 = pneg %p307
      %p422 = scmp.lt.s32.totalorder %s27, 1
      %s423 = scalar_select %p422, %s27, 1
      %p424 = scmp.lt.s32.totalorder %s28, 0
      %s425 = scalar_select %p424, %s28, 0
      %s426 = smul.addr %s425, 16
      %s427 = smul.addr %s423, 16
      %s428 = sadd.s32 %s426, %s427
      %s429 = smul.addr %s428, 8
      %s430 = scalar_lea.vmem %s11, %s429
      %s431 = smul.u32 %s28, 4
      %s432 = sadd.s32 %s431, %s29
      %p433 = scmp.lt.s32.totalorder %s432, 3
      %s434 = scalar_select %p433, %s432, 3
      %s435 = smul.u32 4, %s434
      %p436 = scmp.lt.s32.totalorder %s27, 1
      %s437 = scalar_select %p436, %s27, 1
      %p438 = scmp.lt.s32.totalorder %s435, 15
      %s439 = scalar_select %p438, %s435, 15
      %s440 = smul.addr %s437, 16
      %s441 = sadd.s32 %s439, %s440
      %s442 = scalar_lea.vmem %s0, %s441
      %s443 = smul.u32 %s28, 4
      %s444 = sadd.s32 %s443, %s29
      %p445 = scmp.lt.s32.totalorder %s444, 3
      %s446 = scalar_select %p445, %s444, 3
      %s447 = smul.u32 4, %s446
      %p448 = scmp.lt.s32.totalorder %s27, 1
      %s449 = scalar_select %p448, %s27, 1
      %p450 = scmp.lt.s32.totalorder %s28, 0
      %s451 = scalar_select %p450, %s28, 0
      %s452 = smul.addr %s451, 16
      %s453 = smul.addr %s449, 16
      %s454 = sadd.s32 %s452, %s453
      %s455 = smul.addr %s454, 8
      %s456 = scalar_lea.vmem %s11, %s455
      %s458 = smul.u32 %s28, 4
      %s459 = sadd.s32 %s458, %s29
      %v460 = vld [vmem:[%s442] sm:$0xf]
      %v461 = vld [vmem:[%s1] sm:$0xff]
      %v462 = vld [vmem:[%s1 + $0x8] sm:$0xff]
      %v463 = vld [vmem:[%s1 + $0x10] sm:$0xff]
      %v464 = vld [vmem:[%s1 + $0x18] sm:$0xff]
      %v465 = vld [vmem:[%s1 + $0x20] sm:$0xff]
      %v466 = vld [vmem:[%s1 + $0x28] sm:$0xff]
      %v467 = vld [vmem:[%s1 + $0x30] sm:$0xff]
      %v468 = vld [vmem:[%s1 + $0x38] sm:$0xff]
      %470 = vset.pattern.permute.xlu0 0
      %471 = vperm.xlu0 %470, %v461
      %v472 = vpop.permute.xlu0 %471
      %475 = vset.pattern.permute.xlu0 0
      %476 = vperm.xlu0 %475, %v462
      %v477 = vpop.permute.xlu0 %476
      %480 = vset.pattern.permute.xlu0 0
      %481 = vperm.xlu0 %480, %v463
      %v482 = vpop.permute.xlu0 %481
      %485 = vset.pattern.permute.xlu0 0
      %486 = vperm.xlu0 %485, %v464
      %v487 = vpop.permute.xlu0 %486
      %490 = vset.pattern.permute.xlu0 0
      %491 = vperm.xlu0 %490, %v465
      %v492 = vpop.permute.xlu0 %491
      %495 = vset.pattern.permute.xlu0 0
      %496 = vperm.xlu0 %495, %v466
      %v497 = vpop.permute.xlu0 %496
      %500 = vset.pattern.permute.xlu0 0
      %501 = vperm.xlu0 %500, %v467
      %v502 = vpop.permute.xlu0 %501
      %505 = vset.pattern.permute.xlu0 0
      %506 = vperm.xlu0 %505, %v468
      %v507 = vpop.permute.xlu0 %506
      %v510 = vlaneseq
      %v511 = vshrl.u32 %v510, 7
      %v512 = vsub.s32 0, %v511
      %v513 = vrot.slane %v460, %v512
      %v514 = vlaneseq
      %v515 = vshrl.u32 %v514, 7
      %v516 = vsub.s32 1, %v515
      %v517 = vrot.slane %v460, %v516
      %v518 = vlaneseq
      %v519 = vshrl.u32 %v518, 7
      %v520 = vsub.s32 2, %v519
      %v521 = vrot.slane %v460, %v520
      %v522 = vlaneseq
      %v523 = vshrl.u32 %v522, 7
      %v524 = vsub.s32 3, %v523
      %v525 = vrot.slane %v460, %v524
      %v530 = vmul.f32 %v472, %v513
      %v531 = vmul.f32 %v472, %v517
      %v532 = vmul.f32 %v472, %v521
      %v533 = vmul.f32 %v472, %v525
      %v534 = vmul.f32 %v477, %v513
      %v535 = vmul.f32 %v477, %v517
      %v536 = vmul.f32 %v477, %v521
      %v537 = vmul.f32 %v477, %v525
      %v538 = vmul.f32 %v482, %v513
      %v539 = vmul.f32 %v482, %v517
      %v540 = vmul.f32 %v482, %v521
      %v541 = vmul.f32 %v482, %v525
      %v542 = vmul.f32 %v487, %v513
      %v543 = vmul.f32 %v487, %v517
      %v544 = vmul.f32 %v487, %v521
      %v545 = vmul.f32 %v487, %v525
      %v546 = vmul.f32 %v492, %v513
      %v547 = vmul.f32 %v492, %v517
      %v548 = vmul.f32 %v492, %v521
      %v549 = vmul.f32 %v492, %v525
      %v550 = vmul.f32 %v497, %v513
      %v551 = vmul.f32 %v497, %v517
      %v552 = vmul.f32 %v497, %v521
      %v553 = vmul.f32 %v497, %v525
      %v554 = vmul.f32 %v502, %v513
      %v555 = vmul.f32 %v502, %v517
      %v556 = vmul.f32 %v502, %v521
      %v557 = vmul.f32 %v502, %v525
      %v558 = vmul.f32 %v507, %v513
      %v559 = vmul.f32 %v507, %v517
      %v560 = vmul.f32 %v507, %v521
      %v561 = vmul.f32 %v507, %v525
      %v562 = vld [vmem:[%s2] sm:$0xff]
      %v563 = vld [vmem:[%s2 + $0x8] sm:$0xff]
      %v564 = vld [vmem:[%s2 + $0x10] sm:$0xff]
      %v565 = vld [vmem:[%s2 + $0x18] sm:$0xff]
      %v566 = vld [vmem:[%s2 + $0x20] sm:$0xff]
      %v567 = vld [vmem:[%s2 + $0x28] sm:$0xff]
      %v568 = vld [vmem:[%s2 + $0x30] sm:$0xff]
      %v569 = vld [vmem:[%s2 + $0x38] sm:$0xff]
      %571 = vset.pattern.permute.xlu0 0
      %572 = vperm.xlu0 %571, %v562
      %v573 = vpop.permute.xlu0 %572
      %576 = vset.pattern.permute.xlu0 0
      %577 = vperm.xlu0 %576, %v563
      %v578 = vpop.permute.xlu0 %577
      %581 = vset.pattern.permute.xlu0 0
      %582 = vperm.xlu0 %581, %v564
      %v583 = vpop.permute.xlu0 %582
      %586 = vset.pattern.permute.xlu0 0
      %587 = vperm.xlu0 %586, %v565
      %v588 = vpop.permute.xlu0 %587
      %591 = vset.pattern.permute.xlu0 0
      %592 = vperm.xlu0 %591, %v566
      %v593 = vpop.permute.xlu0 %592
      %596 = vset.pattern.permute.xlu0 0
      %597 = vperm.xlu0 %596, %v567
      %v598 = vpop.permute.xlu0 %597
      %601 = vset.pattern.permute.xlu0 0
      %602 = vperm.xlu0 %601, %v568
      %v603 = vpop.permute.xlu0 %602
      %606 = vset.pattern.permute.xlu0 0
      %607 = vperm.xlu0 %606, %v569
      %v608 = vpop.permute.xlu0 %607
      %v610 = vadd.f32 %v530, %v573
      %v611 = vadd.f32 %v531, %v573
      %v612 = vadd.f32 %v532, %v573
      %v613 = vadd.f32 %v533, %v573
      %v614 = vadd.f32 %v534, %v578
      %v615 = vadd.f32 %v535, %v578
      %v616 = vadd.f32 %v536, %v578
      %v617 = vadd.f32 %v537, %v578
      %v618 = vadd.f32 %v538, %v583
      %v619 = vadd.f32 %v539, %v583
      %v620 = vadd.f32 %v540, %v583
      %v621 = vadd.f32 %v541, %v583
      %v622 = vadd.f32 %v542, %v588
      %v623 = vadd.f32 %v543, %v588
      %v624 = vadd.f32 %v544, %v588
      %v625 = vadd.f32 %v545, %v588
      %v626 = vadd.f32 %v546, %v593
      %v627 = vadd.f32 %v547, %v593
      %v628 = vadd.f32 %v548, %v593
      %v629 = vadd.f32 %v549, %v593
      %v630 = vadd.f32 %v550, %v598
      %v631 = vadd.f32 %v551, %v598
      %v632 = vadd.f32 %v552, %v598
      %v633 = vadd.f32 %v553, %v598
      %v634 = vadd.f32 %v554, %v603
      %v635 = vadd.f32 %v555, %v603
      %v636 = vadd.f32 %v556, %v603
      %v637 = vadd.f32 %v557, %v603
      %v638 = vadd.f32 %v558, %v608
      %v639 = vadd.f32 %v559, %v608
      %v640 = vadd.f32 %v560, %v608
      %v641 = vadd.f32 %v561, %v608
      %v642 = vmax.f32 %v610, 0.0
      %v643 = vmax.f32 %v611, 0.0
      %v644 = vmax.f32 %v612, 0.0
      %v645 = vmax.f32 %v613, 0.0
      %v646 = vmax.f32 %v614, 0.0
      %v647 = vmax.f32 %v615, 0.0
      %v648 = vmax.f32 %v616, 0.0
      %v649 = vmax.f32 %v617, 0.0
      %v650 = vmax.f32 %v618, 0.0
      %v651 = vmax.f32 %v619, 0.0
      %v652 = vmax.f32 %v620, 0.0
      %v653 = vmax.f32 %v621, 0.0
      %v654 = vmax.f32 %v622, 0.0
      %v655 = vmax.f32 %v623, 0.0
      %v656 = vmax.f32 %v624, 0.0
      %v657 = vmax.f32 %v625, 0.0
      %v658 = vmax.f32 %v626, 0.0
      %v659 = vmax.f32 %v627, 0.0
      %v660 = vmax.f32 %v628, 0.0
      %v661 = vmax.f32 %v629, 0.0
      %v662 = vmax.f32 %v630, 0.0
      %v663 = vmax.f32 %v631, 0.0
      %v664 = vmax.f32 %v632, 0.0
      %v665 = vmax.f32 %v633, 0.0
      %v666 = vmax.f32 %v634, 0.0
      %v667 = vmax.f32 %v635, 0.0
      %v668 = vmax.f32 %v636, 0.0
      %v669 = vmax.f32 %v637, 0.0
      %v670 = vmax.f32 %v638, 0.0
      %v671 = vmax.f32 %v639, 0.0
      %v672 = vmax.f32 %v640, 0.0
      %v673 = vmax.f32 %v641, 0.0
      %v674 = vld [vmem:[%s3] sm:$0xf]
      %v675 = vld [vmem:[%s3 + $0x4] sm:$0xf]
      %v676 = vld [vmem:[%s3 + $0x8] sm:$0xf]
      %v677 = vld [vmem:[%s3 + $0xc] sm:$0xf]
      %v678 = vld [vmem:[%s3 + $0x10] sm:$0xf]
      %v679 = vld [vmem:[%s3 + $0x14] sm:$0xf]
      %v680 = vld [vmem:[%s3 + $0x18] sm:$0xf]
      %v681 = vld [vmem:[%s3 + $0x1c] sm:$0xf]
      %v682 = vld [vmem:[%s3 + $0x20] sm:$0xf]
      %v683 = vld [vmem:[%s3 + $0x24] sm:$0xf]
      %v684 = vld [vmem:[%s3 + $0x28] sm:$0xf]
      %v685 = vld [vmem:[%s3 + $0x2c] sm:$0xf]
      %v686 = vld [vmem:[%s3 + $0x30] sm:$0xf]
      %v687 = vld [vmem:[%s3 + $0x34] sm:$0xf]
      %v688 = vld [vmem:[%s3 + $0x38] sm:$0xf]
      %v689 = vld [vmem:[%s3 + $0x3c] sm:$0xf]
      %v690 = vpack.c.bf16 %v646, %v642
      %v691 = vpack.c.bf16 %v647, %v643
      %v692 = vpack.c.bf16 %v648, %v644
      %v693 = vpack.c.bf16 %v649, %v645
      %v694 = vpack.c.bf16 %v654, %v650
      %v695 = vpack.c.bf16 %v655, %v651
      %v696 = vpack.c.bf16 %v656, %v652
      %v697 = vpack.c.bf16 %v657, %v653
      %v698 = vpack.c.bf16 %v662, %v658
      %v699 = vpack.c.bf16 %v663, %v659
      %v700 = vpack.c.bf16 %v664, %v660
      %v701 = vpack.c.bf16 %v665, %v661
      %v702 = vpack.c.bf16 %v670, %v666
      %v703 = vpack.c.bf16 %v671, %v667
      %v704 = vpack.c.bf16 %v672, %v668
      %v705 = vpack.c.bf16 %v673, %v669
      %v706 = vld [vmem:[%s4] sm:$0xff]
      %v707 = vld [vmem:[%s4 + $0x8] sm:$0xff]
      %v708 = vld [vmem:[%s4 + $0x10] sm:$0xff]
      %v709 = vld [vmem:[%s4 + $0x18] sm:$0xff]
      %v710 = vld [vmem:[%s4 + $0x20] sm:$0xff]
      %v711 = vld [vmem:[%s4 + $0x28] sm:$0xff]
      %v712 = vld [vmem:[%s4 + $0x30] sm:$0xff]
      %v713 = vld [vmem:[%s4 + $0x38] sm:$0xff]
      %v714 = vld [vmem:[%s4 + $0x40] sm:$0xff]
      %v715 = vld [vmem:[%s4 + $0x48] sm:$0xff]
      %v716 = vld [vmem:[%s4 + $0x50] sm:$0xff]
      %v717 = vld [vmem:[%s4 + $0x58] sm:$0xff]
      %v718 = vld [vmem:[%s4 + $0x60] sm:$0xff]
      %v719 = vld [vmem:[%s4 + $0x68] sm:$0xff]
      %v720 = vld [vmem:[%s4 + $0x70] sm:$0xff]
      %v721 = vld [vmem:[%s4 + $0x78] sm:$0xff]
      %723 = vset.pattern.permute.xlu0 0
      %724 = vperm.xlu0 %723, %v706
      %v725 = vpop.permute.xlu0 %724
      %728 = vset.pattern.permute.xlu0 0
      %729 = vperm.xlu0 %728, %v707
      %v730 = vpop.permute.xlu0 %729
      %733 = vset.pattern.permute.xlu0 0
      %734 = vperm.xlu0 %733, %v708
      %v735 = vpop.permute.xlu0 %734
      %738 = vset.pattern.permute.xlu0 0
      %739 = vperm.xlu0 %738, %v709
      %v740 = vpop.permute.xlu0 %739
      %743 = vset.pattern.permute.xlu0 0
      %744 = vperm.xlu0 %743, %v710
      %v745 = vpop.permute.xlu0 %744
      %748 = vset.pattern.permute.xlu0 0
      %749 = vperm.xlu0 %748, %v711
      %v750 = vpop.permute.xlu0 %749
      %753 = vset.pattern.permute.xlu0 0
      %754 = vperm.xlu0 %753, %v712
      %v755 = vpop.permute.xlu0 %754
      %758 = vset.pattern.permute.xlu0 0
      %759 = vperm.xlu0 %758, %v713
      %v760 = vpop.permute.xlu0 %759
      %763 = vset.pattern.permute.xlu0 0
      %764 = vperm.xlu0 %763, %v714
      %v765 = vpop.permute.xlu0 %764
      %768 = vset.pattern.permute.xlu0 0
      %769 = vperm.xlu0 %768, %v715
      %v770 = vpop.permute.xlu0 %769
      %773 = vset.pattern.permute.xlu0 0
      %774 = vperm.xlu0 %773, %v716
      %v775 = vpop.permute.xlu0 %774
      %778 = vset.pattern.permute.xlu0 0
      %779 = vperm.xlu0 %778, %v717
      %v780 = vpop.permute.xlu0 %779
      %783 = vset.pattern.permute.xlu0 0
      %784 = vperm.xlu0 %783, %v718
      %v785 = vpop.permute.xlu0 %784
      %788 = vset.pattern.permute.xlu0 0
      %789 = vperm.xlu0 %788, %v719
      %v790 = vpop.permute.xlu0 %789
      %793 = vset.pattern.permute.xlu0 0
      %794 = vperm.xlu0 %793, %v720
      %v795 = vpop.permute.xlu0 %794
      %798 = vset.pattern.permute.xlu0 0
      %799 = vperm.xlu0 %798, %v721
      %v800 = vpop.permute.xlu0 %799
      %v818 = vunpack.c.l.b16 %v674
      %v819 = vunpack.c.l.b16 %v675
      %v820 = vunpack.c.l.b16 %v676
      %v821 = vunpack.c.l.b16 %v677
      %v822 = vunpack.c.l.b16 %v678
      %v823 = vunpack.c.l.b16 %v679
      %v824 = vunpack.c.l.b16 %v680
      %v825 = vunpack.c.l.b16 %v681
      %v826 = vunpack.c.l.b16 %v682
      %v827 = vunpack.c.l.b16 %v683
      %v828 = vunpack.c.l.b16 %v684
      %v829 = vunpack.c.l.b16 %v685
      %v830 = vunpack.c.l.b16 %v686
      %v831 = vunpack.c.l.b16 %v687
      %v832 = vunpack.c.l.b16 %v688
      %v833 = vunpack.c.l.b16 %v689
      %v834 = vpack.c.b16 %v819, %v818
      %v835 = vpack.c.b16 %v821, %v820
      %v836 = vpack.c.b16 %v823, %v822
      %v837 = vpack.c.b16 %v825, %v824
      %v838 = vpack.c.b16 %v827, %v826
      %v839 = vpack.c.b16 %v829, %v828
      %v840 = vpack.c.b16 %v831, %v830
      %v841 = vpack.c.b16 %v833, %v832
      %vm842 = vcmask 523264
      %v844 = vsel %vm842, %v834, 0
      %v847 = vsel %vm842, %v835, 0
      %v850 = vsel %vm842, %v836, 0
      %v853 = vsel %vm842, %v837, 0
      %v856 = vsel %vm842, %v838, 0
      %v859 = vsel %vm842, %v839, 0
      %v862 = vsel %vm842, %v840, 0
      %v865 = vsel %vm842, %v841, 0
      %867 = vmatprep.subr.bf16.mxu0 %v691
      %868 = vmatpush1.bf16.msra.mxu0 %v690
      %869 = vmatprep.subr.bf16.mxu0 %v695
      %870 = vmatpush1.bf16.msra.mxu0 %v694
      %871 = vmatprep.subr.bf16.mxu0 %v699
      %872 = vmatpush1.bf16.msra.mxu0 %v698
      %873 = vmatprep.subr.bf16.mxu0 %v703
      %874 = vmatpush1.bf16.msra.mxu0 %v702
      %875 = vmatprep.subr.bf16.mxu0 0
      %876 = vmatpush1.bf16.msra.mxu0 0
      %877 = vmatprep.subr.bf16.mxu0 0
      %878 = vmatpush1.bf16.msra.mxu0 0
      %879 = vmatprep.subr.bf16.mxu0 0
      %880 = vmatpush1.bf16.msra.mxu0 0
      %881 = vmatprep.subr.bf16.mxu0 0
      %882 = vmatpush1.bf16.msra.mxu0 0
      %883 = vmatprep.subr.bf16.mxu0 0
      %884 = vmatpush1.bf16.msra.mxu0 0
      %885 = vmatprep.subr.bf16.mxu0 0
      %886 = vmatpush1.bf16.msra.mxu0 0
      %887 = vmatprep.subr.bf16.mxu0 0
      %888 = vmatpush1.bf16.msra.mxu0 0
      %889 = vmatprep.subr.bf16.mxu0 0
      %890 = vmatpush1.bf16.msra.mxu0 0
      %891 = vmatprep.subr.bf16.mxu0 0
      %892 = vmatpush1.bf16.msra.mxu0 0
      %893 = vmatprep.subr.bf16.mxu0 0
      %894 = vmatpush1.bf16.msra.mxu0 0
      %895 = vmatprep.subr.bf16.mxu0 0
      %896 = vmatpush1.bf16.msra.mxu0 0
      %897 = vmatprep.subr.bf16.mxu0 0
      %898 = vmatpush1.bf16.msra.mxu0 0
      %899 = vmatprep.mubr.bf16.mxu0 0
      %900 = vmatmul.mubr.bf16.gmra.mrb[0].mxu0 %v844
      %v901 = vpop.f32.mrb[0].mxu0
      %v902 = vadd.f32 %v725, %v901
      %v903 = vpop.f32.mrb[0].mxu0
      %v904 = vadd.f32 %v725, %v903
      %v905 = vpop.f32.mrb[0].mxu0
      %v906 = vadd.f32 %v730, %v905
      %v907 = vpop.f32.mrb[0].mxu0
      %v908 = vadd.f32 %v730, %v907
      %909 = vmatprep.mubr.bf16.mxu0 0
      %910 = vmatmul.mubr.bf16.gmra.mrb[0].mxu0 %v847
      %v911 = vpop.f32.mrb[0].mxu0
      %v912 = vadd.f32 %v735, %v911
      %v913 = vpop.f32.mrb[0].mxu0
      %v914 = vadd.f32 %v735, %v913
      %v915 = vpop.f32.mrb[0].mxu0
      %v916 = vadd.f32 %v740, %v915
      %v917 = vpop.f32.mrb[0].mxu0
      %v918 = vadd.f32 %v740, %v917
      %919 = vmatprep.mubr.bf16.mxu0 0
      %920 = vmatmul.mubr.bf16.gmra.mrb[0].mxu0 %v850
      %v921 = vpop.f32.mrb[0].mxu0
      %v922 = vadd.f32 %v745, %v921
      %v923 = vpop.f32.mrb[0].mxu0
      %v924 = vadd.f32 %v745, %v923
      %v925 = vpop.f32.mrb[0].mxu0
      %v926 = vadd.f32 %v750, %v925
      %v927 = vpop.f32.mrb[0].mxu0
      %v928 = vadd.f32 %v750, %v927
      %929 = vmatprep.mubr.bf16.mxu0 0
      %930 = vmatmul.mubr.bf16.gmra.mrb[0].mxu0 %v853
      %v931 = vpop.f32.mrb[0].mxu0
      %v932 = vadd.f32 %v755, %v931
      %v933 = vpop.f32.mrb[0].mxu0
      %v934 = vadd.f32 %v755, %v933
      %v935 = vpop.f32.mrb[0].mxu0
      %v936 = vadd.f32 %v760, %v935
      %v937 = vpop.f32.mrb[0].mxu0
      %v938 = vadd.f32 %v760, %v937
      %939 = vmatprep.mubr.bf16.mxu0 0
      %940 = vmatmul.mubr.bf16.gmra.mrb[0].mxu0 %v856
      %v941 = vpop.f32.mrb[0].mxu0
      %v942 = vadd.f32 %v765, %v941
      %v943 = vpop.f32.mrb[0].mxu0
      %v944 = vadd.f32 %v765, %v943
      %v945 = vpop.f32.mrb[0].mxu0
      %v946 = vadd.f32 %v770, %v945
      %v947 = vpop.f32.mrb[0].mxu0
      %v948 = vadd.f32 %v770, %v947
      %949 = vmatprep.mubr.bf16.mxu0 0
      %950 = vmatmul.mubr.bf16.gmra.mrb[0].mxu0 %v859
      %v951 = vpop.f32.mrb[0].mxu0
      %v952 = vadd.f32 %v775, %v951
      %v953 = vpop.f32.mrb[0].mxu0
      %v954 = vadd.f32 %v775, %v953
      %v955 = vpop.f32.mrb[0].mxu0
      %v956 = vadd.f32 %v780, %v955
      %v957 = vpop.f32.mrb[0].mxu0
      %v958 = vadd.f32 %v780, %v957
      %959 = vmatprep.mubr.bf16.mxu0 0
      %960 = vmatmul.mubr.bf16.gmra.mrb[0].mxu0 %v862
      %v961 = vpop.f32.mrb[0].mxu0
      %v962 = vadd.f32 %v785, %v961
      %v963 = vpop.f32.mrb[0].mxu0
      %v964 = vadd.f32 %v785, %v963
      %v965 = vpop.f32.mrb[0].mxu0
      %v966 = vadd.f32 %v790, %v965
      %v967 = vpop.f32.mrb[0].mxu0
      %v968 = vadd.f32 %v790, %v967
      %969 = vmatprep.mubr.bf16.mxu0 0
      %970 = vmatmul.mubr.bf16.gmra.mrb[0].mxu0 %v865
      %v971 = vpop.f32.mrb[0].mxu0
      %v972 = vadd.f32 %v795, %v971
      %v973 = vpop.f32.mrb[0].mxu0
      %v974 = vadd.f32 %v795, %v973
      %v975 = vpop.f32.mrb[0].mxu0
      %v976 = vadd.f32 %v800, %v975
      %v977 = vpop.f32.mrb[0].mxu0
      %v978 = vadd.f32 %v800, %v977
      %979 = vdwg.mxu0
      %980 = vmatprep.subr.bf16.mxu0 %v693
      %981 = vmatpush1.bf16.msra.mxu0 %v692
      %982 = vmatprep.subr.bf16.mxu0 %v697
      %983 = vmatpush1.bf16.msra.mxu0 %v696
      %984 = vmatprep.subr.bf16.mxu0 %v701
      %985 = vmatpush1.bf16.msra.mxu0 %v700
      %986 = vmatprep.subr.bf16.mxu0 %v705
      %987 = vmatpush1.bf16.msra.mxu0 %v704
      %988 = vmatprep.subr.bf16.mxu0 0
      %989 = vmatpush1.bf16.msra.mxu0 0
      %990 = vmatprep.subr.bf16.mxu0 0
      %991 = vmatpush1.bf16.msra.mxu0 0
      %992 = vmatprep.subr.bf16.mxu0 0
      %993 = vmatpush1.bf16.msra.mxu0 0
      %994 = vmatprep.subr.bf16.mxu0 0
      %995 = vmatpush1.bf16.msra.mxu0 0
      %996 = vmatprep.subr.bf16.mxu0 0
      %997 = vmatpush1.bf16.msra.mxu0 0
      %998 = vmatprep.subr.bf16.mxu0 0
      %999 = vmatpush1.bf16.msra.mxu0 0
      %1000 = vmatprep.subr.bf16.mxu0 0
      %1001 = vmatpush1.bf16.msra.mxu0 0
      %1002 = vmatprep.subr.bf16.mxu0 0
      %1003 = vmatpush1.bf16.msra.mxu0 0
      %1004 = vmatprep.subr.bf16.mxu0 0
      %1005 = vmatpush1.bf16.msra.mxu0 0
      %1006 = vmatprep.subr.bf16.mxu0 0
      %1007 = vmatpush1.bf16.msra.mxu0 0
      %1008 = vmatprep.subr.bf16.mxu0 0
      %1009 = vmatpush1.bf16.msra.mxu0 0
      %1010 = vmatprep.subr.bf16.mxu0 0
      %1011 = vmatpush1.bf16.msra.mxu0 0
      %1012 = vmatprep.mubr.bf16.mxu0 0
      %1013 = vmatmul.mubr.bf16.gmra.mrb[0].mxu0 %v844
      %v1014 = vpop.f32.mrb[0].mxu0
      %v1015 = vadd.f32 %v725, %v1014
      %v1016 = vpop.f32.mrb[0].mxu0
      %v1017 = vadd.f32 %v725, %v1016
      %v1018 = vpop.f32.mrb[0].mxu0
      %v1019 = vadd.f32 %v730, %v1018
      %v1020 = vpop.f32.mrb[0].mxu0
      %v1021 = vadd.f32 %v730, %v1020
      %1022 = vmatprep.mubr.bf16.mxu0 0
      %1023 = vmatmul.mubr.bf16.gmra.mrb[0].mxu0 %v847
      %v1024 = vpop.f32.mrb[0].mxu0
      %v1025 = vadd.f32 %v735, %v1024
      %v1026 = vpop.f32.mrb[0].mxu0
      %v1027 = vadd.f32 %v735, %v1026
      %v1028 = vpop.f32.mrb[0].mxu0
      %v1029 = vadd.f32 %v740, %v1028
      %v1030 = vpop.f32.mrb[0].mxu0
      %v1031 = vadd.f32 %v740, %v1030
      %1032 = vmatprep.mubr.bf16.mxu0 0
      %1033 = vmatmul.mubr.bf16.gmra.mrb[0].mxu0 %v850
      %v1034 = vpop.f32.mrb[0].mxu0
      %v1035 = vadd.f32 %v745, %v1034
      %v1036 = vpop.f32.mrb[0].mxu0
      %v1037 = vadd.f32 %v745, %v1036
      %v1038 = vpop.f32.mrb[0].mxu0
      %v1039 = vadd.f32 %v750, %v1038
      %v1040 = vpop.f32.mrb[0].mxu0
      %v1041 = vadd.f32 %v750, %v1040
      %1042 = vmatprep.mubr.bf16.mxu0 0
      %1043 = vmatmul.mubr.bf16.gmra.mrb[0].mxu0 %v853
      %v1044 = vpop.f32.mrb[0].mxu0
      %v1045 = vadd.f32 %v755, %v1044
      %v1046 = vpop.f32.mrb[0].mxu0
      %v1047 = vadd.f32 %v755, %v1046
      %v1048 = vpop.f32.mrb[0].mxu0
      %v1049 = vadd.f32 %v760, %v1048
      %v1050 = vpop.f32.mrb[0].mxu0
      %v1051 = vadd.f32 %v760, %v1050
      %1052 = vmatprep.mubr.bf16.mxu0 0
      %1053 = vmatmul.mubr.bf16.gmra.mrb[0].mxu0 %v856
      %v1054 = vpop.f32.mrb[0].mxu0
      %v1055 = vadd.f32 %v765, %v1054
      %v1056 = vpop.f32.mrb[0].mxu0
      %v1057 = vadd.f32 %v765, %v1056
      %v1058 = vpop.f32.mrb[0].mxu0
      %v1059 = vadd.f32 %v770, %v1058
      %v1060 = vpop.f32.mrb[0].mxu0
      %v1061 = vadd.f32 %v770, %v1060
      %1062 = vmatprep.mubr.bf16.mxu0 0
      %1063 = vmatmul.mubr.bf16.gmra.mrb[0].mxu0 %v859
      %v1064 = vpop.f32.mrb[0].mxu0
      %v1065 = vadd.f32 %v775, %v1064
      %v1066 = vpop.f32.mrb[0].mxu0
      %v1067 = vadd.f32 %v775, %v1066
      %v1068 = vpop.f32.mrb[0].mxu0
      %v1069 = vadd.f32 %v780, %v1068
      %v1070 = vpop.f32.mrb[0].mxu0
      %v1071 = vadd.f32 %v780, %v1070
      %1072 = vmatprep.mubr.bf16.mxu0 0
      %1073 = vmatmul.mubr.bf16.gmra.mrb[0].mxu0 %v862
      %v1074 = vpop.f32.mrb[0].mxu0
      %v1075 = vadd.f32 %v785, %v1074
      %v1076 = vpop.f32.mrb[0].mxu0
      %v1077 = vadd.f32 %v785, %v1076
      %v1078 = vpop.f32.mrb[0].mxu0
      %v1079 = vadd.f32 %v790, %v1078
      %v1080 = vpop.f32.mrb[0].mxu0
      %v1081 = vadd.f32 %v790, %v1080
      %1082 = vmatprep.mubr.bf16.mxu0 0
      %1083 = vmatmul.mubr.bf16.gmra.mrb[0].mxu0 %v865
      %v1084 = vpop.f32.mrb[0].mxu0
      %v1085 = vadd.f32 %v795, %v1084
      %v1086 = vpop.f32.mrb[0].mxu0
      %v1087 = vadd.f32 %v795, %v1086
      %v1088 = vpop.f32.mrb[0].mxu0
      %v1089 = vadd.f32 %v800, %v1088
      %v1090 = vpop.f32.mrb[0].mxu0
      %v1091 = vadd.f32 %v800, %v1090
      %1092 = vdwg.mxu0
      %v1093 = vmax.f32 %v902, 0.0
      %v1094 = vmax.f32 %v904, 0.0
      %v1095 = vmax.f32 %v1015, 0.0
      %v1096 = vmax.f32 %v1017, 0.0
      %v1097 = vmax.f32 %v906, 0.0
      %v1098 = vmax.f32 %v908, 0.0
      %v1099 = vmax.f32 %v1019, 0.0
      %v1100 = vmax.f32 %v1021, 0.0
      %v1101 = vmax.f32 %v912, 0.0
      %v1102 = vmax.f32 %v914, 0.0
      %v1103 = vmax.f32 %v1025, 0.0
      %v1104 = vmax.f32 %v1027, 0.0
      %v1105 = vmax.f32 %v916, 0.0
      %v1106 = vmax.f32 %v918, 0.0
      %v1107 = vmax.f32 %v1029, 0.0
      %v1108 = vmax.f32 %v1031, 0.0
      %v1109 = vmax.f32 %v922, 0.0
      %v1110 = vmax.f32 %v924, 0.0
      %v1111 = vmax.f32 %v1035, 0.0
      %v1112 = vmax.f32 %v1037, 0.0
      %v1113 = vmax.f32 %v926, 0.0
      %v1114 = vmax.f32 %v928, 0.0
      %v1115 = vmax.f32 %v1039, 0.0
      %v1116 = vmax.f32 %v1041, 0.0
      %v1117 = vmax.f32 %v932, 0.0
      %v1118 = vmax.f32 %v934, 0.0
      %v1119 = vmax.f32 %v1045, 0.0
      %v1120 = vmax.f32 %v1047, 0.0
      %v1121 = vmax.f32 %v936, 0.0
      %v1122 = vmax.f32 %v938, 0.0
      %v1123 = vmax.f32 %v1049, 0.0
      %v1124 = vmax.f32 %v1051, 0.0
      %v1125 = vmax.f32 %v942, 0.0
      %v1126 = vmax.f32 %v944, 0.0
      %v1127 = vmax.f32 %v1055, 0.0
      %v1128 = vmax.f32 %v1057, 0.0
      %v1129 = vmax.f32 %v946, 0.0
      %v1130 = vmax.f32 %v948, 0.0
      %v1131 = vmax.f32 %v1059, 0.0
      %v1132 = vmax.f32 %v1061, 0.0
      %v1133 = vmax.f32 %v952, 0.0
      %v1134 = vmax.f32 %v954, 0.0
      %v1135 = vmax.f32 %v1065, 0.0
      %v1136 = vmax.f32 %v1067, 0.0
      %v1137 = vmax.f32 %v956, 0.0
      %v1138 = vmax.f32 %v958, 0.0
      %v1139 = vmax.f32 %v1069, 0.0
      %v1140 = vmax.f32 %v1071, 0.0
      %v1141 = vmax.f32 %v962, 0.0
      %v1142 = vmax.f32 %v964, 0.0
      %v1143 = vmax.f32 %v1075, 0.0
      %v1144 = vmax.f32 %v1077, 0.0
      %v1145 = vmax.f32 %v966, 0.0
      %v1146 = vmax.f32 %v968, 0.0
      %v1147 = vmax.f32 %v1079, 0.0
      %v1148 = vmax.f32 %v1081, 0.0
      %v1149 = vmax.f32 %v972, 0.0
      %v1150 = vmax.f32 %v974, 0.0
      %v1151 = vmax.f32 %v1085, 0.0
      %v1152 = vmax.f32 %v1087, 0.0
      %v1153 = vmax.f32 %v976, 0.0
      %v1154 = vmax.f32 %v978, 0.0
      %v1155 = vmax.f32 %v1089, 0.0
      %v1156 = vmax.f32 %v1091, 0.0
      %v1157 = vld [vmem:[%s5] sm:$0xf]
      %v1158 = vld [vmem:[%s5 + $0x4] sm:$0xf]
      %v1159 = vld [vmem:[%s5 + $0x8] sm:$0xf]
      %v1160 = vld [vmem:[%s5 + $0xc] sm:$0xf]
      %v1161 = vld [vmem:[%s5 + $0x10] sm:$0xf]
      %v1162 = vld [vmem:[%s5 + $0x14] sm:$0xf]
      %v1163 = vld [vmem:[%s5 + $0x18] sm:$0xf]
      %v1164 = vld [vmem:[%s5 + $0x1c] sm:$0xf]
      %v1165 = vld [vmem:[%s5 + $0x20] sm:$0xf]
      %v1166 = vld [vmem:[%s5 + $0x24] sm:$0xf]
      %v1167 = vld [vmem:[%s5 + $0x28] sm:$0xf]
      %v1168 = vld [vmem:[%s5 + $0x2c] sm:$0xf]
      %v1169 = vld [vmem:[%s5 + $0x30] sm:$0xf]
      %v1170 = vld [vmem:[%s5 + $0x34] sm:$0xf]
      %v1171 = vld [vmem:[%s5 + $0x38] sm:$0xf]
      %v1172 = vld [vmem:[%s5 + $0x3c] sm:$0xf]
      %v1173 = vld [vmem:[%s5 + $0x40] sm:$0xf]
      %v1174 = vld [vmem:[%s5 + $0x44] sm:$0xf]
      %v1175 = vld [vmem:[%s5 + $0x48] sm:$0xf]
      %v1176 = vld [vmem:[%s5 + $0x4c] sm:$0xf]
      %v1177 = vld [vmem:[%s5 + $0x50] sm:$0xf]
      %v1178 = vld [vmem:[%s5 + $0x54] sm:$0xf]
      %v1179 = vld [vmem:[%s5 + $0x58] sm:$0xf]
      %v1180 = vld [vmem:[%s5 + $0x5c] sm:$0xf]
      %v1181 = vld [vmem:[%s5 + $0x60] sm:$0xf]
      %v1182 = vld [vmem:[%s5 + $0x64] sm:$0xf]
      %v1183 = vld [vmem:[%s5 + $0x68] sm:$0xf]
      %v1184 = vld [vmem:[%s5 + $0x6c] sm:$0xf]
      %v1185 = vld [vmem:[%s5 + $0x70] sm:$0xf]
      %v1186 = vld [vmem:[%s5 + $0x74] sm:$0xf]
      %v1187 = vld [vmem:[%s5 + $0x78] sm:$0xf]
      %v1188 = vld [vmem:[%s5 + $0x7c] sm:$0xf]
      %v1189 = vpack.c.bf16 %v1097, %v1093
      %v1190 = vpack.c.bf16 %v1098, %v1094
      %v1191 = vpack.c.bf16 %v1099, %v1095
      %v1192 = vpack.c.bf16 %v1100, %v1096
      %v1193 = vpack.c.bf16 %v1105, %v1101
      %v1194 = vpack.c.bf16 %v1106, %v1102
      %v1195 = vpack.c.bf16 %v1107, %v1103
      %v1196 = vpack.c.bf16 %v1108, %v1104
      %v1197 = vpack.c.bf16 %v1113, %v1109
      %v1198 = vpack.c.bf16 %v1114, %v1110
      %v1199 = vpack.c.bf16 %v1115, %v1111
      %v1200 = vpack.c.bf16 %v1116, %v1112
      %v1201 = vpack.c.bf16 %v1121, %v1117
      %v1202 = vpack.c.bf16 %v1122, %v1118
      %v1203 = vpack.c.bf16 %v1123, %v1119
      %v1204 = vpack.c.bf16 %v1124, %v1120
      %v1205 = vpack.c.bf16 %v1129, %v1125
      %v1206 = vpack.c.bf16 %v1130, %v1126
      %v1207 = vpack.c.bf16 %v1131, %v1127
      %v1208 = vpack.c.bf16 %v1132, %v1128
      %v1209 = vpack.c.bf16 %v1137, %v1133
      %v1210 = vpack.c.bf16 %v1138, %v1134
      %v1211 = vpack.c.bf16 %v1139, %v1135
      %v1212 = vpack.c.bf16 %v1140, %v1136
      %v1213 = vpack.c.bf16 %v1145, %v1141
      %v1214 = vpack.c.bf16 %v1146, %v1142
      %v1215 = vpack.c.bf16 %v1147, %v1143
      %v1216 = vpack.c.bf16 %v1148, %v1144
      %v1217 = vpack.c.bf16 %v1153, %v1149
      %v1218 = vpack.c.bf16 %v1154, %v1150
      %v1219 = vpack.c.bf16 %v1155, %v1151
      %v1220 = vpack.c.bf16 %v1156, %v1152
      %v1221 = vld [vmem:[%s6] sm:$0xff]
      %v1222 = vld [vmem:[%s6 + $0x8] sm:$0xff]
      %v1223 = vld [vmem:[%s6 + $0x10] sm:$0xff]
      %v1224 = vld [vmem:[%s6 + $0x18] sm:$0xff]
      %v1225 = vld [vmem:[%s6 + $0x20] sm:$0xff]
      %v1226 = vld [vmem:[%s6 + $0x28] sm:$0xff]
      %v1227 = vld [vmem:[%s6 + $0x30] sm:$0xff]
      %v1228 = vld [vmem:[%s6 + $0x38] sm:$0xff]
      %v1229 = vld [vmem:[%s6 + $0x40] sm:$0xff]
      %v1230 = vld [vmem:[%s6 + $0x48] sm:$0xff]
      %v1231 = vld [vmem:[%s6 + $0x50] sm:$0xff]
      %v1232 = vld [vmem:[%s6 + $0x58] sm:$0xff]
      %v1233 = vld [vmem:[%s6 + $0x60] sm:$0xff]
      %v1234 = vld [vmem:[%s6 + $0x68] sm:$0xff]
      %v1235 = vld [vmem:[%s6 + $0x70] sm:$0xff]
      %v1236 = vld [vmem:[%s6 + $0x78] sm:$0xff]
      %v1237 = vld [vmem:[%s6 + $0x80] sm:$0xff]
      %v1238 = vld [vmem:[%s6 + $0x88] sm:$0xff]
      %v1239 = vld [vmem:[%s6 + $0x90] sm:$0xff]
      %v1240 = vld [vmem:[%s6 + $0x98] sm:$0xff]
      %v1241 = vld [vmem:[%s6 + $0xa0] sm:$0xff]
      %v1242 = vld [vmem:[%s6 + $0xa8] sm:$0xff]
      %v1243 = vld [vmem:[%s6 + $0xb0] sm:$0xff]
      %v1244 = vld [vmem:[%s6 + $0xb8] sm:$0xff]
      %v1245 = vld [vmem:[%s6 + $0xc0] sm:$0xff]
      %v1246 = vld [vmem:[%s6 + $0xc8] sm:$0xff]
      %v1247 = vld [vmem:[%s6 + $0xd0] sm:$0xff]
      %v1248 = vld [vmem:[%s6 + $0xd8] sm:$0xff]
      %v1249 = vld [vmem:[%s6 + $0xe0] sm:$0xff]
      %v1250 = vld [vmem:[%s6 + $0xe8] sm:$0xff]
      %v1251 = vld [vmem:[%s6 + $0xf0] sm:$0xff]
      %v1252 = vld [vmem:[%s6 + $0xf8] sm:$0xff]
      %1254 = vset.pattern.permute.xlu0 0
      %1255 = vperm.xlu0 %1254, %v1221
      %v1256 = vpop.permute.xlu0 %1255
      %1259 = vset.pattern.permute.xlu0 0
      %1260 = vperm.xlu0 %1259, %v1222
      %v1261 = vpop.permute.xlu0 %1260
      %1264 = vset.pattern.permute.xlu0 0
      %1265 = vperm.xlu0 %1264, %v1223
      %v1266 = vpop.permute.xlu0 %1265
      %1269 = vset.pattern.permute.xlu0 0
      %1270 = vperm.xlu0 %1269, %v1224
      %v1271 = vpop.permute.xlu0 %1270
      %1274 = vset.pattern.permute.xlu0 0
      %1275 = vperm.xlu0 %1274, %v1225
      %v1276 = vpop.permute.xlu0 %1275
      %1279 = vset.pattern.permute.xlu0 0
      %1280 = vperm.xlu0 %1279, %v1226
      %v1281 = vpop.permute.xlu0 %1280
      %1284 = vset.pattern.permute.xlu0 0
      %1285 = vperm.xlu0 %1284, %v1227
      %v1286 = vpop.permute.xlu0 %1285
      %1289 = vset.pattern.permute.xlu0 0
      %1290 = vperm.xlu0 %1289, %v1228
      %v1291 = vpop.permute.xlu0 %1290
      %1294 = vset.pattern.permute.xlu0 0
      %1295 = vperm.xlu0 %1294, %v1229
      %v1296 = vpop.permute.xlu0 %1295
      %1299 = vset.pattern.permute.xlu0 0
      %1300 = vperm.xlu0 %1299, %v1230
      %v1301 = vpop.permute.xlu0 %1300
      %1304 = vset.pattern.permute.xlu0 0
      %1305 = vperm.xlu0 %1304, %v1231
      %v1306 = vpop.permute.xlu0 %1305
      %1309 = vset.pattern.permute.xlu0 0
      %1310 = vperm.xlu0 %1309, %v1232
      %v1311 = vpop.permute.xlu0 %1310
      %1314 = vset.pattern.permute.xlu0 0
      %1315 = vperm.xlu0 %1314, %v1233
      %v1316 = vpop.permute.xlu0 %1315
      %1319 = vset.pattern.permute.xlu0 0
      %1320 = vperm.xlu0 %1319, %v1234
      %v1321 = vpop.permute.xlu0 %1320
      %1324 = vset.pattern.permute.xlu0 0
      %1325 = vperm.xlu0 %1324, %v1235
      %v1326 = vpop.permute.xlu0 %1325
      %1329 = vset.pattern.permute.xlu0 0
      %1330 = vperm.xlu0 %1329, %v1236
      %v1331 = vpop.permute.xlu0 %1330
      %1334 = vset.pattern.permute.xlu0 0
      %1335 = vperm.xlu0 %1334, %v1237
      %v1336 = vpop.permute.xlu0 %1335
      %1339 = vset.pattern.permute.xlu0 0
      %1340 = vperm.xlu0 %1339, %v1238
      %v1341 = vpop.permute.xlu0 %1340
      %1344 = vset.pattern.permute.xlu0 0
      %1345 = vperm.xlu0 %1344, %v1239
      %v1346 = vpop.permute.xlu0 %1345
      %1349 = vset.pattern.permute.xlu0 0
      %1350 = vperm.xlu0 %1349, %v1240
      %v1351 = vpop.permute.xlu0 %1350
      %1354 = vset.pattern.permute.xlu0 0
      %1355 = vperm.xlu0 %1354, %v1241
      %v1356 = vpop.permute.xlu0 %1355
      %1359 = vset.pattern.permute.xlu0 0
      %1360 = vperm.xlu0 %1359, %v1242
      %v1361 = vpop.permute.xlu0 %1360
      %1364 = vset.pattern.permute.xlu0 0
      %1365 = vperm.xlu0 %1364, %v1243
      %v1366 = vpop.permute.xlu0 %1365
      %1369 = vset.pattern.permute.xlu0 0
      %1370 = vperm.xlu0 %1369, %v1244
      %v1371 = vpop.permute.xlu0 %1370
      %1374 = vset.pattern.permute.xlu0 0
      %1375 = vperm.xlu0 %1374, %v1245
      %v1376 = vpop.permute.xlu0 %1375
      %1379 = vset.pattern.permute.xlu0 0
      %1380 = vperm.xlu0 %1379, %v1246
      %v1381 = vpop.permute.xlu0 %1380
      %1384 = vset.pattern.permute.xlu0 0
      %1385 = vperm.xlu0 %1384, %v1247
      %v1386 = vpop.permute.xlu0 %1385
      %1389 = vset.pattern.permute.xlu0 0
      %1390 = vperm.xlu0 %1389, %v1248
      %v1391 = vpop.permute.xlu0 %1390
      %1394 = vset.pattern.permute.xlu0 0
      %1395 = vperm.xlu0 %1394, %v1249
      %v1396 = vpop.permute.xlu0 %1395
      %1399 = vset.pattern.permute.xlu0 0
      %1400 = vperm.xlu0 %1399, %v1250
      %v1401 = vpop.permute.xlu0 %1400
      %1404 = vset.pattern.permute.xlu0 0
      %1405 = vperm.xlu0 %1404, %v1251
      %v1406 = vpop.permute.xlu0 %1405
      %1409 = vset.pattern.permute.xlu0 0
      %1410 = vperm.xlu0 %1409, %v1252
      %v1411 = vpop.permute.xlu0 %1410
      %v1445 = vunpack.c.l.b16 %v1157
      %v1446 = vunpack.c.l.b16 %v1158
      %v1447 = vunpack.c.l.b16 %v1159
      %v1448 = vunpack.c.l.b16 %v1160
      %v1449 = vunpack.c.l.b16 %v1161
      %v1450 = vunpack.c.l.b16 %v1162
      %v1451 = vunpack.c.l.b16 %v1163
      %v1452 = vunpack.c.l.b16 %v1164
      %v1453 = vunpack.c.l.b16 %v1165
      %v1454 = vunpack.c.l.b16 %v1166
      %v1455 = vunpack.c.l.b16 %v1167
      %v1456 = vunpack.c.l.b16 %v1168
      %v1457 = vunpack.c.l.b16 %v1169
      %v1458 = vunpack.c.l.b16 %v1170
      %v1459 = vunpack.c.l.b16 %v1171
      %v1460 = vunpack.c.l.b16 %v1172
      %v1461 = vunpack.c.l.b16 %v1173
      %v1462 = vunpack.c.l.b16 %v1174
      %v1463 = vunpack.c.l.b16 %v1175
      %v1464 = vunpack.c.l.b16 %v1176
      %v1465 = vunpack.c.l.b16 %v1177
      %v1466 = vunpack.c.l.b16 %v1178
      %v1467 = vunpack.c.l.b16 %v1179
      %v1468 = vunpack.c.l.b16 %v1180
      %v1469 = vunpack.c.l.b16 %v1181
      %v1470 = vunpack.c.l.b16 %v1182
      %v1471 = vunpack.c.l.b16 %v1183
      %v1472 = vunpack.c.l.b16 %v1184
      %v1473 = vunpack.c.l.b16 %v1185
      %v1474 = vunpack.c.l.b16 %v1186
      %v1475 = vunpack.c.l.b16 %v1187
      %v1476 = vunpack.c.l.b16 %v1188
      %v1477 = vpack.c.b16 %v1446, %v1445
      %v1478 = vpack.c.b16 %v1448, %v1447
      %v1479 = vpack.c.b16 %v1450, %v1449
      %v1480 = vpack.c.b16 %v1452, %v1451
      %v1481 = vpack.c.b16 %v1454, %v1453
      %v1482 = vpack.c.b16 %v1456, %v1455
      %v1483 = vpack.c.b16 %v1458, %v1457
      %v1484 = vpack.c.b16 %v1460, %v1459
      %v1485 = vpack.c.b16 %v1462, %v1461
      %v1486 = vpack.c.b16 %v1464, %v1463
      %v1487 = vpack.c.b16 %v1466, %v1465
      %v1488 = vpack.c.b16 %v1468, %v1467
      %v1489 = vpack.c.b16 %v1470, %v1469
      %v1490 = vpack.c.b16 %v1472, %v1471
      %v1491 = vpack.c.b16 %v1474, %v1473
      %v1492 = vpack.c.b16 %v1476, %v1475
      %1509 = vmatprep.subr.bf16.mxu0 %v1190
      %1510 = vmatpush1.bf16.msra.mxu0 %v1189
      %1511 = vmatprep.subr.bf16.mxu0 %v1194
      %1512 = vmatpush1.bf16.msra.mxu0 %v1193
      %1513 = vmatprep.subr.bf16.mxu0 %v1198
      %1514 = vmatpush1.bf16.msra.mxu0 %v1197
      %1515 = vmatprep.subr.bf16.mxu0 %v1202
      %1516 = vmatpush1.bf16.msra.mxu0 %v1201
      %1517 = vmatprep.subr.bf16.mxu0 %v1206
      %1518 = vmatpush1.bf16.msra.mxu0 %v1205
      %1519 = vmatprep.subr.bf16.mxu0 %v1210
      %1520 = vmatpush1.bf16.msra.mxu0 %v1209
      %1521 = vmatprep.subr.bf16.mxu0 %v1214
      %1522 = vmatpush1.bf16.msra.mxu0 %v1213
      %1523 = vmatprep.subr.bf16.mxu0 %v1218
      %1524 = vmatpush1.bf16.msra.mxu0 %v1217
      %1525 = vmatprep.subr.bf16.mxu0 0
      %1526 = vmatpush1.bf16.msra.mxu0 0
      %1527 = vmatprep.subr.bf16.mxu0 0
      %1528 = vmatpush1.bf16.msra.mxu0 0
      %1529 = vmatprep.subr.bf16.mxu0 0
      %1530 = vmatpush1.bf16.msra.mxu0 0
      %1531 = vmatprep.subr.bf16.mxu0 0
      %1532 = vmatpush1.bf16.msra.mxu0 0
      %1533 = vmatprep.subr.bf16.mxu0 0
      %1534 = vmatpush1.bf16.msra.mxu0 0
      %1535 = vmatprep.subr.bf16.mxu0 0
      %1536 = vmatpush1.bf16.msra.mxu0 0
      %1537 = vmatprep.subr.bf16.mxu0 0
      %1538 = vmatpush1.bf16.msra.mxu0 0
      %1539 = vmatprep.subr.bf16.mxu0 0
      %1540 = vmatpush1.bf16.msra.mxu0 0
      %1541 = vmatprep.mubr.bf16.mxu0 0
      %1542 = vmatmul.mubr.bf16.gmra.mrb[0].mxu0 %v1477
      %v1543 = vpop.f32.mrb[0].mxu0
      %v1544 = vadd.f32 %v1256, %v1543
      %v1545 = vpop.f32.mrb[0].mxu0
      %v1546 = vadd.f32 %v1256, %v1545
      %v1547 = vpop.f32.mrb[0].mxu0
      %v1548 = vadd.f32 %v1261, %v1547
      %v1549 = vpop.f32.mrb[0].mxu0
      %v1550 = vadd.f32 %v1261, %v1549
      %1551 = vmatprep.mubr.bf16.mxu0 0
      %1552 = vmatmul.mubr.bf16.gmra.mrb[0].mxu0 %v1478
      %v1553 = vpop.f32.mrb[0].mxu0
      %v1554 = vadd.f32 %v1266, %v1553
      %v1555 = vpop.f32.mrb[0].mxu0
      %v1556 = vadd.f32 %v1266, %v1555
      %v1557 = vpop.f32.mrb[0].mxu0
      %v1558 = vadd.f32 %v1271, %v1557
      %v1559 = vpop.f32.mrb[0].mxu0
      %v1560 = vadd.f32 %v1271, %v1559
      %1561 = vmatprep.mubr.bf16.mxu0 0
      %1562 = vmatmul.mubr.bf16.gmra.mrb[0].mxu0 %v1479
      %v1563 = vpop.f32.mrb[0].mxu0
      %v1564 = vadd.f32 %v1276, %v1563
      %v1565 = vpop.f32.mrb[0].mxu0
      %v1566 = vadd.f32 %v1276, %v1565
      %v1567 = vpop.f32.mrb[0].mxu0
      %v1568 = vadd.f32 %v1281, %v1567
      %v1569 = vpop.f32.mrb[0].mxu0
      %v1570 = vadd.f32 %v1281, %v1569
      %1571 = vmatprep.mubr.bf16.mxu0 0
      %1572 = vmatmul.mubr.bf16.gmra.mrb[0].mxu0 %v1480
      %v1573 = vpop.f32.mrb[0].mxu0
      %v1574 = vadd.f32 %v1286, %v1573
      %v1575 = vpop.f32.mrb[0].mxu0
      %v1576 = vadd.f32 %v1286, %v1575
      %v1577 = vpop.f32.mrb[0].mxu0
      %v1578 = vadd.f32 %v1291, %v1577
      %v1579 = vpop.f32.mrb[0].mxu0
      %v1580 = vadd.f32 %v1291, %v1579
      %1581 = vmatprep.mubr.bf16.mxu0 0
      %1582 = vmatmul.mubr.bf16.gmra.mrb[0].mxu0 %v1481
      %v1583 = vpop.f32.mrb[0].mxu0
      %v1584 = vadd.f32 %v1296, %v1583
      %v1585 = vpop.f32.mrb[0].mxu0
      %v1586 = vadd.f32 %v1296, %v1585
      %v1587 = vpop.f32.mrb[0].mxu0
      %v1588 = vadd.f32 %v1301, %v1587
      %v1589 = vpop.f32.mrb[0].mxu0
      %v1590 = vadd.f32 %v1301, %v1589
      %1591 = vmatprep.mubr.bf16.mxu0 0
      %1592 = vmatmul.mubr.bf16.gmra.mrb[0].mxu0 %v1482
      %v1593 = vpop.f32.mrb[0].mxu0
      %v1594 = vadd.f32 %v1306, %v1593
      %v1595 = vpop.f32.mrb[0].mxu0
      %v1596 = vadd.f32 %v1306, %v1595
      %v1597 = vpop.f32.mrb[0].mxu0
      %v1598 = vadd.f32 %v1311, %v1597
      %v1599 = vpop.f32.mrb[0].mxu0
      %v1600 = vadd.f32 %v1311, %v1599
      %1601 = vmatprep.mubr.bf16.mxu0 0
      %1602 = vmatmul.mubr.bf16.gmra.mrb[0].mxu0 %v1483
      %v1603 = vpop.f32.mrb[0].mxu0
      %v1604 = vadd.f32 %v1316, %v1603
      %v1605 = vpop.f32.mrb[0].mxu0
      %v1606 = vadd.f32 %v1316, %v1605
      %v1607 = vpop.f32.mrb[0].mxu0
      %v1608 = vadd.f32 %v1321, %v1607
      %v1609 = vpop.f32.mrb[0].mxu0
      %v1610 = vadd.f32 %v1321, %v1609
      %1611 = vmatprep.mubr.bf16.mxu0 0
      %1612 = vmatmul.mubr.bf16.gmra.mrb[0].mxu0 %v1484
      %v1613 = vpop.f32.mrb[0].mxu0
      %v1614 = vadd.f32 %v1326, %v1613
      %v1615 = vpop.f32.mrb[0].mxu0
      %v1616 = vadd.f32 %v1326, %v1615
      %v1617 = vpop.f32.mrb[0].mxu0
      %v1618 = vadd.f32 %v1331, %v1617
      %v1619 = vpop.f32.mrb[0].mxu0
      %v1620 = vadd.f32 %v1331, %v1619
      %1621 = vmatprep.mubr.bf16.mxu0 0
      %1622 = vmatmul.mubr.bf16.gmra.mrb[0].mxu0 %v1485
      %v1623 = vpop.f32.mrb[0].mxu0
      %v1624 = vadd.f32 %v1336, %v1623
      %v1625 = vpop.f32.mrb[0].mxu0
      %v1626 = vadd.f32 %v1336, %v1625
      %v1627 = vpop.f32.mrb[0].mxu0
      %v1628 = vadd.f32 %v1341, %v1627
      %v1629 = vpop.f32.mrb[0].mxu0
      %v1630 = vadd.f32 %v1341, %v1629
      %1631 = vmatprep.mubr.bf16.mxu0 0
      %1632 = vmatmul.mubr.bf16.gmra.mrb[0].mxu0 %v1486
      %v1633 = vpop.f32.mrb[0].mxu0
      %v1634 = vadd.f32 %v1346, %v1633
      %v1635 = vpop.f32.mrb[0].mxu0
      %v1636 = vadd.f32 %v1346, %v1635
      %v1637 = vpop.f32.mrb[0].mxu0
      %v1638 = vadd.f32 %v1351, %v1637
      %v1639 = vpop.f32.mrb[0].mxu0
      %v1640 = vadd.f32 %v1351, %v1639
      %1641 = vmatprep.mubr.bf16.mxu0 0
      %1642 = vmatmul.mubr.bf16.gmra.mrb[0].mxu0 %v1487
      %v1643 = vpop.f32.mrb[0].mxu0
      %v1644 = vadd.f32 %v1356, %v1643
      %v1645 = vpop.f32.mrb[0].mxu0
      %v1646 = vadd.f32 %v1356, %v1645
      %v1647 = vpop.f32.mrb[0].mxu0
      %v1648 = vadd.f32 %v1361, %v1647
      %v1649 = vpop.f32.mrb[0].mxu0
      %v1650 = vadd.f32 %v1361, %v1649
      %1651 = vmatprep.mubr.bf16.mxu0 0
      %1652 = vmatmul.mubr.bf16.gmra.mrb[0].mxu0 %v1488
      %v1653 = vpop.f32.mrb[0].mxu0
      %v1654 = vadd.f32 %v1366, %v1653
      %v1655 = vpop.f32.mrb[0].mxu0
      %v1656 = vadd.f32 %v1366, %v1655
      %v1657 = vpop.f32.mrb[0].mxu0
      %v1658 = vadd.f32 %v1371, %v1657
      %v1659 = vpop.f32.mrb[0].mxu0
      %v1660 = vadd.f32 %v1371, %v1659
      %1661 = vmatprep.mubr.bf16.mxu0 0
      %1662 = vmatmul.mubr.bf16.gmra.mrb[0].mxu0 %v1489
      %v1663 = vpop.f32.mrb[0].mxu0
      %v1664 = vadd.f32 %v1376, %v1663
      %v1665 = vpop.f32.mrb[0].mxu0
      %v1666 = vadd.f32 %v1376, %v1665
      %v1667 = vpop.f32.mrb[0].mxu0
      %v1668 = vadd.f32 %v1381, %v1667
      %v1669 = vpop.f32.mrb[0].mxu0
      %v1670 = vadd.f32 %v1381, %v1669
      %1671 = vmatprep.mubr.bf16.mxu0 0
      %1672 = vmatmul.mubr.bf16.gmra.mrb[0].mxu0 %v1490
      %v1673 = vpop.f32.mrb[0].mxu0
      %v1674 = vadd.f32 %v1386, %v1673
      %v1675 = vpop.f32.mrb[0].mxu0
      %v1676 = vadd.f32 %v1386, %v1675
      %v1677 = vpop.f32.mrb[0].mxu0
      %v1678 = vadd.f32 %v1391, %v1677
      %v1679 = vpop.f32.mrb[0].mxu0
      %v1680 = vadd.f32 %v1391, %v1679
      %1681 = vmatprep.mubr.bf16.mxu0 0
      %1682 = vmatmul.mubr.bf16.gmra.mrb[0].mxu0 %v1491
      %v1683 = vpop.f32.mrb[0].mxu0
      %v1684 = vadd.f32 %v1396, %v1683
      %v1685 = vpop.f32.mrb[0].mxu0
      %v1686 = vadd.f32 %v1396, %v1685
      %v1687 = vpop.f32.mrb[0].mxu0
      %v1688 = vadd.f32 %v1401, %v1687
      %v1689 = vpop.f32.mrb[0].mxu0
      %v1690 = vadd.f32 %v1401, %v1689
      %1691 = vmatprep.mubr.bf16.mxu0 0
      %1692 = vmatmul.mubr.bf16.gmra.mrb[0].mxu0 %v1492
      %v1693 = vpop.f32.mrb[0].mxu0
      %v1694 = vadd.f32 %v1406, %v1693
      %v1695 = vpop.f32.mrb[0].mxu0
      %v1696 = vadd.f32 %v1406, %v1695
      %v1697 = vpop.f32.mrb[0].mxu0
      %v1698 = vadd.f32 %v1411, %v1697
      %v1699 = vpop.f32.mrb[0].mxu0
      %v1700 = vadd.f32 %v1411, %v1699
      %1701 = vdwg.mxu0
      %1702 = vmatprep.subr.bf16.mxu0 %v1192
      %1703 = vmatpush1.bf16.msra.mxu0 %v1191
      %1704 = vmatprep.subr.bf16.mxu0 %v1196
      %1705 = vmatpush1.bf16.msra.mxu0 %v1195
      %1706 = vmatprep.subr.bf16.mxu0 %v1200
      %1707 = vmatpush1.bf16.msra.mxu0 %v1199
      %1708 = vmatprep.subr.bf16.mxu0 %v1204
      %1709 = vmatpush1.bf16.msra.mxu0 %v1203
      %1710 = vmatprep.subr.bf16.mxu0 %v1208
      %1711 = vmatpush1.bf16.msra.mxu0 %v1207
      %1712 = vmatprep.subr.bf16.mxu0 %v1212
      %1713 = vmatpush1.bf16.msra.mxu0 %v1211
      %1714 = vmatprep.subr.bf16.mxu0 %v1216
      %1715 = vmatpush1.bf16.msra.mxu0 %v1215
      %1716 = vmatprep.subr.bf16.mxu0 %v1220
      %1717 = vmatpush1.bf16.msra.mxu0 %v1219
      %1718 = vmatprep.subr.bf16.mxu0 0
      %1719 = vmatpush1.bf16.msra.mxu0 0
      %1720 = vmatprep.subr.bf16.mxu0 0
      %1721 = vmatpush1.bf16.msra.mxu0 0
      %1722 = vmatprep.subr.bf16.mxu0 0
      %1723 = vmatpush1.bf16.msra.mxu0 0
      %1724 = vmatprep.subr.bf16.mxu0 0
      %1725 = vmatpush1.bf16.msra.mxu0 0
      %1726 = vmatprep.subr.bf16.mxu0 0
      %1727 = vmatpush1.bf16.msra.mxu0 0
      %1728 = vmatprep.subr.bf16.mxu0 0
      %1729 = vmatpush1.bf16.msra.mxu0 0
      %1730 = vmatprep.subr.bf16.mxu0 0
      %1731 = vmatpush1.bf16.msra.mxu0 0
      %1732 = vmatprep.subr.bf16.mxu0 0
      %1733 = vmatpush1.bf16.msra.mxu0 0
      %1734 = vmatprep.mubr.bf16.mxu0 0
      %1735 = vmatmul.mubr.bf16.gmra.mrb[0].mxu0 %v1477
      %v1736 = vpop.f32.mrb[0].mxu0
      %v1737 = vadd.f32 %v1256, %v1736
      %v1738 = vpop.f32.mrb[0].mxu0
      %v1739 = vadd.f32 %v1256, %v1738
      %v1740 = vpop.f32.mrb[0].mxu0
      %v1741 = vadd.f32 %v1261, %v1740
      %v1742 = vpop.f32.mrb[0].mxu0
      %v1743 = vadd.f32 %v1261, %v1742
      %1744 = vmatprep.mubr.bf16.mxu0 0
      %1745 = vmatmul.mubr.bf16.gmra.mrb[0].mxu0 %v1478
      %v1746 = vpop.f32.mrb[0].mxu0
      %v1747 = vadd.f32 %v1266, %v1746
      %v1748 = vpop.f32.mrb[0].mxu0
      %v1749 = vadd.f32 %v1266, %v1748
      %v1750 = vpop.f32.mrb[0].mxu0
      %v1751 = vadd.f32 %v1271, %v1750
      %v1752 = vpop.f32.mrb[0].mxu0
      %v1753 = vadd.f32 %v1271, %v1752
      %1754 = vmatprep.mubr.bf16.mxu0 0
      %1755 = vmatmul.mubr.bf16.gmra.mrb[0].mxu0 %v1479
      %v1756 = vpop.f32.mrb[0].mxu0
      %v1757 = vadd.f32 %v1276, %v1756
      %v1758 = vpop.f32.mrb[0].mxu0
      %v1759 = vadd.f32 %v1276, %v1758
      %v1760 = vpop.f32.mrb[0].mxu0
      %v1761 = vadd.f32 %v1281, %v1760
      %v1762 = vpop.f32.mrb[0].mxu0
      %v1763 = vadd.f32 %v1281, %v1762
      %1764 = vmatprep.mubr.bf16.mxu0 0
      %1765 = vmatmul.mubr.bf16.gmra.mrb[0].mxu0 %v1480
      %v1766 = vpop.f32.mrb[0].mxu0
      %v1767 = vadd.f32 %v1286, %v1766
      %v1768 = vpop.f32.mrb[0].mxu0
      %v1769 = vadd.f32 %v1286, %v1768
      %v1770 = vpop.f32.mrb[0].mxu0
      %v1771 = vadd.f32 %v1291, %v1770
      %v1772 = vpop.f32.mrb[0].mxu0
      %v1773 = vadd.f32 %v1291, %v1772
      %1774 = vmatprep.mubr.bf16.mxu0 0
      %1775 = vmatmul.mubr.bf16.gmra.mrb[0].mxu0 %v1481
      %v1776 = vpop.f32.mrb[0].mxu0
      %v1777 = vadd.f32 %v1296, %v1776
      %v1778 = vpop.f32.mrb[0].mxu0
      %v1779 = vadd.f32 %v1296, %v1778
      %v1780 = vpop.f32.mrb[0].mxu0
      %v1781 = vadd.f32 %v1301, %v1780
      %v1782 = vpop.f32.mrb[0].mxu0
      %v1783 = vadd.f32 %v1301, %v1782
      %1784 = vmatprep.mubr.bf16.mxu0 0
      %1785 = vmatmul.mubr.bf16.gmra.mrb[0].mxu0 %v1482
      %v1786 = vpop.f32.mrb[0].mxu0
      %v1787 = vadd.f32 %v1306, %v1786
      %v1788 = vpop.f32.mrb[0].mxu0
      %v1789 = vadd.f32 %v1306, %v1788
      %v1790 = vpop.f32.mrb[0].mxu0
      %v1791 = vadd.f32 %v1311, %v1790
      %v1792 = vpop.f32.mrb[0].mxu0
      %v1793 = vadd.f32 %v1311, %v1792
      %1794 = vmatprep.mubr.bf16.mxu0 0
      %1795 = vmatmul.mubr.bf16.gmra.mrb[0].mxu0 %v1483
      %v1796 = vpop.f32.mrb[0].mxu0
      %v1797 = vadd.f32 %v1316, %v1796
      %v1798 = vpop.f32.mrb[0].mxu0
      %v1799 = vadd.f32 %v1316, %v1798
      %v1800 = vpop.f32.mrb[0].mxu0
      %v1801 = vadd.f32 %v1321, %v1800
      %v1802 = vpop.f32.mrb[0].mxu0
      %v1803 = vadd.f32 %v1321, %v1802
      %1804 = vmatprep.mubr.bf16.mxu0 0
      %1805 = vmatmul.mubr.bf16.gmra.mrb[0].mxu0 %v1484
      %v1806 = vpop.f32.mrb[0].mxu0
      %v1807 = vadd.f32 %v1326, %v1806
      %v1808 = vpop.f32.mrb[0].mxu0
      %v1809 = vadd.f32 %v1326, %v1808
      %v1810 = vpop.f32.mrb[0].mxu0
      %v1811 = vadd.f32 %v1331, %v1810
      %v1812 = vpop.f32.mrb[0].mxu0
      %v1813 = vadd.f32 %v1331, %v1812
      %1814 = vmatprep.mubr.bf16.mxu0 0
      %1815 = vmatmul.mubr.bf16.gmra.mrb[0].mxu0 %v1485
      %v1816 = vpop.f32.mrb[0].mxu0
      %v1817 = vadd.f32 %v1336, %v1816
      %v1818 = vpop.f32.mrb[0].mxu0
      %v1819 = vadd.f32 %v1336, %v1818
      %v1820 = vpop.f32.mrb[0].mxu0
      %v1821 = vadd.f32 %v1341, %v1820
      %v1822 = vpop.f32.mrb[0].mxu0
      %v1823 = vadd.f32 %v1341, %v1822
      %1824 = vmatprep.mubr.bf16.mxu0 0
      %1825 = vmatmul.mubr.bf16.gmra.mrb[0].mxu0 %v1486
      %v1826 = vpop.f32.mrb[0].mxu0
      %v1827 = vadd.f32 %v1346, %v1826
      %v1828 = vpop.f32.mrb[0].mxu0
      %v1829 = vadd.f32 %v1346, %v1828
      %v1830 = vpop.f32.mrb[0].mxu0
      %v1831 = vadd.f32 %v1351, %v1830
      %v1832 = vpop.f32.mrb[0].mxu0
      %v1833 = vadd.f32 %v1351, %v1832
      %1834 = vmatprep.mubr.bf16.mxu0 0
      %1835 = vmatmul.mubr.bf16.gmra.mrb[0].mxu0 %v1487
      %v1836 = vpop.f32.mrb[0].mxu0
      %v1837 = vadd.f32 %v1356, %v1836
      %v1838 = vpop.f32.mrb[0].mxu0
      %v1839 = vadd.f32 %v1356, %v1838
      %v1840 = vpop.f32.mrb[0].mxu0
      %v1841 = vadd.f32 %v1361, %v1840
      %v1842 = vpop.f32.mrb[0].mxu0
      %v1843 = vadd.f32 %v1361, %v1842
      %1844 = vmatprep.mubr.bf16.mxu0 0
      %1845 = vmatmul.mubr.bf16.gmra.mrb[0].mxu0 %v1488
      %v1846 = vpop.f32.mrb[0].mxu0
      %v1847 = vadd.f32 %v1366, %v1846
      %v1848 = vpop.f32.mrb[0].mxu0
      %v1849 = vadd.f32 %v1366, %v1848
      %v1850 = vpop.f32.mrb[0].mxu0
      %v1851 = vadd.f32 %v1371, %v1850
      %v1852 = vpop.f32.mrb[0].mxu0
      %v1853 = vadd.f32 %v1371, %v1852
      %1854 = vmatprep.mubr.bf16.mxu0 0
      %1855 = vmatmul.mubr.bf16.gmra.mrb[0].mxu0 %v1489
      %v1856 = vpop.f32.mrb[0].mxu0
      %v1857 = vadd.f32 %v1376, %v1856
      %v1858 = vpop.f32.mrb[0].mxu0
      %v1859 = vadd.f32 %v1376, %v1858
      %v1860 = vpop.f32.mrb[0].mxu0
      %v1861 = vadd.f32 %v1381, %v1860
      %v1862 = vpop.f32.mrb[0].mxu0
      %v1863 = vadd.f32 %v1381, %v1862
      %1864 = vmatprep.mubr.bf16.mxu0 0
      %1865 = vmatmul.mubr.bf16.gmra.mrb[0].mxu0 %v1490
      %v1866 = vpop.f32.mrb[0].mxu0
      %v1867 = vadd.f32 %v1386, %v1866
      %v1868 = vpop.f32.mrb[0].mxu0
      %v1869 = vadd.f32 %v1386, %v1868
      %v1870 = vpop.f32.mrb[0].mxu0
      %v1871 = vadd.f32 %v1391, %v1870
      %v1872 = vpop.f32.mrb[0].mxu0
      %v1873 = vadd.f32 %v1391, %v1872
      %1874 = vmatprep.mubr.bf16.mxu0 0
      %1875 = vmatmul.mubr.bf16.gmra.mrb[0].mxu0 %v1491
      %v1876 = vpop.f32.mrb[0].mxu0
      %v1877 = vadd.f32 %v1396, %v1876
      %v1878 = vpop.f32.mrb[0].mxu0
      %v1879 = vadd.f32 %v1396, %v1878
      %v1880 = vpop.f32.mrb[0].mxu0
      %v1881 = vadd.f32 %v1401, %v1880
      %v1882 = vpop.f32.mrb[0].mxu0
      %v1883 = vadd.f32 %v1401, %v1882
      %1884 = vmatprep.mubr.bf16.mxu0 0
      %1885 = vmatmul.mubr.bf16.gmra.mrb[0].mxu0 %v1492
      %v1886 = vpop.f32.mrb[0].mxu0
      %v1887 = vadd.f32 %v1406, %v1886
      %v1888 = vpop.f32.mrb[0].mxu0
      %v1889 = vadd.f32 %v1406, %v1888
      %v1890 = vpop.f32.mrb[0].mxu0
      %v1891 = vadd.f32 %v1411, %v1890
      %v1892 = vpop.f32.mrb[0].mxu0
      %v1893 = vadd.f32 %v1411, %v1892
      %1894 = vdwg.mxu0
      %v1895 = vmax.f32 %v1544, 0.0
      %v1896 = vmax.f32 %v1546, 0.0
      %v1897 = vmax.f32 %v1737, 0.0
      %v1898 = vmax.f32 %v1739, 0.0
      %v1899 = vmax.f32 %v1548, 0.0
      %v1900 = vmax.f32 %v1550, 0.0
      %v1901 = vmax.f32 %v1741, 0.0
      %v1902 = vmax.f32 %v1743, 0.0
      %v1903 = vmax.f32 %v1554, 0.0
      %v1904 = vmax.f32 %v1556, 0.0
      %v1905 = vmax.f32 %v1747, 0.0
      %v1906 = vmax.f32 %v1749, 0.0
      %v1907 = vmax.f32 %v1558, 0.0
      %v1908 = vmax.f32 %v1560, 0.0
      %v1909 = vmax.f32 %v1751, 0.0
      %v1910 = vmax.f32 %v1753, 0.0
      %v1911 = vmax.f32 %v1564, 0.0
      %v1912 = vmax.f32 %v1566, 0.0
      %v1913 = vmax.f32 %v1757, 0.0
      %v1914 = vmax.f32 %v1759, 0.0
      %v1915 = vmax.f32 %v1568, 0.0
      %v1916 = vmax.f32 %v1570, 0.0
      %v1917 = vmax.f32 %v1761, 0.0
      %v1918 = vmax.f32 %v1763, 0.0
      %v1919 = vmax.f32 %v1574, 0.0
      %v1920 = vmax.f32 %v1576, 0.0
      %v1921 = vmax.f32 %v1767, 0.0
      %v1922 = vmax.f32 %v1769, 0.0
      %v1923 = vmax.f32 %v1578, 0.0
      %v1924 = vmax.f32 %v1580, 0.0
      %v1925 = vmax.f32 %v1771, 0.0
      %v1926 = vmax.f32 %v1773, 0.0
      %v1927 = vmax.f32 %v1584, 0.0
      %v1928 = vmax.f32 %v1586, 0.0
      %v1929 = vmax.f32 %v1777, 0.0
      %v1930 = vmax.f32 %v1779, 0.0
      %v1931 = vmax.f32 %v1588, 0.0
      %v1932 = vmax.f32 %v1590, 0.0
      %v1933 = vmax.f32 %v1781, 0.0
      %v1934 = vmax.f32 %v1783, 0.0
      %v1935 = vmax.f32 %v1594, 0.0
      %v1936 = vmax.f32 %v1596, 0.0
      %v1937 = vmax.f32 %v1787, 0.0
      %v1938 = vmax.f32 %v1789, 0.0
      %v1939 = vmax.f32 %v1598, 0.0
      %v1940 = vmax.f32 %v1600, 0.0
      %v1941 = vmax.f32 %v1791, 0.0
      %v1942 = vmax.f32 %v1793, 0.0
      %v1943 = vmax.f32 %v1604, 0.0
      %v1944 = vmax.f32 %v1606, 0.0
      %v1945 = vmax.f32 %v1797, 0.0
      %v1946 = vmax.f32 %v1799, 0.0
      %v1947 = vmax.f32 %v1608, 0.0
      %v1948 = vmax.f32 %v1610, 0.0
      %v1949 = vmax.f32 %v1801, 0.0
      %v1950 = vmax.f32 %v1803, 0.0
      %v1951 = vmax.f32 %v1614, 0.0
      %v1952 = vmax.f32 %v1616, 0.0
      %v1953 = vmax.f32 %v1807, 0.0
      %v1954 = vmax.f32 %v1809, 0.0
      %v1955 = vmax.f32 %v1618, 0.0
      %v1956 = vmax.f32 %v1620, 0.0
      %v1957 = vmax.f32 %v1811, 0.0
      %v1958 = vmax.f32 %v1813, 0.0
      %v1959 = vmax.f32 %v1624, 0.0
      %v1960 = vmax.f32 %v1626, 0.0
      %v1961 = vmax.f32 %v1817, 0.0
      %v1962 = vmax.f32 %v1819, 0.0
      %v1963 = vmax.f32 %v1628, 0.0
      %v1964 = vmax.f32 %v1630, 0.0
      %v1965 = vmax.f32 %v1821, 0.0
      %v1966 = vmax.f32 %v1823, 0.0
      %v1967 = vmax.f32 %v1634, 0.0
      %v1968 = vmax.f32 %v1636, 0.0
      %v1969 = vmax.f32 %v1827, 0.0
      %v1970 = vmax.f32 %v1829, 0.0
      %v1971 = vmax.f32 %v1638, 0.0
      %v1972 = vmax.f32 %v1640, 0.0
      %v1973 = vmax.f32 %v1831, 0.0
      %v1974 = vmax.f32 %v1833, 0.0
      %v1975 = vmax.f32 %v1644, 0.0
      %v1976 = vmax.f32 %v1646, 0.0
      %v1977 = vmax.f32 %v1837, 0.0
      %v1978 = vmax.f32 %v1839, 0.0
      %v1979 = vmax.f32 %v1648, 0.0
      %v1980 = vmax.f32 %v1650, 0.0
      %v1981 = vmax.f32 %v1841, 0.0
      %v1982 = vmax.f32 %v1843, 0.0
      %v1983 = vmax.f32 %v1654, 0.0
      %v1984 = vmax.f32 %v1656, 0.0
      %v1985 = vmax.f32 %v1847, 0.0
      %v1986 = vmax.f32 %v1849, 0.0
      %v1987 = vmax.f32 %v1658, 0.0
      %v1988 = vmax.f32 %v1660, 0.0
      %v1989 = vmax.f32 %v1851, 0.0
      %v1990 = vmax.f32 %v1853, 0.0
      %v1991 = vmax.f32 %v1664, 0.0
      %v1992 = vmax.f32 %v1666, 0.0
      %v1993 = vmax.f32 %v1857, 0.0
      %v1994 = vmax.f32 %v1859, 0.0
      %v1995 = vmax.f32 %v1668, 0.0
      %v1996 = vmax.f32 %v1670, 0.0
      %v1997 = vmax.f32 %v1861, 0.0
      %v1998 = vmax.f32 %v1863, 0.0
      %v1999 = vmax.f32 %v1674, 0.0
      %v2000 = vmax.f32 %v1676, 0.0
      %v2001 = vmax.f32 %v1867, 0.0
      %v2002 = vmax.f32 %v1869, 0.0
      %v2003 = vmax.f32 %v1678, 0.0
      %v2004 = vmax.f32 %v1680, 0.0
      %v2005 = vmax.f32 %v1871, 0.0
      %v2006 = vmax.f32 %v1873, 0.0
      %v2007 = vmax.f32 %v1684, 0.0
      %v2008 = vmax.f32 %v1686, 0.0
      %v2009 = vmax.f32 %v1877, 0.0
      %v2010 = vmax.f32 %v1879, 0.0
      %v2011 = vmax.f32 %v1688, 0.0
      %v2012 = vmax.f32 %v1690, 0.0
      %v2013 = vmax.f32 %v1881, 0.0
      %v2014 = vmax.f32 %v1883, 0.0
      %v2015 = vmax.f32 %v1694, 0.0
      %v2016 = vmax.f32 %v1696, 0.0
      %v2017 = vmax.f32 %v1887, 0.0
      %v2018 = vmax.f32 %v1889, 0.0
      %v2019 = vmax.f32 %v1698, 0.0
      %v2020 = vmax.f32 %v1700, 0.0
      %v2021 = vmax.f32 %v1891, 0.0
      %v2022 = vmax.f32 %v1893, 0.0
      %v2023 = vld [vmem:[%s7] sm:$0xff]
      %v2024 = vld [vmem:[%s7 + $0x8] sm:$0xff]
      %v2025 = vld [vmem:[%s7 + $0x10] sm:$0xff]
      %v2026 = vld [vmem:[%s7 + $0x18] sm:$0xff]
      %v2027 = vld [vmem:[%s7 + $0x20] sm:$0xff]
      %v2028 = vld [vmem:[%s7 + $0x28] sm:$0xff]
      %v2029 = vld [vmem:[%s7 + $0x30] sm:$0xff]
      %v2030 = vld [vmem:[%s7 + $0x38] sm:$0xff]
      %v2031 = vld [vmem:[%s7 + $0x40] sm:$0xff]
      %v2032 = vld [vmem:[%s7 + $0x48] sm:$0xff]
      %v2033 = vld [vmem:[%s7 + $0x50] sm:$0xff]
      %v2034 = vld [vmem:[%s7 + $0x58] sm:$0xff]
      %v2035 = vld [vmem:[%s7 + $0x60] sm:$0xff]
      %v2036 = vld [vmem:[%s7 + $0x68] sm:$0xff]
      %v2037 = vld [vmem:[%s7 + $0x70] sm:$0xff]
      %v2038 = vld [vmem:[%s7 + $0x78] sm:$0xff]
      %v2039 = vld [vmem:[%s7 + $0x80] sm:$0xff]
      %v2040 = vld [vmem:[%s7 + $0x88] sm:$0xff]
      %v2041 = vld [vmem:[%s7 + $0x90] sm:$0xff]
      %v2042 = vld [vmem:[%s7 + $0x98] sm:$0xff]
      %v2043 = vld [vmem:[%s7 + $0xa0] sm:$0xff]
      %v2044 = vld [vmem:[%s7 + $0xa8] sm:$0xff]
      %v2045 = vld [vmem:[%s7 + $0xb0] sm:$0xff]
      %v2046 = vld [vmem:[%s7 + $0xb8] sm:$0xff]
      %v2047 = vld [vmem:[%s7 + $0xc0] sm:$0xff]
      %v2048 = vld [vmem:[%s7 + $0xc8] sm:$0xff]
      %v2049 = vld [vmem:[%s7 + $0xd0] sm:$0xff]
      %v2050 = vld [vmem:[%s7 + $0xd8] sm:$0xff]
      %v2051 = vld [vmem:[%s7 + $0xe0] sm:$0xff]
      %v2052 = vld [vmem:[%s7 + $0xe8] sm:$0xff]
      %v2053 = vld [vmem:[%s7 + $0xf0] sm:$0xff]
      %v2054 = vld [vmem:[%s7 + $0xf8] sm:$0xff]
      %v2055 = vpack.c.bf16 %v1899, %v1895
      %v2056 = vpack.c.bf16 %v1900, %v1896
      %v2057 = vpack.c.bf16 %v1901, %v1897
      %v2058 = vpack.c.bf16 %v1902, %v1898
      %v2059 = vpack.c.bf16 %v1907, %v1903
      %v2060 = vpack.c.bf16 %v1908, %v1904
      %v2061 = vpack.c.bf16 %v1909, %v1905
      %v2062 = vpack.c.bf16 %v1910, %v1906
      %v2063 = vpack.c.bf16 %v1915, %v1911
      %v2064 = vpack.c.bf16 %v1916, %v1912
      %v2065 = vpack.c.bf16 %v1917, %v1913
      %v2066 = vpack.c.bf16 %v1918, %v1914
      %v2067 = vpack.c.bf16 %v1923, %v1919
      %v2068 = vpack.c.bf16 %v1924, %v1920
      %v2069 = vpack.c.bf16 %v1925, %v1921
      %v2070 = vpack.c.bf16 %v1926, %v1922
      %v2071 = vpack.c.bf16 %v1931, %v1927
      %v2072 = vpack.c.bf16 %v1932, %v1928
      %v2073 = vpack.c.bf16 %v1933, %v1929
      %v2074 = vpack.c.bf16 %v1934, %v1930
      %v2075 = vpack.c.bf16 %v1939, %v1935
      %v2076 = vpack.c.bf16 %v1940, %v1936
      %v2077 = vpack.c.bf16 %v1941, %v1937
      %v2078 = vpack.c.bf16 %v1942, %v1938
      %v2079 = vpack.c.bf16 %v1947, %v1943
      %v2080 = vpack.c.bf16 %v1948, %v1944
      %v2081 = vpack.c.bf16 %v1949, %v1945
      %v2082 = vpack.c.bf16 %v1950, %v1946
      %v2083 = vpack.c.bf16 %v1955, %v1951
      %v2084 = vpack.c.bf16 %v1956, %v1952
      %v2085 = vpack.c.bf16 %v1957, %v1953
      %v2086 = vpack.c.bf16 %v1958, %v1954
      %v2087 = vpack.c.bf16 %v1963, %v1959
      %v2088 = vpack.c.bf16 %v1964, %v1960
      %v2089 = vpack.c.bf16 %v1965, %v1961
      %v2090 = vpack.c.bf16 %v1966, %v1962
      %v2091 = vpack.c.bf16 %v1971, %v1967
      %v2092 = vpack.c.bf16 %v1972, %v1968
      %v2093 = vpack.c.bf16 %v1973, %v1969
      %v2094 = vpack.c.bf16 %v1974, %v1970
      %v2095 = vpack.c.bf16 %v1979, %v1975
      %v2096 = vpack.c.bf16 %v1980, %v1976
      %v2097 = vpack.c.bf16 %v1981, %v1977
      %v2098 = vpack.c.bf16 %v1982, %v1978
      %v2099 = vpack.c.bf16 %v1987, %v1983
      %v2100 = vpack.c.bf16 %v1988, %v1984
      %v2101 = vpack.c.bf16 %v1989, %v1985
      %v2102 = vpack.c.bf16 %v1990, %v1986
      %v2103 = vpack.c.bf16 %v1995, %v1991
      %v2104 = vpack.c.bf16 %v1996, %v1992
      %v2105 = vpack.c.bf16 %v1997, %v1993
      %v2106 = vpack.c.bf16 %v1998, %v1994
      %v2107 = vpack.c.bf16 %v2003, %v1999
      %v2108 = vpack.c.bf16 %v2004, %v2000
      %v2109 = vpack.c.bf16 %v2005, %v2001
      %v2110 = vpack.c.bf16 %v2006, %v2002
      %v2111 = vpack.c.bf16 %v2011, %v2007
      %v2112 = vpack.c.bf16 %v2012, %v2008
      %v2113 = vpack.c.bf16 %v2013, %v2009
      %v2114 = vpack.c.bf16 %v2014, %v2010
      %v2115 = vpack.c.bf16 %v2019, %v2015
      %v2116 = vpack.c.bf16 %v2020, %v2016
      %v2117 = vpack.c.bf16 %v2021, %v2017
      %v2118 = vpack.c.bf16 %v2022, %v2018
      %v2119 = vld [vmem:[%s8] sm:$0xff]
      %v2120 = vld [vmem:[%s8 + $0x8] sm:$0xff]
      %v2121 = vld [vmem:[%s8 + $0x10] sm:$0xff]
      %v2122 = vld [vmem:[%s8 + $0x18] sm:$0xff]
      %v2123 = vld [vmem:[%s8 + $0x20] sm:$0xff]
      %v2124 = vld [vmem:[%s8 + $0x28] sm:$0xff]
      %v2125 = vld [vmem:[%s8 + $0x30] sm:$0xff]
      %v2126 = vld [vmem:[%s8 + $0x38] sm:$0xff]
      %v2127 = vld [vmem:[%s8 + $0x40] sm:$0xff]
      %v2128 = vld [vmem:[%s8 + $0x48] sm:$0xff]
      %v2129 = vld [vmem:[%s8 + $0x50] sm:$0xff]
      %v2130 = vld [vmem:[%s8 + $0x58] sm:$0xff]
      %v2131 = vld [vmem:[%s8 + $0x60] sm:$0xff]
      %v2132 = vld [vmem:[%s8 + $0x68] sm:$0xff]
      %v2133 = vld [vmem:[%s8 + $0x70] sm:$0xff]
      %v2134 = vld [vmem:[%s8 + $0x78] sm:$0xff]
      %v2135 = vld [vmem:[%s8 + $0x80] sm:$0xff]
      %v2136 = vld [vmem:[%s8 + $0x88] sm:$0xff]
      %v2137 = vld [vmem:[%s8 + $0x90] sm:$0xff]
      %v2138 = vld [vmem:[%s8 + $0x98] sm:$0xff]
      %v2139 = vld [vmem:[%s8 + $0xa0] sm:$0xff]
      %v2140 = vld [vmem:[%s8 + $0xa8] sm:$0xff]
      %v2141 = vld [vmem:[%s8 + $0xb0] sm:$0xff]
      %v2142 = vld [vmem:[%s8 + $0xb8] sm:$0xff]
      %v2143 = vld [vmem:[%s8 + $0xc0] sm:$0xff]
      %v2144 = vld [vmem:[%s8 + $0xc8] sm:$0xff]
      %v2145 = vld [vmem:[%s8 + $0xd0] sm:$0xff]
      %v2146 = vld [vmem:[%s8 + $0xd8] sm:$0xff]
      %v2147 = vld [vmem:[%s8 + $0xe0] sm:$0xff]
      %v2148 = vld [vmem:[%s8 + $0xe8] sm:$0xff]
      %v2149 = vld [vmem:[%s8 + $0xf0] sm:$0xff]
      %v2150 = vld [vmem:[%s8 + $0xf8] sm:$0xff]
      %2152 = vset.pattern.permute.xlu0 0
      %2153 = vperm.xlu0 %2152, %v2119
      %v2154 = vpop.permute.xlu0 %2153
      %2157 = vset.pattern.permute.xlu0 0
      %2158 = vperm.xlu0 %2157, %v2120
      %v2159 = vpop.permute.xlu0 %2158
      %2162 = vset.pattern.permute.xlu0 0
      %2163 = vperm.xlu0 %2162, %v2121
      %v2164 = vpop.permute.xlu0 %2163
      %2167 = vset.pattern.permute.xlu0 0
      %2168 = vperm.xlu0 %2167, %v2122
      %v2169 = vpop.permute.xlu0 %2168
      %2172 = vset.pattern.permute.xlu0 0
      %2173 = vperm.xlu0 %2172, %v2123
      %v2174 = vpop.permute.xlu0 %2173
      %2177 = vset.pattern.permute.xlu0 0
      %2178 = vperm.xlu0 %2177, %v2124
      %v2179 = vpop.permute.xlu0 %2178
      %2182 = vset.pattern.permute.xlu0 0
      %2183 = vperm.xlu0 %2182, %v2125
      %v2184 = vpop.permute.xlu0 %2183
      %2187 = vset.pattern.permute.xlu0 0
      %2188 = vperm.xlu0 %2187, %v2126
      %v2189 = vpop.permute.xlu0 %2188
      %2192 = vset.pattern.permute.xlu0 0
      %2193 = vperm.xlu0 %2192, %v2127
      %v2194 = vpop.permute.xlu0 %2193
      %2197 = vset.pattern.permute.xlu0 0
      %2198 = vperm.xlu0 %2197, %v2128
      %v2199 = vpop.permute.xlu0 %2198
      %2202 = vset.pattern.permute.xlu0 0
      %2203 = vperm.xlu0 %2202, %v2129
      %v2204 = vpop.permute.xlu0 %2203
      %2207 = vset.pattern.permute.xlu0 0
      %2208 = vperm.xlu0 %2207, %v2130
      %v2209 = vpop.permute.xlu0 %2208
      %2212 = vset.pattern.permute.xlu0 0
      %2213 = vperm.xlu0 %2212, %v2131
      %v2214 = vpop.permute.xlu0 %2213
      %2217 = vset.pattern.permute.xlu0 0
      %2218 = vperm.xlu0 %2217, %v2132
      %v2219 = vpop.permute.xlu0 %2218
      %2222 = vset.pattern.permute.xlu0 0
      %2223 = vperm.xlu0 %2222, %v2133
      %v2224 = vpop.permute.xlu0 %2223
      %2227 = vset.pattern.permute.xlu0 0
      %2228 = vperm.xlu0 %2227, %v2134
      %v2229 = vpop.permute.xlu0 %2228
      %2232 = vset.pattern.permute.xlu0 0
      %2233 = vperm.xlu0 %2232, %v2135
      %v2234 = vpop.permute.xlu0 %2233
      %2237 = vset.pattern.permute.xlu0 0
      %2238 = vperm.xlu0 %2237, %v2136
      %v2239 = vpop.permute.xlu0 %2238
      %2242 = vset.pattern.permute.xlu0 0
      %2243 = vperm.xlu0 %2242, %v2137
      %v2244 = vpop.permute.xlu0 %2243
      %2247 = vset.pattern.permute.xlu0 0
      %2248 = vperm.xlu0 %2247, %v2138
      %v2249 = vpop.permute.xlu0 %2248
      %2252 = vset.pattern.permute.xlu0 0
      %2253 = vperm.xlu0 %2252, %v2139
      %v2254 = vpop.permute.xlu0 %2253
      %2257 = vset.pattern.permute.xlu0 0
      %2258 = vperm.xlu0 %2257, %v2140
      %v2259 = vpop.permute.xlu0 %2258
      %2262 = vset.pattern.permute.xlu0 0
      %2263 = vperm.xlu0 %2262, %v2141
      %v2264 = vpop.permute.xlu0 %2263
      %2267 = vset.pattern.permute.xlu0 0
      %2268 = vperm.xlu0 %2267, %v2142
      %v2269 = vpop.permute.xlu0 %2268
      %2272 = vset.pattern.permute.xlu0 0
      %2273 = vperm.xlu0 %2272, %v2143
      %v2274 = vpop.permute.xlu0 %2273
      %2277 = vset.pattern.permute.xlu0 0
      %2278 = vperm.xlu0 %2277, %v2144
      %v2279 = vpop.permute.xlu0 %2278
      %2282 = vset.pattern.permute.xlu0 0
      %2283 = vperm.xlu0 %2282, %v2145
      %v2284 = vpop.permute.xlu0 %2283
      %2287 = vset.pattern.permute.xlu0 0
      %2288 = vperm.xlu0 %2287, %v2146
      %v2289 = vpop.permute.xlu0 %2288
      %2292 = vset.pattern.permute.xlu0 0
      %2293 = vperm.xlu0 %2292, %v2147
      %v2294 = vpop.permute.xlu0 %2293
      %2297 = vset.pattern.permute.xlu0 0
      %2298 = vperm.xlu0 %2297, %v2148
      %v2299 = vpop.permute.xlu0 %2298
      %2302 = vset.pattern.permute.xlu0 0
      %2303 = vperm.xlu0 %2302, %v2149
      %v2304 = vpop.permute.xlu0 %2303
      %2307 = vset.pattern.permute.xlu0 0
      %2308 = vperm.xlu0 %2307, %v2150
      %v2309 = vpop.permute.xlu0 %2308
      %v2343 = vunpack.c.l.b16 %v2023
      %v2344 = vunpack.c.h.b16 %v2023
      %v2345 = vunpack.c.l.b16 %v2024
      %v2346 = vunpack.c.h.b16 %v2024
      %v2347 = vunpack.c.l.b16 %v2025
      %v2348 = vunpack.c.h.b16 %v2025
      %v2349 = vunpack.c.l.b16 %v2026
      %v2350 = vunpack.c.h.b16 %v2026
      %v2351 = vunpack.c.l.b16 %v2027
      %v2352 = vunpack.c.h.b16 %v2027
      %v2353 = vunpack.c.l.b16 %v2028
      %v2354 = vunpack.c.h.b16 %v2028
      %v2355 = vunpack.c.l.b16 %v2029
      %v2356 = vunpack.c.h.b16 %v2029
      %v2357 = vunpack.c.l.b16 %v2030
      %v2358 = vunpack.c.h.b16 %v2030
      %v2359 = vunpack.c.l.b16 %v2031
      %v2360 = vunpack.c.h.b16 %v2031
      %v2361 = vunpack.c.l.b16 %v2032
      %v2362 = vunpack.c.h.b16 %v2032
      %v2363 = vunpack.c.l.b16 %v2033
      %v2364 = vunpack.c.h.b16 %v2033
      %v2365 = vunpack.c.l.b16 %v2034
      %v2366 = vunpack.c.h.b16 %v2034
      %v2367 = vunpack.c.l.b16 %v2035
      %v2368 = vunpack.c.h.b16 %v2035
      %v2369 = vunpack.c.l.b16 %v2036
      %v2370 = vunpack.c.h.b16 %v2036
      %v2371 = vunpack.c.l.b16 %v2037
      %v2372 = vunpack.c.h.b16 %v2037
      %v2373 = vunpack.c.l.b16 %v2038
      %v2374 = vunpack.c.h.b16 %v2038
      %v2375 = vunpack.c.l.b16 %v2039
      %v2376 = vunpack.c.h.b16 %v2039
      %v2377 = vunpack.c.l.b16 %v2040
      %v2378 = vunpack.c.h.b16 %v2040
      %v2379 = vunpack.c.l.b16 %v2041
      %v2380 = vunpack.c.h.b16 %v2041
      %v2381 = vunpack.c.l.b16 %v2042
      %v2382 = vunpack.c.h.b16 %v2042
      %v2383 = vunpack.c.l.b16 %v2043
      %v2384 = vunpack.c.h.b16 %v2043
      %v2385 = vunpack.c.l.b16 %v2044
      %v2386 = vunpack.c.h.b16 %v2044
      %v2387 = vunpack.c.l.b16 %v2045
      %v2388 = vunpack.c.h.b16 %v2045
      %v2389 = vunpack.c.l.b16 %v2046
      %v2390 = vunpack.c.h.b16 %v2046
      %v2391 = vunpack.c.l.b16 %v2047
      %v2392 = vunpack.c.h.b16 %v2047
      %v2393 = vunpack.c.l.b16 %v2048
      %v2394 = vunpack.c.h.b16 %v2048
      %v2395 = vunpack.c.l.b16 %v2049
      %v2396 = vunpack.c.h.b16 %v2049
      %v2397 = vunpack.c.l.b16 %v2050
      %v2398 = vunpack.c.h.b16 %v2050
      %v2399 = vunpack.c.l.b16 %v2051
      %v2400 = vunpack.c.h.b16 %v2051
      %v2401 = vunpack.c.l.b16 %v2052
      %v2402 = vunpack.c.h.b16 %v2052
      %v2403 = vunpack.c.l.b16 %v2053
      %v2404 = vunpack.c.h.b16 %v2053
      %v2405 = vunpack.c.l.b16 %v2054
      %v2406 = vunpack.c.h.b16 %v2054
      %v2407 = vpack.c.b16 %v2345, %v2343
      %v2408 = vpack.c.b16 %v2346, %v2344
      %v2409 = vpack.c.b16 %v2349, %v2347
      %v2410 = vpack.c.b16 %v2350, %v2348
      %v2411 = vpack.c.b16 %v2353, %v2351
      %v2412 = vpack.c.b16 %v2354, %v2352
      %v2413 = vpack.c.b16 %v2357, %v2355
      %v2414 = vpack.c.b16 %v2358, %v2356
      %v2415 = vpack.c.b16 %v2361, %v2359
      %v2416 = vpack.c.b16 %v2362, %v2360
      %v2417 = vpack.c.b16 %v2365, %v2363
      %v2418 = vpack.c.b16 %v2366, %v2364
      %v2419 = vpack.c.b16 %v2369, %v2367
      %v2420 = vpack.c.b16 %v2370, %v2368
      %v2421 = vpack.c.b16 %v2373, %v2371
      %v2422 = vpack.c.b16 %v2374, %v2372
      %v2423 = vpack.c.b16 %v2377, %v2375
      %v2424 = vpack.c.b16 %v2378, %v2376
      %v2425 = vpack.c.b16 %v2381, %v2379
      %v2426 = vpack.c.b16 %v2382, %v2380
      %v2427 = vpack.c.b16 %v2385, %v2383
      %v2428 = vpack.c.b16 %v2386, %v2384
      %v2429 = vpack.c.b16 %v2389, %v2387
      %v2430 = vpack.c.b16 %v2390, %v2388
      %v2431 = vpack.c.b16 %v2393, %v2391
      %v2432 = vpack.c.b16 %v2394, %v2392
      %v2433 = vpack.c.b16 %v2397, %v2395
      %v2434 = vpack.c.b16 %v2398, %v2396
      %v2435 = vpack.c.b16 %v2401, %v2399
      %v2436 = vpack.c.b16 %v2402, %v2400
      %v2437 = vpack.c.b16 %v2405, %v2403
      %v2438 = vpack.c.b16 %v2406, %v2404
      %2471 = vmatprep.subr.bf16.mxu0 %v2056
      %2472 = vmatpush1.bf16.msra.mxu0 %v2055
      %2473 = vmatprep.subr.bf16.mxu0 %v2060
      %2474 = vmatpush1.bf16.msra.mxu0 %v2059
      %2475 = vmatprep.subr.bf16.mxu0 %v2064
      %2476 = vmatpush1.bf16.msra.mxu0 %v2063
      %2477 = vmatprep.subr.bf16.mxu0 %v2068
      %2478 = vmatpush1.bf16.msra.mxu0 %v2067
      %2479 = vmatprep.subr.bf16.mxu0 %v2072
      %2480 = vmatpush1.bf16.msra.mxu0 %v2071
      %2481 = vmatprep.subr.bf16.mxu0 %v2076
      %2482 = vmatpush1.bf16.msra.mxu0 %v2075
      %2483 = vmatprep.subr.bf16.mxu0 %v2080
      %2484 = vmatpush1.bf16.msra.mxu0 %v2079
      %2485 = vmatprep.subr.bf16.mxu0 %v2084
      %2486 = vmatpush1.bf16.msra.mxu0 %v2083
      %2487 = vmatprep.subr.bf16.mxu0 %v2088
      %2488 = vmatpush1.bf16.msra.mxu0 %v2087
      %2489 = vmatprep.subr.bf16.mxu0 %v2092
      %2490 = vmatpush1.bf16.msra.mxu0 %v2091
      %2491 = vmatprep.subr.bf16.mxu0 %v2096
      %2492 = vmatpush1.bf16.msra.mxu0 %v2095
      %2493 = vmatprep.subr.bf16.mxu0 %v2100
      %2494 = vmatpush1.bf16.msra.mxu0 %v2099
      %2495 = vmatprep.subr.bf16.mxu0 %v2104
      %2496 = vmatpush1.bf16.msra.mxu0 %v2103
      %2497 = vmatprep.subr.bf16.mxu0 %v2108
      %2498 = vmatpush1.bf16.msra.mxu0 %v2107
      %2499 = vmatprep.subr.bf16.mxu0 %v2112
      %2500 = vmatpush1.bf16.msra.mxu0 %v2111
      %2501 = vmatprep.subr.bf16.mxu0 %v2116
      %2502 = vmatpush1.bf16.msra.mxu0 %v2115
      %2503 = vmatprep.mubr.bf16.mxu0 %v2408
      %2504 = vmatmul.mubr.bf16.gmra.mrb[0].mxu0 %v2407
      %v2505 = vpop.f32.mrb[0].mxu0
      %v2506 = vadd.f32 %v2154, %v2505
      %v2507 = vpop.f32.mrb[0].mxu0
      %v2508 = vadd.f32 %v2154, %v2507
      %v2509 = vpop.f32.mrb[0].mxu0
      %v2510 = vadd.f32 %v2159, %v2509
      %v2511 = vpop.f32.mrb[0].mxu0
      %v2512 = vadd.f32 %v2159, %v2511
      %2513 = vmatprep.mubr.bf16.mxu0 %v2410
      %2514 = vmatmul.mubr.bf16.gmra.mrb[0].mxu0 %v2409
      %v2515 = vpop.f32.mrb[0].mxu0
      %v2516 = vadd.f32 %v2164, %v2515
      %v2517 = vpop.f32.mrb[0].mxu0
      %v2518 = vadd.f32 %v2164, %v2517
      %v2519 = vpop.f32.mrb[0].mxu0
      %v2520 = vadd.f32 %v2169, %v2519
      %v2521 = vpop.f32.mrb[0].mxu0
      %v2522 = vadd.f32 %v2169, %v2521
      %2523 = vmatprep.mubr.bf16.mxu0 %v2412
      %2524 = vmatmul.mubr.bf16.gmra.mrb[0].mxu0 %v2411
      %v2525 = vpop.f32.mrb[0].mxu0
      %v2526 = vadd.f32 %v2174, %v2525
      %v2527 = vpop.f32.mrb[0].mxu0
      %v2528 = vadd.f32 %v2174, %v2527
      %v2529 = vpop.f32.mrb[0].mxu0
      %v2530 = vadd.f32 %v2179, %v2529
      %v2531 = vpop.f32.mrb[0].mxu0
      %v2532 = vadd.f32 %v2179, %v2531
      %2533 = vmatprep.mubr.bf16.mxu0 %v2414
      %2534 = vmatmul.mubr.bf16.gmra.mrb[0].mxu0 %v2413
      %v2535 = vpop.f32.mrb[0].mxu0
      %v2536 = vadd.f32 %v2184, %v2535
      %v2537 = vpop.f32.mrb[0].mxu0
      %v2538 = vadd.f32 %v2184, %v2537
      %v2539 = vpop.f32.mrb[0].mxu0
      %v2540 = vadd.f32 %v2189, %v2539
      %v2541 = vpop.f32.mrb[0].mxu0
      %v2542 = vadd.f32 %v2189, %v2541
      %2543 = vmatprep.mubr.bf16.mxu0 %v2416
      %2544 = vmatmul.mubr.bf16.gmra.mrb[0].mxu0 %v2415
      %v2545 = vpop.f32.mrb[0].mxu0
      %v2546 = vadd.f32 %v2194, %v2545
      %v2547 = vpop.f32.mrb[0].mxu0
      %v2548 = vadd.f32 %v2194, %v2547
      %v2549 = vpop.f32.mrb[0].mxu0
      %v2550 = vadd.f32 %v2199, %v2549
      %v2551 = vpop.f32.mrb[0].mxu0
      %v2552 = vadd.f32 %v2199, %v2551
      %2553 = vmatprep.mubr.bf16.mxu0 %v2418
      %2554 = vmatmul.mubr.bf16.gmra.mrb[0].mxu0 %v2417
      %v2555 = vpop.f32.mrb[0].mxu0
      %v2556 = vadd.f32 %v2204, %v2555
      %v2557 = vpop.f32.mrb[0].mxu0
      %v2558 = vadd.f32 %v2204, %v2557
      %v2559 = vpop.f32.mrb[0].mxu0
      %v2560 = vadd.f32 %v2209, %v2559
      %v2561 = vpop.f32.mrb[0].mxu0
      %v2562 = vadd.f32 %v2209, %v2561
      %2563 = vmatprep.mubr.bf16.mxu0 %v2420
      %2564 = vmatmul.mubr.bf16.gmra.mrb[0].mxu0 %v2419
      %v2565 = vpop.f32.mrb[0].mxu0
      %v2566 = vadd.f32 %v2214, %v2565
      %v2567 = vpop.f32.mrb[0].mxu0
      %v2568 = vadd.f32 %v2214, %v2567
      %v2569 = vpop.f32.mrb[0].mxu0
      %v2570 = vadd.f32 %v2219, %v2569
      %v2571 = vpop.f32.mrb[0].mxu0
      %v2572 = vadd.f32 %v2219, %v2571
      %2573 = vmatprep.mubr.bf16.mxu0 %v2422
      %2574 = vmatmul.mubr.bf16.gmra.mrb[0].mxu0 %v2421
      %v2575 = vpop.f32.mrb[0].mxu0
      %v2576 = vadd.f32 %v2224, %v2575
      %v2577 = vpop.f32.mrb[0].mxu0
      %v2578 = vadd.f32 %v2224, %v2577
      %v2579 = vpop.f32.mrb[0].mxu0
      %v2580 = vadd.f32 %v2229, %v2579
      %v2581 = vpop.f32.mrb[0].mxu0
      %v2582 = vadd.f32 %v2229, %v2581
      %2583 = vmatprep.mubr.bf16.mxu0 %v2424
      %2584 = vmatmul.mubr.bf16.gmra.mrb[0].mxu0 %v2423
      %v2585 = vpop.f32.mrb[0].mxu0
      %v2586 = vadd.f32 %v2234, %v2585
      %v2587 = vpop.f32.mrb[0].mxu0
      %v2588 = vadd.f32 %v2234, %v2587
      %v2589 = vpop.f32.mrb[0].mxu0
      %v2590 = vadd.f32 %v2239, %v2589
      %v2591 = vpop.f32.mrb[0].mxu0
      %v2592 = vadd.f32 %v2239, %v2591
      %2593 = vmatprep.mubr.bf16.mxu0 %v2426
      %2594 = vmatmul.mubr.bf16.gmra.mrb[0].mxu0 %v2425
      %v2595 = vpop.f32.mrb[0].mxu0
      %v2596 = vadd.f32 %v2244, %v2595
      %v2597 = vpop.f32.mrb[0].mxu0
      %v2598 = vadd.f32 %v2244, %v2597
      %v2599 = vpop.f32.mrb[0].mxu0
      %v2600 = vadd.f32 %v2249, %v2599
      %v2601 = vpop.f32.mrb[0].mxu0
      %v2602 = vadd.f32 %v2249, %v2601
      %2603 = vmatprep.mubr.bf16.mxu0 %v2428
      %2604 = vmatmul.mubr.bf16.gmra.mrb[0].mxu0 %v2427
      %v2605 = vpop.f32.mrb[0].mxu0
      %v2606 = vadd.f32 %v2254, %v2605
      %v2607 = vpop.f32.mrb[0].mxu0
      %v2608 = vadd.f32 %v2254, %v2607
      %v2609 = vpop.f32.mrb[0].mxu0
      %v2610 = vadd.f32 %v2259, %v2609
      %v2611 = vpop.f32.mrb[0].mxu0
      %v2612 = vadd.f32 %v2259, %v2611
      %2613 = vmatprep.mubr.bf16.mxu0 %v2430
      %2614 = vmatmul.mubr.bf16.gmra.mrb[0].mxu0 %v2429
      %v2615 = vpop.f32.mrb[0].mxu0
      %v2616 = vadd.f32 %v2264, %v2615
      %v2617 = vpop.f32.mrb[0].mxu0
      %v2618 = vadd.f32 %v2264, %v2617
      %v2619 = vpop.f32.mrb[0].mxu0
      %v2620 = vadd.f32 %v2269, %v2619
      %v2621 = vpop.f32.mrb[0].mxu0
      %v2622 = vadd.f32 %v2269, %v2621
      %2623 = vmatprep.mubr.bf16.mxu0 %v2432
      %2624 = vmatmul.mubr.bf16.gmra.mrb[0].mxu0 %v2431
      %v2625 = vpop.f32.mrb[0].mxu0
      %v2626 = vadd.f32 %v2274, %v2625
      %v2627 = vpop.f32.mrb[0].mxu0
      %v2628 = vadd.f32 %v2274, %v2627
      %v2629 = vpop.f32.mrb[0].mxu0
      %v2630 = vadd.f32 %v2279, %v2629
      %v2631 = vpop.f32.mrb[0].mxu0
      %v2632 = vadd.f32 %v2279, %v2631
      %2633 = vmatprep.mubr.bf16.mxu0 %v2434
      %2634 = vmatmul.mubr.bf16.gmra.mrb[0].mxu0 %v2433
      %v2635 = vpop.f32.mrb[0].mxu0
      %v2636 = vadd.f32 %v2284, %v2635
      %v2637 = vpop.f32.mrb[0].mxu0
      %v2638 = vadd.f32 %v2284, %v2637
      %v2639 = vpop.f32.mrb[0].mxu0
      %v2640 = vadd.f32 %v2289, %v2639
      %v2641 = vpop.f32.mrb[0].mxu0
      %v2642 = vadd.f32 %v2289, %v2641
      %2643 = vmatprep.mubr.bf16.mxu0 %v2436
      %2644 = vmatmul.mubr.bf16.gmra.mrb[0].mxu0 %v2435
      %v2645 = vpop.f32.mrb[0].mxu0
      %v2646 = vadd.f32 %v2294, %v2645
      %v2647 = vpop.f32.mrb[0].mxu0
      %v2648 = vadd.f32 %v2294, %v2647
      %v2649 = vpop.f32.mrb[0].mxu0
      %v2650 = vadd.f32 %v2299, %v2649
      %v2651 = vpop.f32.mrb[0].mxu0
      %v2652 = vadd.f32 %v2299, %v2651
      %2653 = vmatprep.mubr.bf16.mxu0 %v2438
      %2654 = vmatmul.mubr.bf16.gmra.mrb[0].mxu0 %v2437
      %v2655 = vpop.f32.mrb[0].mxu0
      %v2656 = vadd.f32 %v2304, %v2655
      %v2657 = vpop.f32.mrb[0].mxu0
      %v2658 = vadd.f32 %v2304, %v2657
      %v2659 = vpop.f32.mrb[0].mxu0
      %v2660 = vadd.f32 %v2309, %v2659
      %v2661 = vpop.f32.mrb[0].mxu0
      %v2662 = vadd.f32 %v2309, %v2661
      %2663 = vdwg.mxu0
      %2664 = vmatprep.subr.bf16.mxu0 %v2058
      %2665 = vmatpush1.bf16.msra.mxu0 %v2057
      %2666 = vmatprep.subr.bf16.mxu0 %v2062
      %2667 = vmatpush1.bf16.msra.mxu0 %v2061
      %2668 = vmatprep.subr.bf16.mxu0 %v2066
      %2669 = vmatpush1.bf16.msra.mxu0 %v2065
      %2670 = vmatprep.subr.bf16.mxu0 %v2070
      %2671 = vmatpush1.bf16.msra.mxu0 %v2069
      %2672 = vmatprep.subr.bf16.mxu0 %v2074
      %2673 = vmatpush1.bf16.msra.mxu0 %v2073
      %2674 = vmatprep.subr.bf16.mxu0 %v2078
      %2675 = vmatpush1.bf16.msra.mxu0 %v2077
      %2676 = vmatprep.subr.bf16.mxu0 %v2082
      %2677 = vmatpush1.bf16.msra.mxu0 %v2081
      %2678 = vmatprep.subr.bf16.mxu0 %v2086
      %2679 = vmatpush1.bf16.msra.mxu0 %v2085
      %2680 = vmatprep.subr.bf16.mxu0 %v2090
      %2681 = vmatpush1.bf16.msra.mxu0 %v2089
      %2682 = vmatprep.subr.bf16.mxu0 %v2094
      %2683 = vmatpush1.bf16.msra.mxu0 %v2093
      %2684 = vmatprep.subr.bf16.mxu0 %v2098
      %2685 = vmatpush1.bf16.msra.mxu0 %v2097
      %2686 = vmatprep.subr.bf16.mxu0 %v2102
      %2687 = vmatpush1.bf16.msra.mxu0 %v2101
      %2688 = vmatprep.subr.bf16.mxu0 %v2106
      %2689 = vmatpush1.bf16.msra.mxu0 %v2105
      %2690 = vmatprep.subr.bf16.mxu0 %v2110
      %2691 = vmatpush1.bf16.msra.mxu0 %v2109
      %2692 = vmatprep.subr.bf16.mxu0 %v2114
      %2693 = vmatpush1.bf16.msra.mxu0 %v2113
      %2694 = vmatprep.subr.bf16.mxu0 %v2118
      %2695 = vmatpush1.bf16.msra.mxu0 %v2117
      %2696 = vmatprep.mubr.bf16.mxu0 %v2408
      %2697 = vmatmul.mubr.bf16.gmra.mrb[0].mxu0 %v2407
      %v2698 = vpop.f32.mrb[0].mxu0
      %v2699 = vadd.f32 %v2154, %v2698
      %v2700 = vpop.f32.mrb[0].mxu0
      %v2701 = vadd.f32 %v2154, %v2700
      %v2702 = vpop.f32.mrb[0].mxu0
      %v2703 = vadd.f32 %v2159, %v2702
      %v2704 = vpop.f32.mrb[0].mxu0
      %v2705 = vadd.f32 %v2159, %v2704
      %2706 = vmatprep.mubr.bf16.mxu0 %v2410
      %2707 = vmatmul.mubr.bf16.gmra.mrb[0].mxu0 %v2409
      %v2708 = vpop.f32.mrb[0].mxu0
      %v2709 = vadd.f32 %v2164, %v2708
      %v2710 = vpop.f32.mrb[0].mxu0
      %v2711 = vadd.f32 %v2164, %v2710
      %v2712 = vpop.f32.mrb[0].mxu0
      %v2713 = vadd.f32 %v2169, %v2712
      %v2714 = vpop.f32.mrb[0].mxu0
      %v2715 = vadd.f32 %v2169, %v2714
      %2716 = vmatprep.mubr.bf16.mxu0 %v2412
      %2717 = vmatmul.mubr.bf16.gmra.mrb[0].mxu0 %v2411
      %v2718 = vpop.f32.mrb[0].mxu0
      %v2719 = vadd.f32 %v2174, %v2718
      %v2720 = vpop.f32.mrb[0].mxu0
      %v2721 = vadd.f32 %v2174, %v2720
      %v2722 = vpop.f32.mrb[0].mxu0
      %v2723 = vadd.f32 %v2179, %v2722
      %v2724 = vpop.f32.mrb[0].mxu0
      %v2725 = vadd.f32 %v2179, %v2724
      %2726 = vmatprep.mubr.bf16.mxu0 %v2414
      %2727 = vmatmul.mubr.bf16.gmra.mrb[0].mxu0 %v2413
      %v2728 = vpop.f32.mrb[0].mxu0
      %v2729 = vadd.f32 %v2184, %v2728
      %v2730 = vpop.f32.mrb[0].mxu0
      %v2731 = vadd.f32 %v2184, %v2730
      %v2732 = vpop.f32.mrb[0].mxu0
      %v2733 = vadd.f32 %v2189, %v2732
      %v2734 = vpop.f32.mrb[0].mxu0
      %v2735 = vadd.f32 %v2189, %v2734
      %2736 = vmatprep.mubr.bf16.mxu0 %v2416
      %2737 = vmatmul.mubr.bf16.gmra.mrb[0].mxu0 %v2415
      %v2738 = vpop.f32.mrb[0].mxu0
      %v2739 = vadd.f32 %v2194, %v2738
      %v2740 = vpop.f32.mrb[0].mxu0
      %v2741 = vadd.f32 %v2194, %v2740
      %v2742 = vpop.f32.mrb[0].mxu0
      %v2743 = vadd.f32 %v2199, %v2742
      %v2744 = vpop.f32.mrb[0].mxu0
      %v2745 = vadd.f32 %v2199, %v2744
      %2746 = vmatprep.mubr.bf16.mxu0 %v2418
      %2747 = vmatmul.mubr.bf16.gmra.mrb[0].mxu0 %v2417
      %v2748 = vpop.f32.mrb[0].mxu0
      %v2749 = vadd.f32 %v2204, %v2748
      %v2750 = vpop.f32.mrb[0].mxu0
      %v2751 = vadd.f32 %v2204, %v2750
      %v2752 = vpop.f32.mrb[0].mxu0
      %v2753 = vadd.f32 %v2209, %v2752
      %v2754 = vpop.f32.mrb[0].mxu0
      %v2755 = vadd.f32 %v2209, %v2754
      %2756 = vmatprep.mubr.bf16.mxu0 %v2420
      %2757 = vmatmul.mubr.bf16.gmra.mrb[0].mxu0 %v2419
      %v2758 = vpop.f32.mrb[0].mxu0
      %v2759 = vadd.f32 %v2214, %v2758
      %v2760 = vpop.f32.mrb[0].mxu0
      %v2761 = vadd.f32 %v2214, %v2760
      %v2762 = vpop.f32.mrb[0].mxu0
      %v2763 = vadd.f32 %v2219, %v2762
      %v2764 = vpop.f32.mrb[0].mxu0
      %v2765 = vadd.f32 %v2219, %v2764
      %2766 = vmatprep.mubr.bf16.mxu0 %v2422
      %2767 = vmatmul.mubr.bf16.gmra.mrb[0].mxu0 %v2421
      %v2768 = vpop.f32.mrb[0].mxu0
      %v2769 = vadd.f32 %v2224, %v2768
      %v2770 = vpop.f32.mrb[0].mxu0
      %v2771 = vadd.f32 %v2224, %v2770
      %v2772 = vpop.f32.mrb[0].mxu0
      %v2773 = vadd.f32 %v2229, %v2772
      %v2774 = vpop.f32.mrb[0].mxu0
      %v2775 = vadd.f32 %v2229, %v2774
      %2776 = vmatprep.mubr.bf16.mxu0 %v2424
      %2777 = vmatmul.mubr.bf16.gmra.mrb[0].mxu0 %v2423
      %v2778 = vpop.f32.mrb[0].mxu0
      %v2779 = vadd.f32 %v2234, %v2778
      %v2780 = vpop.f32.mrb[0].mxu0
      %v2781 = vadd.f32 %v2234, %v2780
      %v2782 = vpop.f32.mrb[0].mxu0
      %v2783 = vadd.f32 %v2239, %v2782
      %v2784 = vpop.f32.mrb[0].mxu0
      %v2785 = vadd.f32 %v2239, %v2784
      %2786 = vmatprep.mubr.bf16.mxu0 %v2426
      %2787 = vmatmul.mubr.bf16.gmra.mrb[0].mxu0 %v2425
      %v2788 = vpop.f32.mrb[0].mxu0
      %v2789 = vadd.f32 %v2244, %v2788
      %v2790 = vpop.f32.mrb[0].mxu0
      %v2791 = vadd.f32 %v2244, %v2790
      %v2792 = vpop.f32.mrb[0].mxu0
      %v2793 = vadd.f32 %v2249, %v2792
      %v2794 = vpop.f32.mrb[0].mxu0
      %v2795 = vadd.f32 %v2249, %v2794
      %2796 = vmatprep.mubr.bf16.mxu0 %v2428
      %2797 = vmatmul.mubr.bf16.gmra.mrb[0].mxu0 %v2427
      %v2798 = vpop.f32.mrb[0].mxu0
      %v2799 = vadd.f32 %v2254, %v2798
      %v2800 = vpop.f32.mrb[0].mxu0
      %v2801 = vadd.f32 %v2254, %v2800
      %v2802 = vpop.f32.mrb[0].mxu0
      %v2803 = vadd.f32 %v2259, %v2802
      %v2804 = vpop.f32.mrb[0].mxu0
      %v2805 = vadd.f32 %v2259, %v2804
      %2806 = vmatprep.mubr.bf16.mxu0 %v2430
      %2807 = vmatmul.mubr.bf16.gmra.mrb[0].mxu0 %v2429
      %v2808 = vpop.f32.mrb[0].mxu0
      %v2809 = vadd.f32 %v2264, %v2808
      %v2810 = vpop.f32.mrb[0].mxu0
      %v2811 = vadd.f32 %v2264, %v2810
      %v2812 = vpop.f32.mrb[0].mxu0
      %v2813 = vadd.f32 %v2269, %v2812
      %v2814 = vpop.f32.mrb[0].mxu0
      %v2815 = vadd.f32 %v2269, %v2814
      %2816 = vmatprep.mubr.bf16.mxu0 %v2432
      %2817 = vmatmul.mubr.bf16.gmra.mrb[0].mxu0 %v2431
      %v2818 = vpop.f32.mrb[0].mxu0
      %v2819 = vadd.f32 %v2274, %v2818
      %v2820 = vpop.f32.mrb[0].mxu0
      %v2821 = vadd.f32 %v2274, %v2820
      %v2822 = vpop.f32.mrb[0].mxu0
      %v2823 = vadd.f32 %v2279, %v2822
      %v2824 = vpop.f32.mrb[0].mxu0
      %v2825 = vadd.f32 %v2279, %v2824
      %2826 = vmatprep.mubr.bf16.mxu0 %v2434
      %2827 = vmatmul.mubr.bf16.gmra.mrb[0].mxu0 %v2433
      %v2828 = vpop.f32.mrb[0].mxu0
      %v2829 = vadd.f32 %v2284, %v2828
      %v2830 = vpop.f32.mrb[0].mxu0
      %v2831 = vadd.f32 %v2284, %v2830
      %v2832 = vpop.f32.mrb[0].mxu0
      %v2833 = vadd.f32 %v2289, %v2832
      %v2834 = vpop.f32.mrb[0].mxu0
      %v2835 = vadd.f32 %v2289, %v2834
      %2836 = vmatprep.mubr.bf16.mxu0 %v2436
      %2837 = vmatmul.mubr.bf16.gmra.mrb[0].mxu0 %v2435
      %v2838 = vpop.f32.mrb[0].mxu0
      %v2839 = vadd.f32 %v2294, %v2838
      %v2840 = vpop.f32.mrb[0].mxu0
      %v2841 = vadd.f32 %v2294, %v2840
      %v2842 = vpop.f32.mrb[0].mxu0
      %v2843 = vadd.f32 %v2299, %v2842
      %v2844 = vpop.f32.mrb[0].mxu0
      %v2845 = vadd.f32 %v2299, %v2844
      %2846 = vmatprep.mubr.bf16.mxu0 %v2438
      %2847 = vmatmul.mubr.bf16.gmra.mrb[0].mxu0 %v2437
      %v2848 = vpop.f32.mrb[0].mxu0
      %v2849 = vadd.f32 %v2304, %v2848
      %v2850 = vpop.f32.mrb[0].mxu0
      %v2851 = vadd.f32 %v2304, %v2850
      %v2852 = vpop.f32.mrb[0].mxu0
      %v2853 = vadd.f32 %v2309, %v2852
      %v2854 = vpop.f32.mrb[0].mxu0
      %v2855 = vadd.f32 %v2309, %v2854
      %2856 = vdwg.mxu0
      %v2857 = vmax.f32 %v2506, 0.0
      %v2858 = vmax.f32 %v2508, 0.0
      %v2859 = vmax.f32 %v2699, 0.0
      %v2860 = vmax.f32 %v2701, 0.0
      %v2861 = vmax.f32 %v2510, 0.0
      %v2862 = vmax.f32 %v2512, 0.0
      %v2863 = vmax.f32 %v2703, 0.0
      %v2864 = vmax.f32 %v2705, 0.0
      %v2865 = vmax.f32 %v2516, 0.0
      %v2866 = vmax.f32 %v2518, 0.0
      %v2867 = vmax.f32 %v2709, 0.0
      %v2868 = vmax.f32 %v2711, 0.0
      %v2869 = vmax.f32 %v2520, 0.0
      %v2870 = vmax.f32 %v2522, 0.0
      %v2871 = vmax.f32 %v2713, 0.0
      %v2872 = vmax.f32 %v2715, 0.0
      %v2873 = vmax.f32 %v2526, 0.0
      %v2874 = vmax.f32 %v2528, 0.0
      %v2875 = vmax.f32 %v2719, 0.0
      %v2876 = vmax.f32 %v2721, 0.0
      %v2877 = vmax.f32 %v2530, 0.0
      %v2878 = vmax.f32 %v2532, 0.0
      %v2879 = vmax.f32 %v2723, 0.0
      %v2880 = vmax.f32 %v2725, 0.0
      %v2881 = vmax.f32 %v2536, 0.0
      %v2882 = vmax.f32 %v2538, 0.0
      %v2883 = vmax.f32 %v2729, 0.0
      %v2884 = vmax.f32 %v2731, 0.0
      %v2885 = vmax.f32 %v2540, 0.0
      %v2886 = vmax.f32 %v2542, 0.0
      %v2887 = vmax.f32 %v2733, 0.0
      %v2888 = vmax.f32 %v2735, 0.0
      %v2889 = vmax.f32 %v2546, 0.0
      %v2890 = vmax.f32 %v2548, 0.0
      %v2891 = vmax.f32 %v2739, 0.0
      %v2892 = vmax.f32 %v2741, 0.0
      %v2893 = vmax.f32 %v2550, 0.0
      %v2894 = vmax.f32 %v2552, 0.0
      %v2895 = vmax.f32 %v2743, 0.0
      %v2896 = vmax.f32 %v2745, 0.0
      %v2897 = vmax.f32 %v2556, 0.0
      %v2898 = vmax.f32 %v2558, 0.0
      %v2899 = vmax.f32 %v2749, 0.0
      %v2900 = vmax.f32 %v2751, 0.0
      %v2901 = vmax.f32 %v2560, 0.0
      %v2902 = vmax.f32 %v2562, 0.0
      %v2903 = vmax.f32 %v2753, 0.0
      %v2904 = vmax.f32 %v2755, 0.0
      %v2905 = vmax.f32 %v2566, 0.0
      %v2906 = vmax.f32 %v2568, 0.0
      %v2907 = vmax.f32 %v2759, 0.0
      %v2908 = vmax.f32 %v2761, 0.0
      %v2909 = vmax.f32 %v2570, 0.0
      %v2910 = vmax.f32 %v2572, 0.0
      %v2911 = vmax.f32 %v2763, 0.0
      %v2912 = vmax.f32 %v2765, 0.0
      %v2913 = vmax.f32 %v2576, 0.0
      %v2914 = vmax.f32 %v2578, 0.0
      %v2915 = vmax.f32 %v2769, 0.0
      %v2916 = vmax.f32 %v2771, 0.0
      %v2917 = vmax.f32 %v2580, 0.0
      %v2918 = vmax.f32 %v2582, 0.0
      %v2919 = vmax.f32 %v2773, 0.0
      %v2920 = vmax.f32 %v2775, 0.0
      %v2921 = vmax.f32 %v2586, 0.0
      %v2922 = vmax.f32 %v2588, 0.0
      %v2923 = vmax.f32 %v2779, 0.0
      %v2924 = vmax.f32 %v2781, 0.0
      %v2925 = vmax.f32 %v2590, 0.0
      %v2926 = vmax.f32 %v2592, 0.0
      %v2927 = vmax.f32 %v2783, 0.0
      %v2928 = vmax.f32 %v2785, 0.0
      %v2929 = vmax.f32 %v2596, 0.0
      %v2930 = vmax.f32 %v2598, 0.0
      %v2931 = vmax.f32 %v2789, 0.0
      %v2932 = vmax.f32 %v2791, 0.0
      %v2933 = vmax.f32 %v2600, 0.0
      %v2934 = vmax.f32 %v2602, 0.0
      %v2935 = vmax.f32 %v2793, 0.0
      %v2936 = vmax.f32 %v2795, 0.0
      %v2937 = vmax.f32 %v2606, 0.0
      %v2938 = vmax.f32 %v2608, 0.0
      %v2939 = vmax.f32 %v2799, 0.0
      %v2940 = vmax.f32 %v2801, 0.0
      %v2941 = vmax.f32 %v2610, 0.0
      %v2942 = vmax.f32 %v2612, 0.0
      %v2943 = vmax.f32 %v2803, 0.0
      %v2944 = vmax.f32 %v2805, 0.0
      %v2945 = vmax.f32 %v2616, 0.0
      %v2946 = vmax.f32 %v2618, 0.0
      %v2947 = vmax.f32 %v2809, 0.0
      %v2948 = vmax.f32 %v2811, 0.0
      %v2949 = vmax.f32 %v2620, 0.0
      %v2950 = vmax.f32 %v2622, 0.0
      %v2951 = vmax.f32 %v2813, 0.0
      %v2952 = vmax.f32 %v2815, 0.0
      %v2953 = vmax.f32 %v2626, 0.0
      %v2954 = vmax.f32 %v2628, 0.0
      %v2955 = vmax.f32 %v2819, 0.0
      %v2956 = vmax.f32 %v2821, 0.0
      %v2957 = vmax.f32 %v2630, 0.0
      %v2958 = vmax.f32 %v2632, 0.0
      %v2959 = vmax.f32 %v2823, 0.0
      %v2960 = vmax.f32 %v2825, 0.0
      %v2961 = vmax.f32 %v2636, 0.0
      %v2962 = vmax.f32 %v2638, 0.0
      %v2963 = vmax.f32 %v2829, 0.0
      %v2964 = vmax.f32 %v2831, 0.0
      %v2965 = vmax.f32 %v2640, 0.0
      %v2966 = vmax.f32 %v2642, 0.0
      %v2967 = vmax.f32 %v2833, 0.0
      %v2968 = vmax.f32 %v2835, 0.0
      %v2969 = vmax.f32 %v2646, 0.0
      %v2970 = vmax.f32 %v2648, 0.0
      %v2971 = vmax.f32 %v2839, 0.0
      %v2972 = vmax.f32 %v2841, 0.0
      %v2973 = vmax.f32 %v2650, 0.0
      %v2974 = vmax.f32 %v2652, 0.0
      %v2975 = vmax.f32 %v2843, 0.0
      %v2976 = vmax.f32 %v2845, 0.0
      %v2977 = vmax.f32 %v2656, 0.0
      %v2978 = vmax.f32 %v2658, 0.0
      %v2979 = vmax.f32 %v2849, 0.0
      %v2980 = vmax.f32 %v2851, 0.0
      %v2981 = vmax.f32 %v2660, 0.0
      %v2982 = vmax.f32 %v2662, 0.0
      %v2983 = vmax.f32 %v2853, 0.0
      %v2984 = vmax.f32 %v2855, 0.0
      %v2985 = vld [vmem:[%s9] sm:$0xff]
      %v2986 = vld [vmem:[%s9 + $0x8] sm:$0xff]
      %v2987 = vld [vmem:[%s9 + $0x10] sm:$0xff]
      %v2988 = vld [vmem:[%s9 + $0x18] sm:$0xff]
      %v2989 = vld [vmem:[%s9 + $0x20] sm:$0xff]
      %v2990 = vld [vmem:[%s9 + $0x28] sm:$0xff]
      %v2991 = vld [vmem:[%s9 + $0x30] sm:$0xff]
      %v2992 = vld [vmem:[%s9 + $0x38] sm:$0xff]
      %v2993 = vld [vmem:[%s9 + $0x40] sm:$0xff]
      %v2994 = vld [vmem:[%s9 + $0x48] sm:$0xff]
      %v2995 = vld [vmem:[%s9 + $0x50] sm:$0xff]
      %v2996 = vld [vmem:[%s9 + $0x58] sm:$0xff]
      %v2997 = vld [vmem:[%s9 + $0x60] sm:$0xff]
      %v2998 = vld [vmem:[%s9 + $0x68] sm:$0xff]
      %v2999 = vld [vmem:[%s9 + $0x70] sm:$0xff]
      %v3000 = vld [vmem:[%s9 + $0x78] sm:$0xff]
      %v3001 = vpack.c.bf16 %v2861, %v2857
      %v3002 = vpack.c.bf16 %v2862, %v2858
      %v3003 = vpack.c.bf16 %v2863, %v2859
      %v3004 = vpack.c.bf16 %v2864, %v2860
      %v3005 = vpack.c.bf16 %v2869, %v2865
      %v3006 = vpack.c.bf16 %v2870, %v2866
      %v3007 = vpack.c.bf16 %v2871, %v2867
      %v3008 = vpack.c.bf16 %v2872, %v2868
      %v3009 = vpack.c.bf16 %v2877, %v2873
      %v3010 = vpack.c.bf16 %v2878, %v2874
      %v3011 = vpack.c.bf16 %v2879, %v2875
      %v3012 = vpack.c.bf16 %v2880, %v2876
      %v3013 = vpack.c.bf16 %v2885, %v2881
      %v3014 = vpack.c.bf16 %v2886, %v2882
      %v3015 = vpack.c.bf16 %v2887, %v2883
      %v3016 = vpack.c.bf16 %v2888, %v2884
      %v3017 = vpack.c.bf16 %v2893, %v2889
      %v3018 = vpack.c.bf16 %v2894, %v2890
      %v3019 = vpack.c.bf16 %v2895, %v2891
      %v3020 = vpack.c.bf16 %v2896, %v2892
      %v3021 = vpack.c.bf16 %v2901, %v2897
      %v3022 = vpack.c.bf16 %v2902, %v2898
      %v3023 = vpack.c.bf16 %v2903, %v2899
      %v3024 = vpack.c.bf16 %v2904, %v2900
      %v3025 = vpack.c.bf16 %v2909, %v2905
      %v3026 = vpack.c.bf16 %v2910, %v2906
      %v3027 = vpack.c.bf16 %v2911, %v2907
      %v3028 = vpack.c.bf16 %v2912, %v2908
      %v3029 = vpack.c.bf16 %v2917, %v2913
      %v3030 = vpack.c.bf16 %v2918, %v2914
      %v3031 = vpack.c.bf16 %v2919, %v2915
      %v3032 = vpack.c.bf16 %v2920, %v2916
      %v3033 = vpack.c.bf16 %v2925, %v2921
      %v3034 = vpack.c.bf16 %v2926, %v2922
      %v3035 = vpack.c.bf16 %v2927, %v2923
      %v3036 = vpack.c.bf16 %v2928, %v2924
      %v3037 = vpack.c.bf16 %v2933, %v2929
      %v3038 = vpack.c.bf16 %v2934, %v2930
      %v3039 = vpack.c.bf16 %v2935, %v2931
      %v3040 = vpack.c.bf16 %v2936, %v2932
      %v3041 = vpack.c.bf16 %v2941, %v2937
      %v3042 = vpack.c.bf16 %v2942, %v2938
      %v3043 = vpack.c.bf16 %v2943, %v2939
      %v3044 = vpack.c.bf16 %v2944, %v2940
      %v3045 = vpack.c.bf16 %v2949, %v2945
      %v3046 = vpack.c.bf16 %v2950, %v2946
      %v3047 = vpack.c.bf16 %v2951, %v2947
      %v3048 = vpack.c.bf16 %v2952, %v2948
      %v3049 = vpack.c.bf16 %v2957, %v2953
      %v3050 = vpack.c.bf16 %v2958, %v2954
      %v3051 = vpack.c.bf16 %v2959, %v2955
      %v3052 = vpack.c.bf16 %v2960, %v2956
      %v3053 = vpack.c.bf16 %v2965, %v2961
      %v3054 = vpack.c.bf16 %v2966, %v2962
      %v3055 = vpack.c.bf16 %v2967, %v2963
      %v3056 = vpack.c.bf16 %v2968, %v2964
      %v3057 = vpack.c.bf16 %v2973, %v2969
      %v3058 = vpack.c.bf16 %v2974, %v2970
      %v3059 = vpack.c.bf16 %v2975, %v2971
      %v3060 = vpack.c.bf16 %v2976, %v2972
      %v3061 = vpack.c.bf16 %v2981, %v2977
      %v3062 = vpack.c.bf16 %v2982, %v2978
      %v3063 = vpack.c.bf16 %v2983, %v2979
      %v3064 = vpack.c.bf16 %v2984, %v2980
      %v3065 = vld [vmem:[%s10] sm:$0xff]
      %v3066 = vld [vmem:[%s10 + $0x8] sm:$0xff]
      %v3067 = vld [vmem:[%s10 + $0x10] sm:$0xff]
      %v3068 = vld [vmem:[%s10 + $0x18] sm:$0xff]
      %v3069 = vld [vmem:[%s10 + $0x20] sm:$0xff]
      %v3070 = vld [vmem:[%s10 + $0x28] sm:$0xff]
      %v3071 = vld [vmem:[%s10 + $0x30] sm:$0xff]
      %v3072 = vld [vmem:[%s10 + $0x38] sm:$0xff]
      %v3073 = vld [vmem:[%s10 + $0x40] sm:$0xff]
      %v3074 = vld [vmem:[%s10 + $0x48] sm:$0xff]
      %v3075 = vld [vmem:[%s10 + $0x50] sm:$0xff]
      %v3076 = vld [vmem:[%s10 + $0x58] sm:$0xff]
      %v3077 = vld [vmem:[%s10 + $0x60] sm:$0xff]
      %v3078 = vld [vmem:[%s10 + $0x68] sm:$0xff]
      %v3079 = vld [vmem:[%s10 + $0x70] sm:$0xff]
      %v3080 = vld [vmem:[%s10 + $0x78] sm:$0xff]
      %3082 = vset.pattern.permute.xlu0 0
      %3083 = vperm.xlu0 %3082, %v3065
      %v3084 = vpop.permute.xlu0 %3083
      %3087 = vset.pattern.permute.xlu0 0
      %3088 = vperm.xlu0 %3087, %v3066
      %v3089 = vpop.permute.xlu0 %3088
      %3092 = vset.pattern.permute.xlu0 0
      %3093 = vperm.xlu0 %3092, %v3067
      %v3094 = vpop.permute.xlu0 %3093
      %3097 = vset.pattern.permute.xlu0 0
      %3098 = vperm.xlu0 %3097, %v3068
      %v3099 = vpop.permute.xlu0 %3098
      %3102 = vset.pattern.permute.xlu0 0
      %3103 = vperm.xlu0 %3102, %v3069
      %v3104 = vpop.permute.xlu0 %3103
      %3107 = vset.pattern.permute.xlu0 0
      %3108 = vperm.xlu0 %3107, %v3070
      %v3109 = vpop.permute.xlu0 %3108
      %3112 = vset.pattern.permute.xlu0 0
      %3113 = vperm.xlu0 %3112, %v3071
      %v3114 = vpop.permute.xlu0 %3113
      %3117 = vset.pattern.permute.xlu0 0
      %3118 = vperm.xlu0 %3117, %v3072
      %v3119 = vpop.permute.xlu0 %3118
      %3122 = vset.pattern.permute.xlu0 0
      %3123 = vperm.xlu0 %3122, %v3073
      %v3124 = vpop.permute.xlu0 %3123
      %3127 = vset.pattern.permute.xlu0 0
      %3128 = vperm.xlu0 %3127, %v3074
      %v3129 = vpop.permute.xlu0 %3128
      %3132 = vset.pattern.permute.xlu0 0
      %3133 = vperm.xlu0 %3132, %v3075
      %v3134 = vpop.permute.xlu0 %3133
      %3137 = vset.pattern.permute.xlu0 0
      %3138 = vperm.xlu0 %3137, %v3076
      %v3139 = vpop.permute.xlu0 %3138
      %3142 = vset.pattern.permute.xlu0 0
      %3143 = vperm.xlu0 %3142, %v3077
      %v3144 = vpop.permute.xlu0 %3143
      %3147 = vset.pattern.permute.xlu0 0
      %3148 = vperm.xlu0 %3147, %v3078
      %v3149 = vpop.permute.xlu0 %3148
      %3152 = vset.pattern.permute.xlu0 0
      %3153 = vperm.xlu0 %3152, %v3079
      %v3154 = vpop.permute.xlu0 %3153
      %3157 = vset.pattern.permute.xlu0 0
      %3158 = vperm.xlu0 %3157, %v3080
      %v3159 = vpop.permute.xlu0 %3158
      %v3177 = vunpack.c.l.b16 %v2985
      %v3178 = vunpack.c.h.b16 %v2985
      %v3179 = vunpack.c.l.b16 %v2986
      %v3180 = vunpack.c.h.b16 %v2986
      %v3181 = vunpack.c.l.b16 %v2987
      %v3182 = vunpack.c.h.b16 %v2987
      %v3183 = vunpack.c.l.b16 %v2988
      %v3184 = vunpack.c.h.b16 %v2988
      %v3185 = vunpack.c.l.b16 %v2989
      %v3186 = vunpack.c.h.b16 %v2989
      %v3187 = vunpack.c.l.b16 %v2990
      %v3188 = vunpack.c.h.b16 %v2990
      %v3189 = vunpack.c.l.b16 %v2991
      %v3190 = vunpack.c.h.b16 %v2991
      %v3191 = vunpack.c.l.b16 %v2992
      %v3192 = vunpack.c.h.b16 %v2992
      %v3193 = vunpack.c.l.b16 %v2993
      %v3194 = vunpack.c.h.b16 %v2993
      %v3195 = vunpack.c.l.b16 %v2994
      %v3196 = vunpack.c.h.b16 %v2994
      %v3197 = vunpack.c.l.b16 %v2995
      %v3198 = vunpack.c.h.b16 %v2995
      %v3199 = vunpack.c.l.b16 %v2996
      %v3200 = vunpack.c.h.b16 %v2996
      %v3201 = vunpack.c.l.b16 %v2997
      %v3202 = vunpack.c.h.b16 %v2997
      %v3203 = vunpack.c.l.b16 %v2998
      %v3204 = vunpack.c.h.b16 %v2998
      %v3205 = vunpack.c.l.b16 %v2999
      %v3206 = vunpack.c.h.b16 %v2999
      %v3207 = vunpack.c.l.b16 %v3000
      %v3208 = vunpack.c.h.b16 %v3000
      %v3209 = vpack.c.b16 %v3179, %v3177
      %v3210 = vpack.c.b16 %v3180, %v3178
      %v3211 = vpack.c.b16 %v3183, %v3181
      %v3212 = vpack.c.b16 %v3184, %v3182
      %v3213 = vpack.c.b16 %v3187, %v3185
      %v3214 = vpack.c.b16 %v3188, %v3186
      %v3215 = vpack.c.b16 %v3191, %v3189
      %v3216 = vpack.c.b16 %v3192, %v3190
      %v3217 = vpack.c.b16 %v3195, %v3193
      %v3218 = vpack.c.b16 %v3196, %v3194
      %v3219 = vpack.c.b16 %v3199, %v3197
      %v3220 = vpack.c.b16 %v3200, %v3198
      %v3221 = vpack.c.b16 %v3203, %v3201
      %v3222 = vpack.c.b16 %v3204, %v3202
      %v3223 = vpack.c.b16 %v3207, %v3205
      %v3224 = vpack.c.b16 %v3208, %v3206
      %3241 = vmatprep.subr.bf16.mxu0 %v3002
      %3242 = vmatpush1.bf16.msra.mxu0 %v3001
      %3243 = vmatprep.subr.bf16.mxu0 %v3006
      %3244 = vmatpush1.bf16.msra.mxu0 %v3005
      %3245 = vmatprep.subr.bf16.mxu0 %v3010
      %3246 = vmatpush1.bf16.msra.mxu0 %v3009
      %3247 = vmatprep.subr.bf16.mxu0 %v3014
      %3248 = vmatpush1.bf16.msra.mxu0 %v3013
      %3249 = vmatprep.subr.bf16.mxu0 %v3018
      %3250 = vmatpush1.bf16.msra.mxu0 %v3017
      %3251 = vmatprep.subr.bf16.mxu0 %v3022
      %3252 = vmatpush1.bf16.msra.mxu0 %v3021
      %3253 = vmatprep.subr.bf16.mxu0 %v3026
      %3254 = vmatpush1.bf16.msra.mxu0 %v3025
      %3255 = vmatprep.subr.bf16.mxu0 %v3030
      %3256 = vmatpush1.bf16.msra.mxu0 %v3029
      %3257 = vmatprep.subr.bf16.mxu0 %v3034
      %3258 = vmatpush1.bf16.msra.mxu0 %v3033
      %3259 = vmatprep.subr.bf16.mxu0 %v3038
      %3260 = vmatpush1.bf16.msra.mxu0 %v3037
      %3261 = vmatprep.subr.bf16.mxu0 %v3042
      %3262 = vmatpush1.bf16.msra.mxu0 %v3041
      %3263 = vmatprep.subr.bf16.mxu0 %v3046
      %3264 = vmatpush1.bf16.msra.mxu0 %v3045
      %3265 = vmatprep.subr.bf16.mxu0 %v3050
      %3266 = vmatpush1.bf16.msra.mxu0 %v3049
      %3267 = vmatprep.subr.bf16.mxu0 %v3054
      %3268 = vmatpush1.bf16.msra.mxu0 %v3053
      %3269 = vmatprep.subr.bf16.mxu0 %v3058
      %3270 = vmatpush1.bf16.msra.mxu0 %v3057
      %3271 = vmatprep.subr.bf16.mxu0 %v3062
      %3272 = vmatpush1.bf16.msra.mxu0 %v3061
      %3273 = vmatprep.mubr.bf16.mxu0 %v3210
      %3274 = vmatmul.mubr.bf16.gmra.mrb[0].mxu0 %v3209
      %v3275 = vpop.f32.mrb[0].mxu0
      %v3276 = vadd.f32 %v3084, %v3275
      %v3277 = vpop.f32.mrb[0].mxu0
      %v3278 = vadd.f32 %v3084, %v3277
      %v3279 = vpop.f32.mrb[0].mxu0
      %v3280 = vadd.f32 %v3089, %v3279
      %v3281 = vpop.f32.mrb[0].mxu0
      %v3282 = vadd.f32 %v3089, %v3281
      %3283 = vmatprep.mubr.bf16.mxu0 %v3212
      %3284 = vmatmul.mubr.bf16.gmra.mrb[0].mxu0 %v3211
      %v3285 = vpop.f32.mrb[0].mxu0
      %v3286 = vadd.f32 %v3094, %v3285
      %v3287 = vpop.f32.mrb[0].mxu0
      %v3288 = vadd.f32 %v3094, %v3287
      %v3289 = vpop.f32.mrb[0].mxu0
      %v3290 = vadd.f32 %v3099, %v3289
      %v3291 = vpop.f32.mrb[0].mxu0
      %v3292 = vadd.f32 %v3099, %v3291
      %3293 = vmatprep.mubr.bf16.mxu0 %v3214
      %3294 = vmatmul.mubr.bf16.gmra.mrb[0].mxu0 %v3213
      %v3295 = vpop.f32.mrb[0].mxu0
      %v3296 = vadd.f32 %v3104, %v3295
      %v3297 = vpop.f32.mrb[0].mxu0
      %v3298 = vadd.f32 %v3104, %v3297
      %v3299 = vpop.f32.mrb[0].mxu0
      %v3300 = vadd.f32 %v3109, %v3299
      %v3301 = vpop.f32.mrb[0].mxu0
      %v3302 = vadd.f32 %v3109, %v3301
      %3303 = vmatprep.mubr.bf16.mxu0 %v3216
      %3304 = vmatmul.mubr.bf16.gmra.mrb[0].mxu0 %v3215
      %v3305 = vpop.f32.mrb[0].mxu0
      %v3306 = vadd.f32 %v3114, %v3305
      %v3307 = vpop.f32.mrb[0].mxu0
      %v3308 = vadd.f32 %v3114, %v3307
      %v3309 = vpop.f32.mrb[0].mxu0
      %v3310 = vadd.f32 %v3119, %v3309
      %v3311 = vpop.f32.mrb[0].mxu0
      %v3312 = vadd.f32 %v3119, %v3311
      %3313 = vmatprep.mubr.bf16.mxu0 %v3218
      %3314 = vmatmul.mubr.bf16.gmra.mrb[0].mxu0 %v3217
      %v3315 = vpop.f32.mrb[0].mxu0
      %v3316 = vadd.f32 %v3124, %v3315
      %v3317 = vpop.f32.mrb[0].mxu0
      %v3318 = vadd.f32 %v3124, %v3317
      %v3319 = vpop.f32.mrb[0].mxu0
      %v3320 = vadd.f32 %v3129, %v3319
      %v3321 = vpop.f32.mrb[0].mxu0
      %v3322 = vadd.f32 %v3129, %v3321
      %3323 = vmatprep.mubr.bf16.mxu0 %v3220
      %3324 = vmatmul.mubr.bf16.gmra.mrb[0].mxu0 %v3219
      %v3325 = vpop.f32.mrb[0].mxu0
      %v3326 = vadd.f32 %v3134, %v3325
      %v3327 = vpop.f32.mrb[0].mxu0
      %v3328 = vadd.f32 %v3134, %v3327
      %v3329 = vpop.f32.mrb[0].mxu0
      %v3330 = vadd.f32 %v3139, %v3329
      %v3331 = vpop.f32.mrb[0].mxu0
      %v3332 = vadd.f32 %v3139, %v3331
      %3333 = vmatprep.mubr.bf16.mxu0 %v3222
      %3334 = vmatmul.mubr.bf16.gmra.mrb[0].mxu0 %v3221
      %v3335 = vpop.f32.mrb[0].mxu0
      %v3336 = vadd.f32 %v3144, %v3335
      %v3337 = vpop.f32.mrb[0].mxu0
      %v3338 = vadd.f32 %v3144, %v3337
      %v3339 = vpop.f32.mrb[0].mxu0
      %v3340 = vadd.f32 %v3149, %v3339
      %v3341 = vpop.f32.mrb[0].mxu0
      %v3342 = vadd.f32 %v3149, %v3341
      %3343 = vmatprep.mubr.bf16.mxu0 %v3224
      %3344 = vmatmul.mubr.bf16.gmra.mrb[0].mxu0 %v3223
      %v3345 = vpop.f32.mrb[0].mxu0
      %v3346 = vadd.f32 %v3154, %v3345
      %v3347 = vpop.f32.mrb[0].mxu0
      %v3348 = vadd.f32 %v3154, %v3347
      %v3349 = vpop.f32.mrb[0].mxu0
      %v3350 = vadd.f32 %v3159, %v3349
      %v3351 = vpop.f32.mrb[0].mxu0
      %v3352 = vadd.f32 %v3159, %v3351
      %3353 = vdwg.mxu0
      %3354 = vmatprep.subr.bf16.mxu0 %v3004
      %3355 = vmatpush1.bf16.msra.mxu0 %v3003
      %3356 = vmatprep.subr.bf16.mxu0 %v3008
      %3357 = vmatpush1.bf16.msra.mxu0 %v3007
      %3358 = vmatprep.subr.bf16.mxu0 %v3012
      %3359 = vmatpush1.bf16.msra.mxu0 %v3011
      %3360 = vmatprep.subr.bf16.mxu0 %v3016
      %3361 = vmatpush1.bf16.msra.mxu0 %v3015
      %3362 = vmatprep.subr.bf16.mxu0 %v3020
      %3363 = vmatpush1.bf16.msra.mxu0 %v3019
      %3364 = vmatprep.subr.bf16.mxu0 %v3024
      %3365 = vmatpush1.bf16.msra.mxu0 %v3023
      %3366 = vmatprep.subr.bf16.mxu0 %v3028
      %3367 = vmatpush1.bf16.msra.mxu0 %v3027
      %3368 = vmatprep.subr.bf16.mxu0 %v3032
      %3369 = vmatpush1.bf16.msra.mxu0 %v3031
      %3370 = vmatprep.subr.bf16.mxu0 %v3036
      %3371 = vmatpush1.bf16.msra.mxu0 %v3035
      %3372 = vmatprep.subr.bf16.mxu0 %v3040
      %3373 = vmatpush1.bf16.msra.mxu0 %v3039
      %3374 = vmatprep.subr.bf16.mxu0 %v3044
      %3375 = vmatpush1.bf16.msra.mxu0 %v3043
      %3376 = vmatprep.subr.bf16.mxu0 %v3048
      %3377 = vmatpush1.bf16.msra.mxu0 %v3047
      %3378 = vmatprep.subr.bf16.mxu0 %v3052
      %3379 = vmatpush1.bf16.msra.mxu0 %v3051
      %3380 = vmatprep.subr.bf16.mxu0 %v3056
      %3381 = vmatpush1.bf16.msra.mxu0 %v3055
      %3382 = vmatprep.subr.bf16.mxu0 %v3060
      %3383 = vmatpush1.bf16.msra.mxu0 %v3059
      %3384 = vmatprep.subr.bf16.mxu0 %v3064
      %3385 = vmatpush1.bf16.msra.mxu0 %v3063
      %3386 = vmatprep.mubr.bf16.mxu0 %v3210
      %3387 = vmatmul.mubr.bf16.gmra.mrb[0].mxu0 %v3209
      %v3388 = vpop.f32.mrb[0].mxu0
      %v3389 = vadd.f32 %v3084, %v3388
      %v3390 = vpop.f32.mrb[0].mxu0
      %v3391 = vadd.f32 %v3084, %v3390
      %v3392 = vpop.f32.mrb[0].mxu0
      %v3393 = vadd.f32 %v3089, %v3392
      %v3394 = vpop.f32.mrb[0].mxu0
      %v3395 = vadd.f32 %v3089, %v3394
      %3396 = vmatprep.mubr.bf16.mxu0 %v3212
      %3397 = vmatmul.mubr.bf16.gmra.mrb[0].mxu0 %v3211
      %v3398 = vpop.f32.mrb[0].mxu0
      %v3399 = vadd.f32 %v3094, %v3398
      %v3400 = vpop.f32.mrb[0].mxu0
      %v3401 = vadd.f32 %v3094, %v3400
      %v3402 = vpop.f32.mrb[0].mxu0
      %v3403 = vadd.f32 %v3099, %v3402
      %v3404 = vpop.f32.mrb[0].mxu0
      %v3405 = vadd.f32 %v3099, %v3404
      %3406 = vmatprep.mubr.bf16.mxu0 %v3214
      %3407 = vmatmul.mubr.bf16.gmra.mrb[0].mxu0 %v3213
      %v3408 = vpop.f32.mrb[0].mxu0
      %v3409 = vadd.f32 %v3104, %v3408
      %v3410 = vpop.f32.mrb[0].mxu0
      %v3411 = vadd.f32 %v3104, %v3410
      %v3412 = vpop.f32.mrb[0].mxu0
      %v3413 = vadd.f32 %v3109, %v3412
      %v3414 = vpop.f32.mrb[0].mxu0
      %v3415 = vadd.f32 %v3109, %v3414
      %3416 = vmatprep.mubr.bf16.mxu0 %v3216
      %3417 = vmatmul.mubr.bf16.gmra.mrb[0].mxu0 %v3215
      %v3418 = vpop.f32.mrb[0].mxu0
      %v3419 = vadd.f32 %v3114, %v3418
      %v3420 = vpop.f32.mrb[0].mxu0
      %v3421 = vadd.f32 %v3114, %v3420
      %v3422 = vpop.f32.mrb[0].mxu0
      %v3423 = vadd.f32 %v3119, %v3422
      %v3424 = vpop.f32.mrb[0].mxu0
      %v3425 = vadd.f32 %v3119, %v3424
      %3426 = vmatprep.mubr.bf16.mxu0 %v3218
      %3427 = vmatmul.mubr.bf16.gmra.mrb[0].mxu0 %v3217
      %v3428 = vpop.f32.mrb[0].mxu0
      %v3429 = vadd.f32 %v3124, %v3428
      %v3430 = vpop.f32.mrb[0].mxu0
      %v3431 = vadd.f32 %v3124, %v3430
      %v3432 = vpop.f32.mrb[0].mxu0
      %v3433 = vadd.f32 %v3129, %v3432
      %v3434 = vpop.f32.mrb[0].mxu0
      %v3435 = vadd.f32 %v3129, %v3434
      %3436 = vmatprep.mubr.bf16.mxu0 %v3220
      %3437 = vmatmul.mubr.bf16.gmra.mrb[0].mxu0 %v3219
      %v3438 = vpop.f32.mrb[0].mxu0
      %v3439 = vadd.f32 %v3134, %v3438
      %v3440 = vpop.f32.mrb[0].mxu0
      %v3441 = vadd.f32 %v3134, %v3440
      %v3442 = vpop.f32.mrb[0].mxu0
      %v3443 = vadd.f32 %v3139, %v3442
      %v3444 = vpop.f32.mrb[0].mxu0
      %v3445 = vadd.f32 %v3139, %v3444
      %3446 = vmatprep.mubr.bf16.mxu0 %v3222
      %3447 = vmatmul.mubr.bf16.gmra.mrb[0].mxu0 %v3221
      %v3448 = vpop.f32.mrb[0].mxu0
      %v3449 = vadd.f32 %v3144, %v3448
      %v3450 = vpop.f32.mrb[0].mxu0
      %v3451 = vadd.f32 %v3144, %v3450
      %v3452 = vpop.f32.mrb[0].mxu0
      %v3453 = vadd.f32 %v3149, %v3452
      %v3454 = vpop.f32.mrb[0].mxu0
      %v3455 = vadd.f32 %v3149, %v3454
      %3456 = vmatprep.mubr.bf16.mxu0 %v3224
      %3457 = vmatmul.mubr.bf16.gmra.mrb[0].mxu0 %v3223
      %v3458 = vpop.f32.mrb[0].mxu0
      %v3459 = vadd.f32 %v3154, %v3458
      %v3460 = vpop.f32.mrb[0].mxu0
      %v3461 = vadd.f32 %v3154, %v3460
      %v3462 = vpop.f32.mrb[0].mxu0
      %v3463 = vadd.f32 %v3159, %v3462
      %v3464 = vpop.f32.mrb[0].mxu0
      %v3465 = vadd.f32 %v3159, %v3464
      %3466 = vdwg.mxu0
      %p3467 = scmp.eq.s32.totalorder %s29, 0
      // Predicated region
      $region65: #{encoder_conv1d_forward.1} parent=63 // pred_check
        %p3468 = pneg %p3467
      $region66: #{encoder_conv1d_forward.1} parent=63 // pred_check_branch
        %3470 = sbr.rel (%p3468) target = $region68
      $region67: #{encoder_conv1d_forward.1} parent=63 // pred_region
        %vm3471 = vcmask 7168
        %3472 = vst.msk [vmem:[%s456] sm:$0xff] %vm3471, -inf
        %3473 = vst.msk [vmem:[%s456 + $0x8] sm:$0xff] %vm3471, -inf
        %3474 = vst.msk [vmem:[%s456 + $0x10] sm:$0xff] %vm3471, -inf
        %3475 = vst.msk [vmem:[%s456 + $0x18] sm:$0xff] %vm3471, -inf
        %3476 = vst.msk [vmem:[%s456 + $0x20] sm:$0xff] %vm3471, -inf
        %3477 = vst.msk [vmem:[%s456 + $0x28] sm:$0xff] %vm3471, -inf
        %3478 = vst.msk [vmem:[%s456 + $0x30] sm:$0xff] %vm3471, -inf
        %3479 = vst.msk [vmem:[%s456 + $0x38] sm:$0xff] %vm3471, -inf
        %3480 = vst.msk [vmem:[%s456 + $0x40] sm:$0xff] %vm3471, -inf
        %3481 = vst.msk [vmem:[%s456 + $0x48] sm:$0xff] %vm3471, -inf
        %3482 = vst.msk [vmem:[%s456 + $0x50] sm:$0xff] %vm3471, -inf
        %3483 = vst.msk [vmem:[%s456 + $0x58] sm:$0xff] %vm3471, -inf
        %3484 = vst.msk [vmem:[%s456 + $0x60] sm:$0xff] %vm3471, -inf
        %3485 = vst.msk [vmem:[%s456 + $0x68] sm:$0xff] %vm3471, -inf
        %3486 = vst.msk [vmem:[%s456 + $0x70] sm:$0xff] %vm3471, -inf
        %3487 = vst.msk [vmem:[%s456 + $0x78] sm:$0xff] %vm3471, -inf
      $region68: #{encoder_conv1d_forward.1} parent=63 // pred_fallthru
        _
      %s3488 = sadd.s32 %s459, 1
      %s3489 = smul.u32 %s3488, 512
      %p3490 = scmp.gt.s32.totalorder %s3489, 2000
      %p3491 = scmp.le.s32.totalorder %s3489, 2000
      // Predicated region
      $region69: #{encoder_conv1d_forward.1} parent=63 // pred_check
        %p3492 = pneg %p3491
      $region70: #{encoder_conv1d_forward.1} parent=63 // pred_check_branch
        %3494 = sbr.rel (%p3492) target = $region72
      $region71: #{encoder_conv1d_forward.1} parent=63 // pred_region
        %v3495 = vmax.f32 %v3276, %v3278
        %v3496 = vmax.f32 %v3495, %v3389
        %v3497 = vmax.f32 %v3496, %v3391
        %3498 = vmax.xlane.f32.xlu0 %v3497
        %v3499 = vpop.xlane.xlu0 %3498
        %v3500 = vmax.f32 %v3280, %v3282
        %v3501 = vmax.f32 %v3500, %v3393
        %v3502 = vmax.f32 %v3501, %v3395
        %3503 = vmax.xlane.f32.xlu0 %v3502
        %v3504 = vpop.xlane.xlu0 %3503
        %v3505 = vmax.f32 %v3286, %v3288
        %v3506 = vmax.f32 %v3505, %v3399
        %v3507 = vmax.f32 %v3506, %v3401
        %3508 = vmax.xlane.f32.xlu0 %v3507
        %v3509 = vpop.xlane.xlu0 %3508
        %v3510 = vmax.f32 %v3290, %v3292
        %v3511 = vmax.f32 %v3510, %v3403
        %v3512 = vmax.f32 %v3511, %v3405
        %3513 = vmax.xlane.f32.xlu0 %v3512
        %v3514 = vpop.xlane.xlu0 %3513
        %v3515 = vmax.f32 %v3296, %v3298
        %v3516 = vmax.f32 %v3515, %v3409
        %v3517 = vmax.f32 %v3516, %v3411
        %3518 = vmax.xlane.f32.xlu0 %v3517
        %v3519 = vpop.xlane.xlu0 %3518
        %v3520 = vmax.f32 %v3300, %v3302
        %v3521 = vmax.f32 %v3520, %v3413
        %v3522 = vmax.f32 %v3521, %v3415
        %3523 = vmax.xlane.f32.xlu0 %v3522
        %v3524 = vpop.xlane.xlu0 %3523
        %v3525 = vmax.f32 %v3306, %v3308
        %v3526 = vmax.f32 %v3525, %v3419
        %v3527 = vmax.f32 %v3526, %v3421
        %3528 = vmax.xlane.f32.xlu0 %v3527
        %v3529 = vpop.xlane.xlu0 %3528
        %v3530 = vmax.f32 %v3310, %v3312
        %v3531 = vmax.f32 %v3530, %v3423
        %v3532 = vmax.f32 %v3531, %v3425
        %3533 = vmax.xlane.f32.xlu0 %v3532
        %v3534 = vpop.xlane.xlu0 %3533
        %v3535 = vmax.f32 %v3316, %v3318
        %v3536 = vmax.f32 %v3535, %v3429
        %v3537 = vmax.f32 %v3536, %v3431
        %3538 = vmax.xlane.f32.xlu0 %v3537
        %v3539 = vpop.xlane.xlu0 %3538
        %v3540 = vmax.f32 %v3320, %v3322
        %v3541 = vmax.f32 %v3540, %v3433
        %v3542 = vmax.f32 %v3541, %v3435
        %3543 = vmax.xlane.f32.xlu0 %v3542
        %v3544 = vpop.xlane.xlu0 %3543
        %v3545 = vmax.f32 %v3326, %v3328
        %v3546 = vmax.f32 %v3545, %v3439
        %v3547 = vmax.f32 %v3546, %v3441
        %3548 = vmax.xlane.f32.xlu0 %v3547
        %v3549 = vpop.xlane.xlu0 %3548
        %v3550 = vmax.f32 %v3330, %v3332
        %v3551 = vmax.f32 %v3550, %v3443
        %v3552 = vmax.f32 %v3551, %v3445
        %3553 = vmax.xlane.f32.xlu0 %v3552
        %v3554 = vpop.xlane.xlu0 %3553
        %v3555 = vmax.f32 %v3336, %v3338
        %v3556 = vmax.f32 %v3555, %v3449
        %v3557 = vmax.f32 %v3556, %v3451
        %3558 = vmax.xlane.f32.xlu0 %v3557
        %v3559 = vpop.xlane.xlu0 %3558
        %v3560 = vmax.f32 %v3340, %v3342
        %v3561 = vmax.f32 %v3560, %v3453
        %v3562 = vmax.f32 %v3561, %v3455
        %3563 = vmax.xlane.f32.xlu0 %v3562
        %v3564 = vpop.xlane.xlu0 %3563
        %v3565 = vmax.f32 %v3346, %v3348
        %v3566 = vmax.f32 %v3565, %v3459
        %v3567 = vmax.f32 %v3566, %v3461
        %3568 = vmax.xlane.f32.xlu0 %v3567
        %v3569 = vpop.xlane.xlu0 %3568
        %v3570 = vmax.f32 %v3350, %v3352
        %v3571 = vmax.f32 %v3570, %v3463
        %v3572 = vmax.f32 %v3571, %v3465
        %3573 = vmax.xlane.f32.xlu0 %v3572
        %v3574 = vpop.xlane.xlu0 %3573
        %v3575 = vld [vmem:[%s456] sm:$0xff]
        %v3576 = vld [vmem:[%s456 + $0x8] sm:$0xff]
        %v3577 = vld [vmem:[%s456 + $0x10] sm:$0xff]
        %v3578 = vld [vmem:[%s456 + $0x18] sm:$0xff]
        %v3579 = vld [vmem:[%s456 + $0x20] sm:$0xff]
        %v3580 = vld [vmem:[%s456 + $0x28] sm:$0xff]
        %v3581 = vld [vmem:[%s456 + $0x30] sm:$0xff]
        %v3582 = vld [vmem:[%s456 + $0x38] sm:$0xff]
        %v3583 = vld [vmem:[%s456 + $0x40] sm:$0xff]
        %v3584 = vld [vmem:[%s456 + $0x48] sm:$0xff]
        %v3585 = vld [vmem:[%s456 + $0x50] sm:$0xff]
        %v3586 = vld [vmem:[%s456 + $0x58] sm:$0xff]
        %v3587 = vld [vmem:[%s456 + $0x60] sm:$0xff]
        %v3588 = vld [vmem:[%s456 + $0x68] sm:$0xff]
        %v3589 = vld [vmem:[%s456 + $0x70] sm:$0xff]
        %v3590 = vld [vmem:[%s456 + $0x78] sm:$0xff]
        %v3591 = vmax.f32 %v3575, %v3499
        %v3592 = vmax.f32 %v3576, %v3504
        %v3593 = vmax.f32 %v3577, %v3509
        %v3594 = vmax.f32 %v3578, %v3514
        %v3595 = vmax.f32 %v3579, %v3519
        %v3596 = vmax.f32 %v3580, %v3524
        %v3597 = vmax.f32 %v3581, %v3529
        %v3598 = vmax.f32 %v3582, %v3534
        %v3599 = vmax.f32 %v3583, %v3539
        %v3600 = vmax.f32 %v3584, %v3544
        %v3601 = vmax.f32 %v3585, %v3549
        %v3602 = vmax.f32 %v3586, %v3554
        %v3603 = vmax.f32 %v3587, %v3559
        %v3604 = vmax.f32 %v3588, %v3564
        %v3605 = vmax.f32 %v3589, %v3569
        %v3606 = vmax.f32 %v3590, %v3574
        %vm3607 = vcmask 7168
        %3608 = vst.msk [vmem:[%s456] sm:$0xff] %vm3607, %v3591
        %3609 = vst.msk [vmem:[%s456 + $0x8] sm:$0xff] %vm3607, %v3592
        %3610 = vst.msk [vmem:[%s456 + $0x10] sm:$0xff] %vm3607, %v3593
        %3611 = vst.msk [vmem:[%s456 + $0x18] sm:$0xff] %vm3607, %v3594
        %3612 = vst.msk [vmem:[%s456 + $0x20] sm:$0xff] %vm3607, %v3595
        %3613 = vst.msk [vmem:[%s456 + $0x28] sm:$0xff] %vm3607, %v3596
        %3614 = vst.msk [vmem:[%s456 + $0x30] sm:$0xff] %vm3607, %v3597
        %3615 = vst.msk [vmem:[%s456 + $0x38] sm:$0xff] %vm3607, %v3598
        %3616 = vst.msk [vmem:[%s456 + $0x40] sm:$0xff] %vm3607, %v3599
        %3617 = vst.msk [vmem:[%s456 + $0x48] sm:$0xff] %vm3607, %v3600
        %3618 = vst.msk [vmem:[%s456 + $0x50] sm:$0xff] %vm3607, %v3601
        %3619 = vst.msk [vmem:[%s456 + $0x58] sm:$0xff] %vm3607, %v3602
        %3620 = vst.msk [vmem:[%s456 + $0x60] sm:$0xff] %vm3607, %v3603
        %3621 = vst.msk [vmem:[%s456 + $0x68] sm:$0xff] %vm3607, %v3604
        %3622 = vst.msk [vmem:[%s456 + $0x70] sm:$0xff] %vm3607, %v3605
        %3623 = vst.msk [vmem:[%s456 + $0x78] sm:$0xff] %vm3607, %v3606
      $region72: #{encoder_conv1d_forward.1} parent=63 // pred_fallthru
        _
      // Predicated region
      $region73: #{encoder_conv1d_forward.1} parent=63 // pred_check
        %p3624 = pneg %p3490
      $region74: #{encoder_conv1d_forward.1} parent=63 // pred_check_branch
        %3626 = sbr.rel (%p3624) target = $region76
      $region75: #{encoder_conv1d_forward.1} parent=63 // pred_region
        %v3627 = vlaneseq
        %v3628 = vand.u32 %v3627, 127
        %v3629 = vadd.s32 %v3628, 128
        %v3630 = vadd.s32 %v3628, 256
        %v3631 = vadd.s32 %v3628, 384
        %s3632 = smul.u32 %s459, 512
        %v3633 = vstv %s3632
        %v3634 = vadd.s32 %v3633, %v3628
        %v3635 = vadd.s32 %v3633, %v3629
        %v3636 = vadd.s32 %v3633, %v3630
        %v3637 = vadd.s32 %v3633, %v3631
        %vm3638 = vcmp.lt.s32.totalorder %v3634, 2000
        %vm3639 = vcmp.lt.s32.totalorder %v3635, 2000
        %vm3640 = vcmp.lt.s32.totalorder %v3636, 2000
        %vm3641 = vcmp.lt.s32.totalorder %v3637, 2000
        %v3642 = vsel %vm3638, 1, 0
        %v3643 = vsel %vm3639, 1, 0
        %v3644 = vsel %vm3640, 1, 0
        %v3645 = vsel %vm3641, 1, 0
        %vm3646 = vcmp.eq.s32.totalorder %v3642, 1
        %vm3647 = vcmp.eq.s32.totalorder %v3643, 1
        %vm3648 = vcmp.eq.s32.totalorder %v3644, 1
        %vm3649 = vcmp.eq.s32.totalorder %v3645, 1
        %v3650 = vsel %vm3646, %v3276, -inf
        %v3651 = vsel %vm3647, %v3278, -inf
        %v3652 = vsel %vm3648, %v3389, -inf
        %v3653 = vsel %vm3649, %v3391, -inf
        %v3654 = vsel %vm3646, %v3280, -inf
        %v3655 = vsel %vm3647, %v3282, -inf
        %v3656 = vsel %vm3648, %v3393, -inf
        %v3657 = vsel %vm3649, %v3395, -inf
        %v3658 = vsel %vm3646, %v3286, -inf
        %v3659 = vsel %vm3647, %v3288, -inf
        %v3660 = vsel %vm3648, %v3399, -inf
        %v3661 = vsel %vm3649, %v3401, -inf
        %v3662 = vsel %vm3646, %v3290, -inf
        %v3663 = vsel %vm3647, %v3292, -inf
        %v3664 = vsel %vm3648, %v3403, -inf
        %v3665 = vsel %vm3649, %v3405, -inf
        %v3666 = vsel %vm3646, %v3296, -inf
        %v3667 = vsel %vm3647, %v3298, -inf
        %v3668 = vsel %vm3648, %v3409, -inf
        %v3669 = vsel %vm3649, %v3411, -inf
        %v3670 = vsel %vm3646, %v3300, -inf
        %v3671 = vsel %vm3647, %v3302, -inf
        %v3672 = vsel %vm3648, %v3413, -inf
        %v3673 = vsel %vm3649, %v3415, -inf
        %v3674 = vsel %vm3646, %v3306, -inf
        %v3675 = vsel %vm3647, %v3308, -inf
        %v3676 = vsel %vm3648, %v3419, -inf
        %v3677 = vsel %vm3649, %v3421, -inf
        %v3678 = vsel %vm3646, %v3310, -inf
        %v3679 = vsel %vm3647, %v3312, -inf
        %v3680 = vsel %vm3648, %v3423, -inf
        %v3681 = vsel %vm3649, %v3425, -inf
        %v3682 = vsel %vm3646, %v3316, -inf
        %v3683 = vsel %vm3647, %v3318, -inf
        %v3684 = vsel %vm3648, %v3429, -inf
        %v3685 = vsel %vm3649, %v3431, -inf
        %v3686 = vsel %vm3646, %v3320, -inf
        %v3687 = vsel %vm3647, %v3322, -inf
        %v3688 = vsel %vm3648, %v3433, -inf
        %v3689 = vsel %vm3649, %v3435, -inf
        %v3690 = vsel %vm3646, %v3326, -inf
        %v3691 = vsel %vm3647, %v3328, -inf
        %v3692 = vsel %vm3648, %v3439, -inf
        %v3693 = vsel %vm3649, %v3441, -inf
        %v3694 = vsel %vm3646, %v3330, -inf
        %v3695 = vsel %vm3647, %v3332, -inf
        %v3696 = vsel %vm3648, %v3443, -inf
        %v3697 = vsel %vm3649, %v3445, -inf
        %v3698 = vsel %vm3646, %v3336, -inf
        %v3699 = vsel %vm3647, %v3338, -inf
        %v3700 = vsel %vm3648, %v3449, -inf
        %v3701 = vsel %vm3649, %v3451, -inf
        %v3702 = vsel %vm3646, %v3340, -inf
        %v3703 = vsel %vm3647, %v3342, -inf
        %v3704 = vsel %vm3648, %v3453, -inf
        %v3705 = vsel %vm3649, %v3455, -inf
        %v3706 = vsel %vm3646, %v3346, -inf
        %v3707 = vsel %vm3647, %v3348, -inf
        %v3708 = vsel %vm3648, %v3459, -inf
        %v3709 = vsel %vm3649, %v3461, -inf
        %v3710 = vsel %vm3646, %v3350, -inf
        %v3711 = vsel %vm3647, %v3352, -inf
        %v3712 = vsel %vm3648, %v3463, -inf
        %v3713 = vsel %vm3649, %v3465, -inf
        %v3714 = vmax.f32 %v3650, %v3651
        %v3715 = vmax.f32 %v3714, %v3652
        %v3716 = vmax.f32 %v3715, %v3653
        %3717 = vmax.xlane.f32.xlu0 %v3716
        %v3718 = vpop.xlane.xlu0 %3717
        %v3719 = vmax.f32 %v3654, %v3655
        %v3720 = vmax.f32 %v3719, %v3656
        %v3721 = vmax.f32 %v3720, %v3657
        %3722 = vmax.xlane.f32.xlu0 %v3721
        %v3723 = vpop.xlane.xlu0 %3722
        %v3724 = vmax.f32 %v3658, %v3659
        %v3725 = vmax.f32 %v3724, %v3660
        %v3726 = vmax.f32 %v3725, %v3661
        %3727 = vmax.xlane.f32.xlu0 %v3726
        %v3728 = vpop.xlane.xlu0 %3727
        %v3729 = vmax.f32 %v3662, %v3663
        %v3730 = vmax.f32 %v3729, %v3664
        %v3731 = vmax.f32 %v3730, %v3665
        %3732 = vmax.xlane.f32.xlu0 %v3731
        %v3733 = vpop.xlane.xlu0 %3732
        %v3734 = vmax.f32 %v3666, %v3667
        %v3735 = vmax.f32 %v3734, %v3668
        %v3736 = vmax.f32 %v3735, %v3669
        %3737 = vmax.xlane.f32.xlu0 %v3736
        %v3738 = vpop.xlane.xlu0 %3737
        %v3739 = vmax.f32 %v3670, %v3671
        %v3740 = vmax.f32 %v3739, %v3672
        %v3741 = vmax.f32 %v3740, %v3673
        %3742 = vmax.xlane.f32.xlu0 %v3741
        %v3743 = vpop.xlane.xlu0 %3742
        %v3744 = vmax.f32 %v3674, %v3675
        %v3745 = vmax.f32 %v3744, %v3676
        %v3746 = vmax.f32 %v3745, %v3677
        %3747 = vmax.xlane.f32.xlu0 %v3746
        %v3748 = vpop.xlane.xlu0 %3747
        %v3749 = vmax.f32 %v3678, %v3679
        %v3750 = vmax.f32 %v3749, %v3680
        %v3751 = vmax.f32 %v3750, %v3681
        %3752 = vmax.xlane.f32.xlu0 %v3751
        %v3753 = vpop.xlane.xlu0 %3752
        %v3754 = vmax.f32 %v3682, %v3683
        %v3755 = vmax.f32 %v3754, %v3684
        %v3756 = vmax.f32 %v3755, %v3685
        %3757 = vmax.xlane.f32.xlu0 %v3756
        %v3758 = vpop.xlane.xlu0 %3757
        %v3759 = vmax.f32 %v3686, %v3687
        %v3760 = vmax.f32 %v3759, %v3688
        %v3761 = vmax.f32 %v3760, %v3689
        %3762 = vmax.xlane.f32.xlu0 %v3761
        %v3763 = vpop.xlane.xlu0 %3762
        %v3764 = vmax.f32 %v3690, %v3691
        %v3765 = vmax.f32 %v3764, %v3692
        %v3766 = vmax.f32 %v3765, %v3693
        %3767 = vmax.xlane.f32.xlu0 %v3766
        %v3768 = vpop.xlane.xlu0 %3767
        %v3769 = vmax.f32 %v3694, %v3695
        %v3770 = vmax.f32 %v3769, %v3696
        %v3771 = vmax.f32 %v3770, %v3697
        %3772 = vmax.xlane.f32.xlu0 %v3771
        %v3773 = vpop.xlane.xlu0 %3772
        %v3774 = vmax.f32 %v3698, %v3699
        %v3775 = vmax.f32 %v3774, %v3700
        %v3776 = vmax.f32 %v3775, %v3701
        %3777 = vmax.xlane.f32.xlu0 %v3776
        %v3778 = vpop.xlane.xlu0 %3777
        %v3779 = vmax.f32 %v3702, %v3703
        %v3780 = vmax.f32 %v3779, %v3704
        %v3781 = vmax.f32 %v3780, %v3705
        %3782 = vmax.xlane.f32.xlu0 %v3781
        %v3783 = vpop.xlane.xlu0 %3782
        %v3784 = vmax.f32 %v3706, %v3707
        %v3785 = vmax.f32 %v3784, %v3708
        %v3786 = vmax.f32 %v3785, %v3709
        %3787 = vmax.xlane.f32.xlu0 %v3786
        %v3788 = vpop.xlane.xlu0 %3787
        %v3789 = vmax.f32 %v3710, %v3711
        %v3790 = vmax.f32 %v3789, %v3712
        %v3791 = vmax.f32 %v3790, %v3713
        %3792 = vmax.xlane.f32.xlu0 %v3791
        %v3793 = vpop.xlane.xlu0 %3792
        %v3794 = vld [vmem:[%s456] sm:$0xff]
        %v3795 = vld [vmem:[%s456 + $0x8] sm:$0xff]
        %v3796 = vld [vmem:[%s456 + $0x10] sm:$0xff]
        %v3797 = vld [vmem:[%s456 + $0x18] sm:$0xff]
        %v3798 = vld [vmem:[%s456 + $0x20] sm:$0xff]
        %v3799 = vld [vmem:[%s456 + $0x28] sm:$0xff]
        %v3800 = vld [vmem:[%s456 + $0x30] sm:$0xff]
        %v3801 = vld [vmem:[%s456 + $0x38] sm:$0xff]
        %v3802 = vld [vmem:[%s456 + $0x40] sm:$0xff]
        %v3803 = vld [vmem:[%s456 + $0x48] sm:$0xff]
        %v3804 = vld [vmem:[%s456 + $0x50] sm:$0xff]
        %v3805 = vld [vmem:[%s456 + $0x58] sm:$0xff]
        %v3806 = vld [vmem:[%s456 + $0x60] sm:$0xff]
        %v3807 = vld [vmem:[%s456 + $0x68] sm:$0xff]
        %v3808 = vld [vmem:[%s456 + $0x70] sm:$0xff]
        %v3809 = vld [vmem:[%s456 + $0x78] sm:$0xff]
        %v3810 = vmax.f32 %v3794, %v3718
        %v3811 = vmax.f32 %v3795, %v3723
        %v3812 = vmax.f32 %v3796, %v3728
        %v3813 = vmax.f32 %v3797, %v3733
        %v3814 = vmax.f32 %v3798, %v3738
        %v3815 = vmax.f32 %v3799, %v3743
        %v3816 = vmax.f32 %v3800, %v3748
        %v3817 = vmax.f32 %v3801, %v3753
        %v3818 = vmax.f32 %v3802, %v3758
        %v3819 = vmax.f32 %v3803, %v3763
        %v3820 = vmax.f32 %v3804, %v3768
        %v3821 = vmax.f32 %v3805, %v3773
        %v3822 = vmax.f32 %v3806, %v3778
        %v3823 = vmax.f32 %v3807, %v3783
        %v3824 = vmax.f32 %v3808, %v3788
        %v3825 = vmax.f32 %v3809, %v3793
        %vm3826 = vcmask 7168
        %3827 = vst.msk [vmem:[%s456] sm:$0xff] %vm3826, %v3810
        %3828 = vst.msk [vmem:[%s456 + $0x8] sm:$0xff] %vm3826, %v3811
        %3829 = vst.msk [vmem:[%s456 + $0x10] sm:$0xff] %vm3826, %v3812
        %3830 = vst.msk [vmem:[%s456 + $0x18] sm:$0xff] %vm3826, %v3813
        %3831 = vst.msk [vmem:[%s456 + $0x20] sm:$0xff] %vm3826, %v3814
        %3832 = vst.msk [vmem:[%s456 + $0x28] sm:$0xff] %vm3826, %v3815
        %3833 = vst.msk [vmem:[%s456 + $0x30] sm:$0xff] %vm3826, %v3816
        %3834 = vst.msk [vmem:[%s456 + $0x38] sm:$0xff] %vm3826, %v3817
        %3835 = vst.msk [vmem:[%s456 + $0x40] sm:$0xff] %vm3826, %v3818
        %3836 = vst.msk [vmem:[%s456 + $0x48] sm:$0xff] %vm3826, %v3819
        %3837 = vst.msk [vmem:[%s456 + $0x50] sm:$0xff] %vm3826, %v3820
        %3838 = vst.msk [vmem:[%s456 + $0x58] sm:$0xff] %vm3826, %v3821
        %3839 = vst.msk [vmem:[%s456 + $0x60] sm:$0xff] %vm3826, %v3822
        %3840 = vst.msk [vmem:[%s456 + $0x68] sm:$0xff] %vm3826, %v3823
        %3841 = vst.msk [vmem:[%s456 + $0x70] sm:$0xff] %vm3826, %v3824
        %3842 = vst.msk [vmem:[%s456 + $0x78] sm:$0xff] %vm3826, %v3825
      $region76: #{encoder_conv1d_forward.1} parent=63 // pred_fallthru
        _
      %p3843 = scmp.lt.s32.totalorder %s27, 1
      %s3844 = scalar_select %p3843, %s27, 1
      %p3845 = scmp.lt.s32.totalorder %s28, 0
      %s3846 = scalar_select %p3845, %s28, 0
      %s3847 = smul.addr %s3846, 16
      %s3848 = smul.addr %s3844, 16
      %s3849 = sadd.s32 %s3847, %s3848
      %s3850 = smul.addr %s3849, 8
      %s3851 = scalar_lea.vmem %s11, %s3850
      // Predicated region
      $region77: #{encoder_conv1d_forward.1} parent=63 // pred_check
        %p3852 = pneg %p307
      $region78: #{encoder_conv1d_forward.1} parent=63 // pred_check_branch
        %3854 = sbr.rel (%p3852) target = $region80
      $region79: #{encoder_conv1d_forward.1} parent=63 // pred_region
        _
      $region80: #{encoder_conv1d_forward.1} parent=63 // pred_fallthru
        _
    $region64: #{encoder_conv1d_forward.1} parent=5 // pred_fallthru
      _
    %p3855 = scmp.le.s32.totalorder 2, %s17
    // Predicated region
    $region81: #{encoder_conv1d_forward.1} parent=5 // pred_check
      %p3856 = pneg %p3855
    $region82: #{encoder_conv1d_forward.1} parent=5 // pred_check_branch
      %3858 = sbr.rel (%p3856) target = $region84
    $region83: #{encoder_conv1d_forward.1} parent=5 // pred_region
      %s3859 = ssub.s32 %s17, 2
      // Predicated region
      $region85: #{encoder_conv1d_forward.1} parent=83 // pred_check
        %p3860 = pneg %p313
      $region86: #{encoder_conv1d_forward.1} parent=83 // pred_check_branch
        %3862 = sbr.rel (%p3860) target = $region88
      $region87: #{encoder_conv1d_forward.1} parent=83 // pred_region
        %p3863 = scmp.lt.s32.totalorder %s30, 1
        %s3864 = scalar_select %p3863, %s30, 1
        %p3865 = scmp.lt.s32.totalorder %s31, 0
        %s3866 = scalar_select %p3865, %s31, 0
        %s3867 = smul.addr %s3866, 16
        %s3868 = smul.addr %s3864, 16
        %s3869 = sadd.s32 %s3867, %s3868
        %s3870 = smul.addr %s3869, 8
        %s3871 = scalar_lea.vmem %s11, %s3870
      $region88: #{encoder_conv1d_forward.1} parent=83 // pred_fallthru
        _
    $region84: #{encoder_conv1d_forward.1} parent=5 // pred_fallthru
      _
  $region6: #{encoder_conv1d_forward.1} parent=0 // loop_footer
    %s21 = sadd.s32 1, %s17
  $region7: #{encoder_conv1d_forward.1} parent=0 // loop_footer_branch
    %16 = sbr.rel target = $region3
  $region8: #{encoder_conv1d_forward.1} parent=0 // loop_exit
    _

</llo_original>
